<compile_context>
chip_gen: v5e
topology: v5e:2x2
jax: 0.10.0
libtpu: 0.0.40
codegen_flags: <defaults>
</compile_context>

<pallas_src>
import math
from functools import partial

import jax
import jax.numpy as jnp
from jax import lax
from jax.experimental import pallas as pl
from jax.experimental.pallas import tpu as pltpu

LOG_SQRT_2PI = 0.5 * math.log(2.0 * math.pi)


def _density_wfa_kernel(scale, unroll,
                        x_ref,                  # [L, NT]   time on sublanes, batch on lanes
                        init_ref,               # [r_pad, 1]
                        a_ref,                  # [d*r_pad, r_pad]  A[i,dd,j] at a_ref[dd*r_pad+j, i]
                        we1_ref, be1_ref,       # [E, 1], [E, 1]        (encoder_1, in_features = 1)
                        we2_ref, be2_ref,       # [d_slot, E], [d_slot, 1]  (encoder_2, rows padded)
                        wn1_ref, bn1_ref,       # [H, r_pad], [H, 1]    (nade layer 0, cols padded)
                        wn2_ref, bn2_ref,       # [H, H], [H, 1]        (nade layer 1)
                        wh_ref, bh_ref,         # [3K, H], [3K, 1]      (fused mu | sig | alpha head)
                        out_ref,                # [1, NT]   lane-dense result
                        we1b_ref, be1b_ref, be2b_ref,     # VMEM scratch: pre-broadcast operands
                        bn1b_ref, bn2b_ref, bhb_ref):
    seq_len, nt = x_ref.shape
    r_pad = a_ref.shape[1]
    d = a_ref.shape[0] // r_pad
    d_slot = we2_ref.shape[0]
    e_dim = we1_ref.shape[0]
    h_dim = wn1_ref.shape[0]
    k3 = wh_ref.shape[0]
    k = k3 // 3

    # Pre-broadcast the [out, 1] operands into VMEM once (scratch persists across
    # the batch-tile grid); the hot loop then only does cheap vld re-loads.
    @pl.when(pl.program_id(0) == 0)
    def _():
        we1b_ref[...] = jnp.broadcast_to(we1_ref[...], (e_dim, nt))
        be1b_ref[...] = jnp.broadcast_to(be1_ref[...], (e_dim, nt))
        be2b_ref[...] = jnp.broadcast_to(be2_ref[...], (d_slot, nt))
        bn1b_ref[...] = jnp.broadcast_to(bn1_ref[...], (h_dim, nt))
        bn2b_ref[...] = jnp.broadcast_to(bn2_ref[...], (h_dim, nt))
        bhb_ref[...] = jnp.broadcast_to(bh_ref[...], (k3, nt))

    def encode(x_row):                      # [1, NT] -> [d_slot, NT]
        # encoder_1 has in_features == 1 -> pure VPU broadcast FMA, no MXU.
        h1 = jnp.maximum(we1b_ref[...] * x_row + be1b_ref[...], 0.0)            # [E, NT]
        h2 = jnp.dot(we2_ref[...], h1, preferred_element_type=jnp.float32) + be2b_ref[...]
        return jnp.tanh(h2)                 # rows >= d are tanh(0) = 0 (never used)

    def phi(x_row, h):                      # [1, NT], [r_pad, NT] -> [1, NT]
        h = jnp.tanh(h)
        h = jnp.maximum(jnp.dot(wn1_ref[...], h, preferred_element_type=jnp.float32)
                        + bn1b_ref[...], 0.0)
        h = jnp.maximum(jnp.dot(wn2_ref[...], h, preferred_element_type=jnp.float32)
                        + bn2b_ref[...], 0.0)
        # Single fused head matmul instead of three separate MXU push/pops.
        head = jnp.dot(wh_ref[...], h, preferred_element_type=jnp.float32) + bhb_ref[...]
        mu = head[:k, :]
        s_logit = head[k:2 * k, :]
        a_logit = head[2 * k:, :]
        # log softmax(alpha) over mixture components (sublane axis).
        am = jnp.max(a_logit, axis=0, keepdims=True)
        log_alpha = a_logit - am - jnp.log(
            jnp.sum(jnp.exp(a_logit - am), axis=0, keepdims=True))
        # Normal(mu, exp(s_logit)).log_prob(x) using s_logit directly
        # (log(sig) == s_logit, 1/sig == exp(-s_logit): saves a log and a divide).
        inv_sig = jnp.exp(-s_logit)
        comp_lp = -0.5 * ((x_row - mu) * inv_sig) ** 2 - s_logit - LOG_SQRT_2PI
        # MixtureSameFamily.log_prob == logsumexp over components.
        z = log_alpha + comp_lp
        m = jnp.max(z, axis=0, keepdims=True)
        return m + jnp.log(jnp.sum(jnp.exp(z - m), axis=0, keepdims=True))      # [1, NT]

    def transition(enc, tmp):               # [d_slot, NT], [r_pad, NT] -> [r_pad, NT]
        # einsum('nd,ni,idj->nj') == one [d*r_pad, r_pad] x [r_pad, NT] matmul
        # plus d aligned [8, NT] broadcast-FMAs.
        m = jnp.dot(a_ref[...], tmp, preferred_element_type=jnp.float32)         # [d*r_pad, NT]
        acc = enc[0:1, :] * m[0:r_pad, :]
        for dd in range(1, d):               # d is tiny & static
            acc = acc + enc[dd:dd + 1, :] * m[dd * r_pad:(dd + 1) * r_pad, :]
        return acc

    # i == 0: state is init_w broadcast across the batch (lanes).
    x0 = x_ref[0:1, :]                                                           # [1, NT]
    tmp0 = jnp.broadcast_to(init_ref[...], (r_pad, nt)).astype(jnp.float32)      # [r_pad, NT]
    result0 = phi(x0, tmp0)                                                      # [1, NT]
    enc0 = encode(x0)                        # encoding(x[0]); consumed at step 1

    def body(i, carry):
        tmp, result, sp, enc_prev = carry
        x_cur = x_ref[pl.ds(i, 1), :]
        tmp = transition(enc_prev, tmp)      # enc(x[i-1]) from the carry
        sp = sp * scale                      # scale ** i
        result = result + phi(x_cur, tmp * sp)
        enc_next = encode(x_cur)             # independent of the state chain -> overlaps phi
        return (tmp, result, sp, enc_next)

    _, result, _, _ = lax.fori_loop(
        1, seq_len, body,
        (tmp0, result0, jnp.float32(1.0), enc0),
        unroll=unroll)

    out_ref[...] = result                    # [1, NT] -> full-width unmasked store


def density_wfa_forward(params, x, scale=1.0, n_tile=None):
    """x: [N, xd=1, L] (same NCL convention as the PyTorch module). Returns [N]."""
    n, xd, seq_len = x.shape
    assert xd == 1, "univariate per-step feature (xd == 1), as implied by .squeeze()"
    assert seq_len >= 1

    f32 = jnp.float32
    r = params["init_w"].shape[1]
    d = params["A"].shape[1]
    e_dim = params["we1"].shape[1]
    h_dim = params["wn1"].shape[1]
    k_mix = params["wmu"].shape[1]
    r_pad = 8 * ((r + 7) // 8)
    d_slot = 8 * ((d + 7) // 8)

    # Batch tile: lane-dense multiple of 128; default 256 (halves vreg pressure vs
    # 512 and leaves VMEM headroom on v7x).  Prefer >= 2 tiles when possible so the
    # "parallel" grid axis can shard across v7x's 2 TensorCores.
    if n_tile is None:
        n_tile = min(256, 128 * ((n + 127) // 128))
        if n > 128 and (n + n_tile - 1) // n_tile < 2:
            n_tile = 128
    n_pad = n_tile * ((n + n_tile - 1) // n_tile)

    # Batch-on-lanes: X -> [L, N_pad]; pad extra lanes with zeros (discarded later).
    x2d = jnp.transpose(x[:, 0, :].astype(f32))                                  # [L, N]
    if n_pad != n:
        x2d = jnp.pad(x2d, ((0, 0), (0, n_pad - n)))

    # Pre-transpose all weights to [out, in]; pad r (and the encoder output rows)
    # to the 8-sublane granule; fuse the three head projections.
    a_t = jnp.transpose(params["A"].astype(f32), (1, 2, 0))                       # [d, j, i]
    a_t = jnp.pad(a_t, ((0, 0), (0, r_pad - r), (0, r_pad - r))).reshape(d * r_pad, r_pad)
    init_t = jnp.pad(params["init_w"].astype(f32).T, ((0, r_pad - r), (0, 0)))    # [r_pad, 1]
    we1_t = params["we1"].astype(f32).T                                           # [E, 1]
    be1_t = params["be1"].astype(f32).T                                           # [E, 1]
    we2_t = jnp.pad(params["we2"].astype(f32).T, ((0, d_slot - d), (0, 0)))       # [d_slot, E]
    be2_t = jnp.pad(params["be2"].astype(f32).T, ((0, d_slot - d), (0, 0)))       # [d_slot, 1]
    wn1_t = jnp.pad(params["wn1"].astype(f32).T, ((0, 0), (0, r_pad - r)))        # [H, r_pad]
    bn1_t = params["bn1"].astype(f32).T
    wn2_t = params["wn2"].astype(f32).T
    bn2_t = params["bn2"].astype(f32).T
    wh_t = jnp.concatenate([params["wmu"].astype(f32).T, params["wsig"].astype(f32).T,
                            params["wal"].astype(f32).T], axis=0)                 # [3K, H]
    bh_t = jnp.concatenate([params["bmu"].astype(f32).T, params["bsig"].astype(f32).T,
                            params["bal"].astype(f32).T], axis=0)                 # [3K, 1]

    args = (x2d, init_t, a_t, we1_t, be1_t, we2_t, be2_t,
            wn1_t, bn1_t, wn2_t, bn2_t, wh_t, bh_t)

    in_specs = [pl.BlockSpec((seq_len, n_tile), lambda b: (0, b))]                 # X: batch-tiled
    in_specs += [pl.BlockSpec(a.shape, lambda b: (0, 0)) for a in args[1:]]        # weights: resident
    out_specs = pl.BlockSpec((1, n_tile), lambda b: (0, b))                        # lane-dense output

    scratch_shapes = [
        pltpu.VMEM((e_dim, n_tile), f32),       # we1 pre-broadcast
        pltpu.VMEM((e_dim, n_tile), f32),       # be1 pre-broadcast
        pltpu.VMEM((d_slot, n_tile), f32),      # be2 pre-broadcast
        pltpu.VMEM((h_dim, n_tile), f32),       # bn1 pre-broadcast
        pltpu.VMEM((h_dim, n_tile), f32),       # bn2 pre-broadcast
        pltpu.VMEM((3 * k_mix, n_tile), f32),   # fused head bias pre-broadcast
    ]

    steps = seq_len - 1
    unroll = True if steps <= 16 else 8          # full unroll short L, partial unroll long L

    # Generation-aware VMEM limit (v7x has 64 MiB physical per TC, v5e/v6e 128 MiB).
    try:
        phys = int(getattr(pltpu.get_tpu_info(), "vmem_capacity_bytes", 64 * 2 ** 20))
    except Exception:
        phys = 64 * 2 ** 20
    vmem_limit = max(32 * 2 ** 20, min(48 * 2 ** 20, int(phys * 0.7)))

    kernel = partial(_density_wfa_kernel, float(scale), unroll)
    out = pl.pallas_call(
        kernel,
        out_shape=jax.ShapeDtypeStruct((1, n_pad), jnp.float32),
        grid=(n_pad // n_tile,),
        in_specs=in_specs,
        out_specs=out_specs,
        scratch_shapes=scratch_shapes,
        compiler_params=pltpu.CompilerParams(
            dimension_semantics=("parallel",),   # megacore-shard batch tiles on v7x
            vmem_limit_bytes=vmem_limit),
    )(*args)
    return out[0, :n]


def density_wfa_reference(params, x, scale=1.0):
    """Pure-JAX reference (mirrors the PyTorch forward) for verification."""
    n, _, seq_len = x.shape
    xs = x[:, 0, :].astype(jnp.float32)
    p = params

    def encoding(xc):
        h = jnp.maximum(xc @ p["we1"] + p["be1"], 0.0)
        return jnp.tanh(h @ p["we2"] + p["be2"])

    def phi(xc, h):
        h = jnp.tanh(h)
        h = jnp.maximum(h @ p["wn1"] + p["bn1"], 0.0)
        h = jnp.maximum(h @ p["wn2"] + p["bn2"], 0.0)
        mu = h @ p["wmu"] + p["bmu"]
        sig = jnp.exp(h @ p["wsig"] + p["bsig"])
        log_alpha = jax.nn.log_softmax(h @ p["wal"] + p["bal"], axis=1)
        comp = -0.5 * ((xc - mu) / sig) ** 2 - jnp.log(sig) - LOG_SQRT_2PI
        return jax.scipy.special.logsumexp(log_alpha + comp, axis=1)

    tmp = jnp.broadcast_to(p["init_w"], (n, p["init_w"].shape[1]))
    result = jnp.zeros((n,), jnp.float32)
    for i in range(seq_len):
        if i > 0:
            enc = encoding(xs[:, i - 1:i])
            tmp = jnp.einsum("nd,ni,idj->nj", enc, tmp, p["A"])
        result = result + phi(xs[:, i:i + 1], tmp * (scale ** i))
    return result


def init_params(key, *, d=4, r=4, enc_hidden=16, nade_hidden=32, k_mix=8, init_std=0.1):
    ks = jax.random.split(key, 17)
    nrm = lambda kk, shape: (init_std * jax.random.normal(kk, shape)).astype(jnp.float32)
    # TODO(synk): spectral_learning() (SVD + pinv over Hankel tensors) is init-time
    # only and has no in-kernel role; init_w / A are initialized directly here.
    return {
        "init_w": nrm(ks[0], (1, r)),
        "A":      nrm(ks[1], (r, d, r)),
        "we1":    nrm(ks[2], (1, enc_hidden)), "be1": nrm(ks[3], (1, enc_hidden)),
        "we2":    nrm(ks[4], (enc_hidden, d)), "be2": nrm(ks[5], (1, d)),
        "wn1":    nrm(ks[6], (r, nade_hidden)), "bn1": nrm(ks[7], (1, nade_hidden)),
        "wn2":    nrm(ks[8], (nade_hidden, nade_hidden)), "bn2": nrm(ks[9], (1, nade_hidden)),
        "wmu":    nrm(ks[10], (nade_hidden, k_mix)), "bmu": nrm(ks[11], (1, k_mix)),
        "wsig":   nrm(ks[12], (nade_hidden, k_mix)), "bsig": nrm(ks[13], (1, k_mix)),
        "wal":    nrm(ks[14], (nade_hidden, k_mix)), "bal": nrm(ks[15], (1, k_mix)),
    }


if __name__ == "__main__":
    key = jax.random.PRNGKey(0)
    pkey, xkey = jax.random.split(key)

    N, L = 2, 8                                   # batch=2, sequence length=8
    params = init_params(pkey, d=4, r=4, enc_hidden=16, nade_hidden=32, k_mix=8)
    x = jax.random.normal(xkey, (N, 1, L), dtype=jnp.float32)   # [N, xd=1, L]

    # Note: the reference module's spectral_learning() returns scale = 0 (it never
    # updates max_singular_value), which zeroes the recurrent state inside phi for
    # i > 0.  We keep `scale` a free parameter and use 1.0 to exercise the full path.
    scale = 1.0

    out = density_wfa_forward(params, x, scale=scale)
    jax.block_until_ready(out)

    ref = density_wfa_reference(params, x, scale=scale)
    assert out.shape == (N,)
    assert jnp.allclose(out, ref, atol=1e-3, rtol=1e-3), (out, ref)

    print("KERNEL_OK")
</pallas_src>

<mosaic_0001>
module attributes {stable_mosaic.version = 11 : i64} {
  func.func @_density_wfa_kernel(%arg0: i32, %arg1: memref<8x128xf32, #tpu.memory_space<vmem>>, %arg2: memref<8x1xf32, #tpu.memory_space<vmem>>, %arg3: memref<32x8xf32, #tpu.memory_space<vmem>>, %arg4: memref<16x1xf32, #tpu.memory_space<vmem>>, %arg5: memref<16x1xf32, #tpu.memory_space<vmem>>, %arg6: memref<8x16xf32, #tpu.memory_space<vmem>>, %arg7: memref<8x1xf32, #tpu.memory_space<vmem>>, %arg8: memref<32x8xf32, #tpu.memory_space<vmem>>, %arg9: memref<32x1xf32, #tpu.memory_space<vmem>>, %arg10: memref<32x32xf32, #tpu.memory_space<vmem>>, %arg11: memref<32x1xf32, #tpu.memory_space<vmem>>, %arg12: memref<24x32xf32, #tpu.memory_space<vmem>>, %arg13: memref<24x1xf32, #tpu.memory_space<vmem>>, %arg14: memref<1x128xf32, #tpu.memory_space<vmem>>, %arg15: memref<16x128xf32, #tpu.memory_space<vmem>>, %arg16: memref<16x128xf32, #tpu.memory_space<vmem>>, %arg17: memref<8x128xf32, #tpu.memory_space<vmem>>, %arg18: memref<32x128xf32, #tpu.memory_space<vmem>>, %arg19: memref<32x128xf32, #tpu.memory_space<vmem>>, %arg20: memref<24x128xf32, #tpu.memory_space<vmem>>) attributes {dimension_semantics = [#tpu.dimension_semantics<parallel>], iteration_bounds = array<i64: 1>, scalar_prefetch = 0 : i64, scratch_operands = 6 : i64, tpu.core_type = #tpu.core_type<tc>, window_params = [{transform_indices = @transform_0, window_bounds = array<i64: 8, 128>}, {pipeline_mode = #tpu.pipeline_mode<synchronous>, transform_indices = @transform_1, window_bounds = array<i64: 8, 1>}, {pipeline_mode = #tpu.pipeline_mode<synchronous>, transform_indices = @transform_2, window_bounds = array<i64: 32, 8>}, {pipeline_mode = #tpu.pipeline_mode<synchronous>, transform_indices = @transform_3, window_bounds = array<i64: 16, 1>}, {pipeline_mode = #tpu.pipeline_mode<synchronous>, transform_indices = @transform_4, window_bounds = array<i64: 16, 1>}, {pipeline_mode = #tpu.pipeline_mode<synchronous>, transform_indices = @transform_5, window_bounds = array<i64: 8, 16>}, {pipeline_mode = #tpu.pipeline_mode<synchronous>, transform_indices = @transform_6, window_bounds = array<i64: 8, 1>}, {pipeline_mode = #tpu.pipeline_mode<synchronous>, transform_indices = @transform_7, window_bounds = array<i64: 32, 8>}, {pipeline_mode = #tpu.pipeline_mode<synchronous>, transform_indices = @transform_8, window_bounds = array<i64: 32, 1>}, {pipeline_mode = #tpu.pipeline_mode<synchronous>, transform_indices = @transform_9, window_bounds = array<i64: 32, 32>}, {pipeline_mode = #tpu.pipeline_mode<synchronous>, transform_indices = @transform_10, window_bounds = array<i64: 32, 1>}, {pipeline_mode = #tpu.pipeline_mode<synchronous>, transform_indices = @transform_11, window_bounds = array<i64: 24, 32>}, {pipeline_mode = #tpu.pipeline_mode<synchronous>, transform_indices = @transform_12, window_bounds = array<i64: 24, 1>}, {transform_indices = @transform_13, window_bounds = array<i64: 1, 128>}]} {
    %c0_i32 = arith.constant 0 : i32
    %0 = arith.cmpi eq, %arg0, %c0_i32 : i32
    %1 = arith.extui %0 : i1 to i32
    %c0_i32_0 = arith.constant 0 : i32
    %2 = arith.cmpi ne, %1, %c0_i32_0 : i32
    scf.if %2 {
      %c0_314 = arith.constant 0 : index
      %c0_315 = arith.constant 0 : index
      %725 = vector.load %arg4[%c0_314, %c0_315] : memref<16x1xf32, #tpu.memory_space<vmem>>, vector<16x1xf32>
      %726 = vector.shape_cast %725 : vector<16x1xf32> to vector<16x1xf32>
      %727 = vector.broadcast %726 : vector<16x1xf32> to vector<16x128xf32>
      %c0_316 = arith.constant 0 : index
      %c0_317 = arith.constant 0 : index
      %728 = vector.load %arg15[%c0_316, %c0_317] : memref<16x128xf32, #tpu.memory_space<vmem>>, vector<16x128xf32>
      tpu.vector_store %arg15[%c0_316, %c0_317], %727 {strides = array<i32>} : memref<16x128xf32, #tpu.memory_space<vmem>>, vector<16x128xf32>,
      %c0_318 = arith.constant 0 : index
      %c0_319 = arith.constant 0 : index
      %729 = vector.load %arg5[%c0_318, %c0_319] : memref<16x1xf32, #tpu.memory_space<vmem>>, vector<16x1xf32>
      %730 = vector.shape_cast %729 : vector<16x1xf32> to vector<16x1xf32>
      %731 = vector.broadcast %730 : vector<16x1xf32> to vector<16x128xf32>
      %c0_320 = arith.constant 0 : index
      %c0_321 = arith.constant 0 : index
      %732 = vector.load %arg16[%c0_320, %c0_321] : memref<16x128xf32, #tpu.memory_space<vmem>>, vector<16x128xf32>
      tpu.vector_store %arg16[%c0_320, %c0_321], %731 {strides = array<i32>} : memref<16x128xf32, #tpu.memory_space<vmem>>, vector<16x128xf32>,
      %c0_322 = arith.constant 0 : index
      %c0_323 = arith.constant 0 : index
      %733 = vector.load %arg7[%c0_322, %c0_323] : memref<8x1xf32, #tpu.memory_space<vmem>>, vector<8x1xf32>
      %734 = vector.shape_cast %733 : vector<8x1xf32> to vector<8x1xf32>
      %735 = vector.broadcast %734 : vector<8x1xf32> to vector<8x128xf32>
      %c0_324 = arith.constant 0 : index
      %c0_325 = arith.constant 0 : index
      %736 = vector.load %arg17[%c0_324, %c0_325] : memref<8x128xf32, #tpu.memory_space<vmem>>, vector<8x128xf32>
      tpu.vector_store %arg17[%c0_324, %c0_325], %735 {strides = array<i32>} : memref<8x128xf32, #tpu.memory_space<vmem>>, vector<8x128xf32>,
      %c0_326 = arith.constant 0 : index
      %c0_327 = arith.constant 0 : index
      %737 = vector.load %arg9[%c0_326, %c0_327] : memref<32x1xf32, #tpu.memory_space<vmem>>, vector<32x1xf32>
      %738 = vector.shape_cast %737 : vector<32x1xf32> to vector<32x1xf32>
      %739 = vector.broadcast %738 : vector<32x1xf32> to vector<32x128xf32>
      %c0_328 = arith.constant 0 : index
      %c0_329 = arith.constant 0 : index
      %740 = vector.load %arg18[%c0_328, %c0_329] : memref<32x128xf32, #tpu.memory_space<vmem>>, vector<32x128xf32>
      tpu.vector_store %arg18[%c0_328, %c0_329], %739 {strides = array<i32>} : memref<32x128xf32, #tpu.memory_space<vmem>>, vector<32x128xf32>,
      %c0_330 = arith.constant 0 : index
      %c0_331 = arith.constant 0 : index
      %741 = vector.load %arg11[%c0_330, %c0_331] : memref<32x1xf32, #tpu.memory_space<vmem>>, vector<32x1xf32>
      %742 = vector.shape_cast %741 : vector<32x1xf32> to vector<32x1xf32>
      %743 = vector.broadcast %742 : vector<32x1xf32> to vector<32x128xf32>
      %c0_332 = arith.constant 0 : index
      %c0_333 = arith.constant 0 : index
      %744 = vector.load %arg19[%c0_332, %c0_333] : memref<32x128xf32, #tpu.memory_space<vmem>>, vector<32x128xf32>
      tpu.vector_store %arg19[%c0_332, %c0_333], %743 {strides = array<i32>} : memref<32x128xf32, #tpu.memory_space<vmem>>, vector<32x128xf32>,
      %c0_334 = arith.constant 0 : index
      %c0_335 = arith.constant 0 : index
      %745 = vector.load %arg13[%c0_334, %c0_335] : memref<24x1xf32, #tpu.memory_space<vmem>>, vector<24x1xf32>
      %746 = vector.shape_cast %745 : vector<24x1xf32> to vector<24x1xf32>
      %747 = vector.broadcast %746 : vector<24x1xf32> to vector<24x128xf32>
      %c0_336 = arith.constant 0 : index
      %c0_337 = arith.constant 0 : index
      %748 = vector.load %arg20[%c0_336, %c0_337] : memref<24x128xf32, #tpu.memory_space<vmem>>, vector<24x128xf32>
      tpu.vector_store %arg20[%c0_336, %c0_337], %747 {strides = array<i32>} : memref<24x128xf32, #tpu.memory_space<vmem>>, vector<24x128xf32>,
    } else {
    }
    %c0 = arith.constant 0 : index
    %c0_1 = arith.constant 0 : index
    %3 = vector.load %arg1[%c0, %c0_1] : memref<8x128xf32, #tpu.memory_space<vmem>>, vector<1x128xf32>
    %c0_2 = arith.constant 0 : index
    %c0_3 = arith.constant 0 : index
    %4 = vector.load %arg2[%c0_2, %c0_3] : memref<8x1xf32, #tpu.memory_space<vmem>>, vector<8x1xf32>
    %5 = vector.shape_cast %4 : vector<8x1xf32> to vector<8x1xf32>
    %6 = vector.broadcast %5 : vector<8x1xf32> to vector<8x128xf32>
    %7 = math.tanh %6 : vector<8x128xf32>
    %c0_4 = arith.constant 0 : index
    %c0_5 = arith.constant 0 : index
    %8 = vector.load %arg8[%c0_4, %c0_5] : memref<32x8xf32, #tpu.memory_space<vmem>>, vector<32x8xf32>
    %cst = arith.constant dense<0.000000e+00> : vector<32x128xf32>
    %9 = tpu.matmul %8, %7, %cst {dimension_numbers = #tpu.dot_dimension_numbers<[1], [0], [0], [1], [0, 0, 1, 1], [], []>} : vector<32x8xf32>, vector<8x128xf32>, vector<32x128xf32> -> vector<32x128xf32>
    %c0_6 = arith.constant 0 : index
    %c0_7 = arith.constant 0 : index
    %10 = vector.load %arg18[%c0_6, %c0_7] : memref<32x128xf32, #tpu.memory_space<vmem>>, vector<32x128xf32>
    %11 = arith.addf %9, %10 : vector<32x128xf32>
    %cst_8 = arith.constant 0.000000e+00 : f32
    %12 = vector.broadcast %cst_8 : f32 to vector<32x128xf32>
    %13 = arith.maximumf %11, %12 : vector<32x128xf32>
    %c0_9 = arith.constant 0 : index
    %c0_10 = arith.constant 0 : index
    %14 = vector.load %arg10[%c0_9, %c0_10] : memref<32x32xf32, #tpu.memory_space<vmem>>, vector<32x32xf32>
    %cst_11 = arith.constant dense<0.000000e+00> : vector<32x128xf32>
    %15 = tpu.matmul %14, %13, %cst_11 {dimension_numbers = #tpu.dot_dimension_numbers<[1], [0], [0], [1], [0, 0, 1, 1], [], []>} : vector<32x32xf32>, vector<32x128xf32>, vector<32x128xf32> -> vector<32x128xf32>
    %c0_12 = arith.constant 0 : index
    %c0_13 = arith.constant 0 : index
    %16 = vector.load %arg19[%c0_12, %c0_13] : memref<32x128xf32, #tpu.memory_space<vmem>>, vector<32x128xf32>
    %17 = arith.addf %15, %16 : vector<32x128xf32>
    %cst_14 = arith.constant 0.000000e+00 : f32
    %18 = vector.broadcast %cst_14 : f32 to vector<32x128xf32>
    %19 = arith.maximumf %17, %18 : vector<32x128xf32>
    %c0_15 = arith.constant 0 : index
    %c0_16 = arith.constant 0 : index
    %20 = vector.load %arg12[%c0_15, %c0_16] : memref<24x32xf32, #tpu.memory_space<vmem>>, vector<24x32xf32>
    %cst_17 = arith.constant dense<0.000000e+00> : vector<24x128xf32>
    %21 = tpu.matmul %20, %19, %cst_17 {dimension_numbers = #tpu.dot_dimension_numbers<[1], [0], [0], [1], [0, 0, 1, 1], [], []>} : vector<24x32xf32>, vector<32x128xf32>, vector<24x128xf32> -> vector<24x128xf32>
    %c0_18 = arith.constant 0 : index
    %c0_19 = arith.constant 0 : index
    %22 = vector.load %arg20[%c0_18, %c0_19] : memref<24x128xf32, #tpu.memory_space<vmem>>, vector<24x128xf32>
    %23 = arith.addf %21, %22 : vector<24x128xf32>
    %24 = vector.extract_strided_slice %23 {offsets = [0, 0], sizes = [8, 128], strides = [1, 1]} : vector<24x128xf32> to vector<8x128xf32>
    %25 = vector.extract_strided_slice %23 {offsets = [8, 0], sizes = [8, 128], strides = [1, 1]} : vector<24x128xf32> to vector<8x128xf32>
    %26 = vector.extract_strided_slice %23 {offsets = [16, 0], sizes = [8, 128], strides = [1, 1]} : vector<24x128xf32> to vector<8x128xf32>
    %cst_20 = arith.constant dense<0xFF800000> : vector<128xf32>
    %27 = vector.multi_reduction <maximumf>, %26, %cst_20 [0] : vector<8x128xf32> to vector<128xf32>
    %28 = vector.shape_cast %27 : vector<128xf32> to vector<1x128xf32>
    %29 = vector.broadcast %28 : vector<1x128xf32> to vector<8x128xf32>
    %30 = arith.subf %26, %29 : vector<8x128xf32>
    %31 = vector.broadcast %28 : vector<1x128xf32> to vector<8x128xf32>
    %32 = arith.subf %26, %31 : vector<8x128xf32>
    %33 = math.exp %32 : vector<8x128xf32>
    %cst_21 = arith.constant dense<0.000000e+00> : vector<128xf32>
    %34 = vector.multi_reduction <add>, %33, %cst_21 [0] : vector<8x128xf32> to vector<128xf32>
    %35 = vector.shape_cast %34 : vector<128xf32> to vector<1x128xf32>
    %36 = math.log %35 : vector<1x128xf32>
    %37 = vector.broadcast %36 : vector<1x128xf32> to vector<8x128xf32>
    %38 = arith.subf %30, %37 : vector<8x128xf32>
    %cst_22 = arith.constant 0.000000e+00 : f32
    %39 = vector.broadcast %cst_22 : f32 to vector<8x128xf32>
    %40 = arith.subf %39, %25 : vector<8x128xf32>
    %41 = math.exp %40 : vector<8x128xf32>
    %42 = vector.broadcast %3 : vector<1x128xf32> to vector<8x128xf32>
    %43 = arith.subf %42, %24 : vector<8x128xf32>
    %44 = arith.mulf %43, %41 : vector<8x128xf32>
    %45 = arith.mulf %44, %44 : vector<8x128xf32>
    %cst_23 = arith.constant -5.000000e-01 : f32
    %46 = vector.broadcast %cst_23 : f32 to vector<8x128xf32>
    %47 = arith.mulf %46, %45 : vector<8x128xf32>
    %48 = arith.subf %47, %25 : vector<8x128xf32>
    %cst_24 = arith.constant 0.918938517 : f32
    %49 = vector.broadcast %cst_24 : f32 to vector<8x128xf32>
    %50 = arith.subf %48, %49 : vector<8x128xf32>
    %51 = arith.addf %38, %50 : vector<8x128xf32>
    %cst_25 = arith.constant dense<0xFF800000> : vector<128xf32>
    %52 = vector.multi_reduction <maximumf>, %51, %cst_25 [0] : vector<8x128xf32> to vector<128xf32>
    %53 = vector.shape_cast %52 : vector<128xf32> to vector<1x128xf32>
    %54 = vector.broadcast %53 : vector<1x128xf32> to vector<8x128xf32>
    %55 = arith.subf %51, %54 : vector<8x128xf32>
    %56 = math.exp %55 : vector<8x128xf32>
    %cst_26 = arith.constant dense<0.000000e+00> : vector<128xf32>
    %57 = vector.multi_reduction <add>, %56, %cst_26 [0] : vector<8x128xf32> to vector<128xf32>
    %58 = vector.shape_cast %57 : vector<128xf32> to vector<1x128xf32>
    %59 = math.log %58 : vector<1x128xf32>
    %60 = arith.addf %53, %59 : vector<1x128xf32>
    %c0_27 = arith.constant 0 : index
    %c0_28 = arith.constant 0 : index
    %61 = vector.load %arg15[%c0_27, %c0_28] : memref<16x128xf32, #tpu.memory_space<vmem>>, vector<16x128xf32>
    %62 = vector.broadcast %3 : vector<1x128xf32> to vector<16x128xf32>
    %63 = arith.mulf %61, %62 : vector<16x128xf32>
    %c0_29 = arith.constant 0 : index
    %c0_30 = arith.constant 0 : index
    %64 = vector.load %arg16[%c0_29, %c0_30] : memref<16x128xf32, #tpu.memory_space<vmem>>, vector<16x128xf32>
    %65 = arith.addf %63, %64 : vector<16x128xf32>
    %cst_31 = arith.constant 0.000000e+00 : f32
    %66 = vector.broadcast %cst_31 : f32 to vector<16x128xf32>
    %67 = arith.maximumf %65, %66 : vector<16x128xf32>
    %c0_32 = arith.constant 0 : index
    %c0_33 = arith.constant 0 : index
    %68 = vector.load %arg6[%c0_32, %c0_33] : memref<8x16xf32, #tpu.memory_space<vmem>>, vector<8x16xf32>
    %cst_34 = arith.constant dense<0.000000e+00> : vector<8x128xf32>
    %69 = tpu.matmul %68, %67, %cst_34 {dimension_numbers = #tpu.dot_dimension_numbers<[1], [0], [0], [1], [0, 0, 1, 1], [], []>} : vector<8x16xf32>, vector<16x128xf32>, vector<8x128xf32> -> vector<8x128xf32>
    %c0_35 = arith.constant 0 : index
    %c0_36 = arith.constant 0 : index
    %70 = vector.load %arg17[%c0_35, %c0_36] : memref<8x128xf32, #tpu.memory_space<vmem>>, vector<8x128xf32>
    %71 = arith.addf %69, %70 : vector<8x128xf32>
    %72 = math.tanh %71 : vector<8x128xf32>
    %cst_37 = arith.constant 1.000000e+00 : f32
    %c1_i32 = arith.constant 1 : i32
    %73 = arith.index_cast %c1_i32 : i32 to index
    %c0_38 = arith.constant 0 : index
    %74 = vector.load %arg1[%73, %c0_38] : memref<8x128xf32, #tpu.memory_space<vmem>>, vector<1x128xf32>
    %c0_39 = arith.constant 0 : index
    %c0_40 = arith.constant 0 : index
    %75 = vector.load %arg3[%c0_39, %c0_40] : memref<32x8xf32, #tpu.memory_space<vmem>>, vector<32x8xf32>
    %cst_41 = arith.constant dense<0.000000e+00> : vector<32x128xf32>
    %76 = tpu.matmul %75, %6, %cst_41 {dimension_numbers = #tpu.dot_dimension_numbers<[1], [0], [0], [1], [0, 0, 1, 1], [], []>} : vector<32x8xf32>, vector<8x128xf32>, vector<32x128xf32> -> vector<32x128xf32>
    %77 = vector.extract_strided_slice %72 {offsets = [0, 0], sizes = [1, 128], strides = [1, 1]} : vector<8x128xf32> to vector<1x128xf32>
    %78 = vector.extract_strided_slice %76 {offsets = [0, 0], sizes = [8, 128], strides = [1, 1]} : vector<32x128xf32> to vector<8x128xf32>
    %79 = vector.broadcast %77 : vector<1x128xf32> to vector<8x128xf32>
    %80 = arith.mulf %79, %78 : vector<8x128xf32>
    %81 = vector.extract_strided_slice %72 {offsets = [1, 0], sizes = [1, 128], strides = [1, 1]} : vector<8x128xf32> to vector<1x128xf32>
    %82 = vector.extract_strided_slice %76 {offsets = [8, 0], sizes = [8, 128], strides = [1, 1]} : vector<32x128xf32> to vector<8x128xf32>
    %83 = vector.broadcast %81 : vector<1x128xf32> to vector<8x128xf32>
    %84 = arith.mulf %83, %82 : vector<8x128xf32>
    %85 = arith.addf %80, %84 : vector<8x128xf32>
    %86 = vector.extract_strided_slice %72 {offsets = [2, 0], sizes = [1, 128], strides = [1, 1]} : vector<8x128xf32> to vector<1x128xf32>
    %87 = vector.extract_strided_slice %76 {offsets = [16, 0], sizes = [8, 128], strides = [1, 1]} : vector<32x128xf32> to vector<8x128xf32>
    %88 = vector.broadcast %86 : vector<1x128xf32> to vector<8x128xf32>
    %89 = arith.mulf %88, %87 : vector<8x128xf32>
    %90 = arith.addf %85, %89 : vector<8x128xf32>
    %91 = vector.extract_strided_slice %72 {offsets = [3, 0], sizes = [1, 128], strides = [1, 1]} : vector<8x128xf32> to vector<1x128xf32>
    %92 = vector.extract_strided_slice %76 {offsets = [24, 0], sizes = [8, 128], strides = [1, 1]} : vector<32x128xf32> to vector<8x128xf32>
    %93 = vector.broadcast %91 : vector<1x128xf32> to vector<8x128xf32>
    %94 = arith.mulf %93, %92 : vector<8x128xf32>
    %95 = arith.addf %90, %94 : vector<8x128xf32>
    %cst_42 = arith.constant 1.000000e+00 : f32
    %96 = arith.mulf %cst_37, %cst_42 : f32
    %97 = vector.broadcast %96 : f32 to vector<8x128xf32>
    %98 = arith.mulf %95, %97 : vector<8x128xf32>
    %99 = math.tanh %98 : vector<8x128xf32>
    %c0_43 = arith.constant 0 : index
    %c0_44 = arith.constant 0 : index
    %100 = vector.load %arg8[%c0_43, %c0_44] : memref<32x8xf32, #tpu.memory_space<vmem>>, vector<32x8xf32>
    %cst_45 = arith.constant dense<0.000000e+00> : vector<32x128xf32>
    %101 = tpu.matmul %100, %99, %cst_45 {dimension_numbers = #tpu.dot_dimension_numbers<[1], [0], [0], [1], [0, 0, 1, 1], [], []>} : vector<32x8xf32>, vector<8x128xf32>, vector<32x128xf32> -> vector<32x128xf32>
    %c0_46 = arith.constant 0 : index
    %c0_47 = arith.constant 0 : index
    %102 = vector.load %arg18[%c0_46, %c0_47] : memref<32x128xf32, #tpu.memory_space<vmem>>, vector<32x128xf32>
    %103 = arith.addf %101, %102 : vector<32x128xf32>
    %cst_48 = arith.constant 0.000000e+00 : f32
    %104 = vector.broadcast %cst_48 : f32 to vector<32x128xf32>
    %105 = arith.maximumf %103, %104 : vector<32x128xf32>
    %c0_49 = arith.constant 0 : index
    %c0_50 = arith.constant 0 : index
    %106 = vector.load %arg10[%c0_49, %c0_50] : memref<32x32xf32, #tpu.memory_space<vmem>>, vector<32x32xf32>
    %cst_51 = arith.constant dense<0.000000e+00> : vector<32x128xf32>
    %107 = tpu.matmul %106, %105, %cst_51 {dimension_numbers = #tpu.dot_dimension_numbers<[1], [0], [0], [1], [0, 0, 1, 1], [], []>} : vector<32x32xf32>, vector<32x128xf32>, vector<32x128xf32> -> vector<32x128xf32>
    %c0_52 = arith.constant 0 : index
    %c0_53 = arith.constant 0 : index
    %108 = vector.load %arg19[%c0_52, %c0_53] : memref<32x128xf32, #tpu.memory_space<vmem>>, vector<32x128xf32>
    %109 = arith.addf %107, %108 : vector<32x128xf32>
    %cst_54 = arith.constant 0.000000e+00 : f32
    %110 = vector.broadcast %cst_54 : f32 to vector<32x128xf32>
    %111 = arith.maximumf %109, %110 : vector<32x128xf32>
    %c0_55 = arith.constant 0 : index
    %c0_56 = arith.constant 0 : index
    %112 = vector.load %arg12[%c0_55, %c0_56] : memref<24x32xf32, #tpu.memory_space<vmem>>, vector<24x32xf32>
    %cst_57 = arith.constant dense<0.000000e+00> : vector<24x128xf32>
    %113 = tpu.matmul %112, %111, %cst_57 {dimension_numbers = #tpu.dot_dimension_numbers<[1], [0], [0], [1], [0, 0, 1, 1], [], []>} : vector<24x32xf32>, vector<32x128xf32>, vector<24x128xf32> -> vector<24x128xf32>
    %c0_58 = arith.constant 0 : index
    %c0_59 = arith.constant 0 : index
    %114 = vector.load %arg20[%c0_58, %c0_59] : memref<24x128xf32, #tpu.memory_space<vmem>>, vector<24x128xf32>
    %115 = arith.addf %113, %114 : vector<24x128xf32>
    %116 = vector.extract_strided_slice %115 {offsets = [0, 0], sizes = [8, 128], strides = [1, 1]} : vector<24x128xf32> to vector<8x128xf32>
    %117 = vector.extract_strided_slice %115 {offsets = [8, 0], sizes = [8, 128], strides = [1, 1]} : vector<24x128xf32> to vector<8x128xf32>
    %118 = vector.extract_strided_slice %115 {offsets = [16, 0], sizes = [8, 128], strides = [1, 1]} : vector<24x128xf32> to vector<8x128xf32>
    %cst_60 = arith.constant dense<0xFF800000> : vector<128xf32>
    %119 = vector.multi_reduction <maximumf>, %118, %cst_60 [0] : vector<8x128xf32> to vector<128xf32>
    %120 = vector.shape_cast %119 : vector<128xf32> to vector<1x128xf32>
    %121 = vector.broadcast %120 : vector<1x128xf32> to vector<8x128xf32>
    %122 = arith.subf %118, %121 : vector<8x128xf32>
    %123 = vector.broadcast %120 : vector<1x128xf32> to vector<8x128xf32>
    %124 = arith.subf %118, %123 : vector<8x128xf32>
    %125 = math.exp %124 : vector<8x128xf32>
    %cst_61 = arith.constant dense<0.000000e+00> : vector<128xf32>
    %126 = vector.multi_reduction <add>, %125, %cst_61 [0] : vector<8x128xf32> to vector<128xf32>
    %127 = vector.shape_cast %126 : vector<128xf32> to vector<1x128xf32>
    %128 = math.log %127 : vector<1x128xf32>
    %129 = vector.broadcast %128 : vector<1x128xf32> to vector<8x128xf32>
    %130 = arith.subf %122, %129 : vector<8x128xf32>
    %cst_62 = arith.constant 0.000000e+00 : f32
    %131 = vector.broadcast %cst_62 : f32 to vector<8x128xf32>
    %132 = arith.subf %131, %117 : vector<8x128xf32>
    %133 = math.exp %132 : vector<8x128xf32>
    %134 = vector.broadcast %74 : vector<1x128xf32> to vector<8x128xf32>
    %135 = arith.subf %134, %116 : vector<8x128xf32>
    %136 = arith.mulf %135, %133 : vector<8x128xf32>
    %137 = arith.mulf %136, %136 : vector<8x128xf32>
    %cst_63 = arith.constant -5.000000e-01 : f32
    %138 = vector.broadcast %cst_63 : f32 to vector<8x128xf32>
    %139 = arith.mulf %138, %137 : vector<8x128xf32>
    %140 = arith.subf %139, %117 : vector<8x128xf32>
    %cst_64 = arith.constant 0.918938517 : f32
    %141 = vector.broadcast %cst_64 : f32 to vector<8x128xf32>
    %142 = arith.subf %140, %141 : vector<8x128xf32>
    %143 = arith.addf %130, %142 : vector<8x128xf32>
    %cst_65 = arith.constant dense<0xFF800000> : vector<128xf32>
    %144 = vector.multi_reduction <maximumf>, %143, %cst_65 [0] : vector<8x128xf32> to vector<128xf32>
    %145 = vector.shape_cast %144 : vector<128xf32> to vector<1x128xf32>
    %146 = vector.broadcast %145 : vector<1x128xf32> to vector<8x128xf32>
    %147 = arith.subf %143, %146 : vector<8x128xf32>
    %148 = math.exp %147 : vector<8x128xf32>
    %cst_66 = arith.constant dense<0.000000e+00> : vector<128xf32>
    %149 = vector.multi_reduction <add>, %148, %cst_66 [0] : vector<8x128xf32> to vector<128xf32>
    %150 = vector.shape_cast %149 : vector<128xf32> to vector<1x128xf32>
    %151 = math.log %150 : vector<1x128xf32>
    %152 = arith.addf %145, %151 : vector<1x128xf32>
    %153 = arith.addf %60, %152 : vector<1x128xf32>
    %c0_67 = arith.constant 0 : index
    %c0_68 = arith.constant 0 : index
    %154 = vector.load %arg15[%c0_67, %c0_68] : memref<16x128xf32, #tpu.memory_space<vmem>>, vector<16x128xf32>
    %155 = vector.broadcast %74 : vector<1x128xf32> to vector<16x128xf32>
    %156 = arith.mulf %154, %155 : vector<16x128xf32>
    %c0_69 = arith.constant 0 : index
    %c0_70 = arith.constant 0 : index
    %157 = vector.load %arg16[%c0_69, %c0_70] : memref<16x128xf32, #tpu.memory_space<vmem>>, vector<16x128xf32>
    %158 = arith.addf %156, %157 : vector<16x128xf32>
    %cst_71 = arith.constant 0.000000e+00 : f32
    %159 = vector.broadcast %cst_71 : f32 to vector<16x128xf32>
    %160 = arith.maximumf %158, %159 : vector<16x128xf32>
    %c0_72 = arith.constant 0 : index
    %c0_73 = arith.constant 0 : index
    %161 = vector.load %arg6[%c0_72, %c0_73] : memref<8x16xf32, #tpu.memory_space<vmem>>, vector<8x16xf32>
    %cst_74 = arith.constant dense<0.000000e+00> : vector<8x128xf32>
    %162 = tpu.matmul %161, %160, %cst_74 {dimension_numbers = #tpu.dot_dimension_numbers<[1], [0], [0], [1], [0, 0, 1, 1], [], []>} : vector<8x16xf32>, vector<16x128xf32>, vector<8x128xf32> -> vector<8x128xf32>
    %c0_75 = arith.constant 0 : index
    %c0_76 = arith.constant 0 : index
    %163 = vector.load %arg17[%c0_75, %c0_76] : memref<8x128xf32, #tpu.memory_space<vmem>>, vector<8x128xf32>
    %164 = arith.addf %162, %163 : vector<8x128xf32>
    %165 = math.tanh %164 : vector<8x128xf32>
    %c2_i32 = arith.constant 2 : i32
    %166 = arith.index_cast %c2_i32 : i32 to index
    %c0_77 = arith.constant 0 : index
    %167 = vector.load %arg1[%166, %c0_77] : memref<8x128xf32, #tpu.memory_space<vmem>>, vector<1x128xf32>
    %c0_78 = arith.constant 0 : index
    %c0_79 = arith.constant 0 : index
    %168 = vector.load %arg3[%c0_78, %c0_79] : memref<32x8xf32, #tpu.memory_space<vmem>>, vector<32x8xf32>
    %cst_80 = arith.constant dense<0.000000e+00> : vector<32x128xf32>
    %169 = tpu.matmul %168, %95, %cst_80 {dimension_numbers = #tpu.dot_dimension_numbers<[1], [0], [0], [1], [0, 0, 1, 1], [], []>} : vector<32x8xf32>, vector<8x128xf32>, vector<32x128xf32> -> vector<32x128xf32>
    %170 = vector.extract_strided_slice %165 {offsets = [0, 0], sizes = [1, 128], strides = [1, 1]} : vector<8x128xf32> to vector<1x128xf32>
    %171 = vector.extract_strided_slice %169 {offsets = [0, 0], sizes = [8, 128], strides = [1, 1]} : vector<32x128xf32> to vector<8x128xf32>
    %172 = vector.broadcast %170 : vector<1x128xf32> to vector<8x128xf32>
    %173 = arith.mulf %172, %171 : vector<8x128xf32>
    %174 = vector.extract_strided_slice %165 {offsets = [1, 0], sizes = [1, 128], strides = [1, 1]} : vector<8x128xf32> to vector<1x128xf32>
    %175 = vector.extract_strided_slice %169 {offsets = [8, 0], sizes = [8, 128], strides = [1, 1]} : vector<32x128xf32> to vector<8x128xf32>
    %176 = vector.broadcast %174 : vector<1x128xf32> to vector<8x128xf32>
    %177 = arith.mulf %176, %175 : vector<8x128xf32>
    %178 = arith.addf %173, %177 : vector<8x128xf32>
    %179 = vector.extract_strided_slice %165 {offsets = [2, 0], sizes = [1, 128], strides = [1, 1]} : vector<8x128xf32> to vector<1x128xf32>
    %180 = vector.extract_strided_slice %169 {offsets = [16, 0], sizes = [8, 128], strides = [1, 1]} : vector<32x128xf32> to vector<8x128xf32>
    %181 = vector.broadcast %179 : vector<1x128xf32> to vector<8x128xf32>
    %182 = arith.mulf %181, %180 : vector<8x128xf32>
    %183 = arith.addf %178, %182 : vector<8x128xf32>
    %184 = vector.extract_strided_slice %165 {offsets = [3, 0], sizes = [1, 128], strides = [1, 1]} : vector<8x128xf32> to vector<1x128xf32>
    %185 = vector.extract_strided_slice %169 {offsets = [24, 0], sizes = [8, 128], strides = [1, 1]} : vector<32x128xf32> to vector<8x128xf32>
    %186 = vector.broadcast %184 : vector<1x128xf32> to vector<8x128xf32>
    %187 = arith.mulf %186, %185 : vector<8x128xf32>
    %188 = arith.addf %183, %187 : vector<8x128xf32>
    %cst_81 = arith.constant 1.000000e+00 : f32
    %189 = arith.mulf %96, %cst_81 : f32
    %190 = vector.broadcast %189 : f32 to vector<8x128xf32>
    %191 = arith.mulf %188, %190 : vector<8x128xf32>
    %192 = math.tanh %191 : vector<8x128xf32>
    %c0_82 = arith.constant 0 : index
    %c0_83 = arith.constant 0 : index
    %193 = vector.load %arg8[%c0_82, %c0_83] : memref<32x8xf32, #tpu.memory_space<vmem>>, vector<32x8xf32>
    %cst_84 = arith.constant dense<0.000000e+00> : vector<32x128xf32>
    %194 = tpu.matmul %193, %192, %cst_84 {dimension_numbers = #tpu.dot_dimension_numbers<[1], [0], [0], [1], [0, 0, 1, 1], [], []>} : vector<32x8xf32>, vector<8x128xf32>, vector<32x128xf32> -> vector<32x128xf32>
    %c0_85 = arith.constant 0 : index
    %c0_86 = arith.constant 0 : index
    %195 = vector.load %arg18[%c0_85, %c0_86] : memref<32x128xf32, #tpu.memory_space<vmem>>, vector<32x128xf32>
    %196 = arith.addf %194, %195 : vector<32x128xf32>
    %cst_87 = arith.constant 0.000000e+00 : f32
    %197 = vector.broadcast %cst_87 : f32 to vector<32x128xf32>
    %198 = arith.maximumf %196, %197 : vector<32x128xf32>
    %c0_88 = arith.constant 0 : index
    %c0_89 = arith.constant 0 : index
    %199 = vector.load %arg10[%c0_88, %c0_89] : memref<32x32xf32, #tpu.memory_space<vmem>>, vector<32x32xf32>
    %cst_90 = arith.constant dense<0.000000e+00> : vector<32x128xf32>
    %200 = tpu.matmul %199, %198, %cst_90 {dimension_numbers = #tpu.dot_dimension_numbers<[1], [0], [0], [1], [0, 0, 1, 1], [], []>} : vector<32x32xf32>, vector<32x128xf32>, vector<32x128xf32> -> vector<32x128xf32>
    %c0_91 = arith.constant 0 : index
    %c0_92 = arith.constant 0 : index
    %201 = vector.load %arg19[%c0_91, %c0_92] : memref<32x128xf32, #tpu.memory_space<vmem>>, vector<32x128xf32>
    %202 = arith.addf %200, %201 : vector<32x128xf32>
    %cst_93 = arith.constant 0.000000e+00 : f32
    %203 = vector.broadcast %cst_93 : f32 to vector<32x128xf32>
    %204 = arith.maximumf %202, %203 : vector<32x128xf32>
    %c0_94 = arith.constant 0 : index
    %c0_95 = arith.constant 0 : index
    %205 = vector.load %arg12[%c0_94, %c0_95] : memref<24x32xf32, #tpu.memory_space<vmem>>, vector<24x32xf32>
    %cst_96 = arith.constant dense<0.000000e+00> : vector<24x128xf32>
    %206 = tpu.matmul %205, %204, %cst_96 {dimension_numbers = #tpu.dot_dimension_numbers<[1], [0], [0], [1], [0, 0, 1, 1], [], []>} : vector<24x32xf32>, vector<32x128xf32>, vector<24x128xf32> -> vector<24x128xf32>
    %c0_97 = arith.constant 0 : index
    %c0_98 = arith.constant 0 : index
    %207 = vector.load %arg20[%c0_97, %c0_98] : memref<24x128xf32, #tpu.memory_space<vmem>>, vector<24x128xf32>
    %208 = arith.addf %206, %207 : vector<24x128xf32>
    %209 = vector.extract_strided_slice %208 {offsets = [0, 0], sizes = [8, 128], strides = [1, 1]} : vector<24x128xf32> to vector<8x128xf32>
    %210 = vector.extract_strided_slice %208 {offsets = [8, 0], sizes = [8, 128], strides = [1, 1]} : vector<24x128xf32> to vector<8x128xf32>
    %211 = vector.extract_strided_slice %208 {offsets = [16, 0], sizes = [8, 128], strides = [1, 1]} : vector<24x128xf32> to vector<8x128xf32>
    %cst_99 = arith.constant dense<0xFF800000> : vector<128xf32>
    %212 = vector.multi_reduction <maximumf>, %211, %cst_99 [0] : vector<8x128xf32> to vector<128xf32>
    %213 = vector.shape_cast %212 : vector<128xf32> to vector<1x128xf32>
    %214 = vector.broadcast %213 : vector<1x128xf32> to vector<8x128xf32>
    %215 = arith.subf %211, %214 : vector<8x128xf32>
    %216 = vector.broadcast %213 : vector<1x128xf32> to vector<8x128xf32>
    %217 = arith.subf %211, %216 : vector<8x128xf32>
    %218 = math.exp %217 : vector<8x128xf32>
    %cst_100 = arith.constant dense<0.000000e+00> : vector<128xf32>
    %219 = vector.multi_reduction <add>, %218, %cst_100 [0] : vector<8x128xf32> to vector<128xf32>
    %220 = vector.shape_cast %219 : vector<128xf32> to vector<1x128xf32>
    %221 = math.log %220 : vector<1x128xf32>
    %222 = vector.broadcast %221 : vector<1x128xf32> to vector<8x128xf32>
    %223 = arith.subf %215, %222 : vector<8x128xf32>
    %cst_101 = arith.constant 0.000000e+00 : f32
    %224 = vector.broadcast %cst_101 : f32 to vector<8x128xf32>
    %225 = arith.subf %224, %210 : vector<8x128xf32>
    %226 = math.exp %225 : vector<8x128xf32>
    %227 = vector.broadcast %167 : vector<1x128xf32> to vector<8x128xf32>
    %228 = arith.subf %227, %209 : vector<8x128xf32>
    %229 = arith.mulf %228, %226 : vector<8x128xf32>
    %230 = arith.mulf %229, %229 : vector<8x128xf32>
    %cst_102 = arith.constant -5.000000e-01 : f32
    %231 = vector.broadcast %cst_102 : f32 to vector<8x128xf32>
    %232 = arith.mulf %231, %230 : vector<8x128xf32>
    %233 = arith.subf %232, %210 : vector<8x128xf32>
    %cst_103 = arith.constant 0.918938517 : f32
    %234 = vector.broadcast %cst_103 : f32 to vector<8x128xf32>
    %235 = arith.subf %233, %234 : vector<8x128xf32>
    %236 = arith.addf %223, %235 : vector<8x128xf32>
    %cst_104 = arith.constant dense<0xFF800000> : vector<128xf32>
    %237 = vector.multi_reduction <maximumf>, %236, %cst_104 [0] : vector<8x128xf32> to vector<128xf32>
    %238 = vector.shape_cast %237 : vector<128xf32> to vector<1x128xf32>
    %239 = vector.broadcast %238 : vector<1x128xf32> to vector<8x128xf32>
    %240 = arith.subf %236, %239 : vector<8x128xf32>
    %241 = math.exp %240 : vector<8x128xf32>
    %cst_105 = arith.constant dense<0.000000e+00> : vector<128xf32>
    %242 = vector.multi_reduction <add>, %241, %cst_105 [0] : vector<8x128xf32> to vector<128xf32>
    %243 = vector.shape_cast %242 : vector<128xf32> to vector<1x128xf32>
    %244 = math.log %243 : vector<1x128xf32>
    %245 = arith.addf %238, %244 : vector<1x128xf32>
    %246 = arith.addf %153, %245 : vector<1x128xf32>
    %c0_106 = arith.constant 0 : index
    %c0_107 = arith.constant 0 : index
    %247 = vector.load %arg15[%c0_106, %c0_107] : memref<16x128xf32, #tpu.memory_space<vmem>>, vector<16x128xf32>
    %248 = vector.broadcast %167 : vector<1x128xf32> to vector<16x128xf32>
    %249 = arith.mulf %247, %248 : vector<16x128xf32>
    %c0_108 = arith.constant 0 : index
    %c0_109 = arith.constant 0 : index
    %250 = vector.load %arg16[%c0_108, %c0_109] : memref<16x128xf32, #tpu.memory_space<vmem>>, vector<16x128xf32>
    %251 = arith.addf %249, %250 : vector<16x128xf32>
    %cst_110 = arith.constant 0.000000e+00 : f32
    %252 = vector.broadcast %cst_110 : f32 to vector<16x128xf32>
    %253 = arith.maximumf %251, %252 : vector<16x128xf32>
    %c0_111 = arith.constant 0 : index
    %c0_112 = arith.constant 0 : index
    %254 = vector.load %arg6[%c0_111, %c0_112] : memref<8x16xf32, #tpu.memory_space<vmem>>, vector<8x16xf32>
    %cst_113 = arith.constant dense<0.000000e+00> : vector<8x128xf32>
    %255 = tpu.matmul %254, %253, %cst_113 {dimension_numbers = #tpu.dot_dimension_numbers<[1], [0], [0], [1], [0, 0, 1, 1], [], []>} : vector<8x16xf32>, vector<16x128xf32>, vector<8x128xf32> -> vector<8x128xf32>
    %c0_114 = arith.constant 0 : index
    %c0_115 = arith.constant 0 : index
    %256 = vector.load %arg17[%c0_114, %c0_115] : memref<8x128xf32, #tpu.memory_space<vmem>>, vector<8x128xf32>
    %257 = arith.addf %255, %256 : vector<8x128xf32>
    %258 = math.tanh %257 : vector<8x128xf32>
    %c3_i32 = arith.constant 3 : i32
    %259 = arith.index_cast %c3_i32 : i32 to index
    %c0_116 = arith.constant 0 : index
    %260 = vector.load %arg1[%259, %c0_116] : memref<8x128xf32, #tpu.memory_space<vmem>>, vector<1x128xf32>
    %c0_117 = arith.constant 0 : index
    %c0_118 = arith.constant 0 : index
    %261 = vector.load %arg3[%c0_117, %c0_118] : memref<32x8xf32, #tpu.memory_space<vmem>>, vector<32x8xf32>
    %cst_119 = arith.constant dense<0.000000e+00> : vector<32x128xf32>
    %262 = tpu.matmul %261, %188, %cst_119 {dimension_numbers = #tpu.dot_dimension_numbers<[1], [0], [0], [1], [0, 0, 1, 1], [], []>} : vector<32x8xf32>, vector<8x128xf32>, vector<32x128xf32> -> vector<32x128xf32>
    %263 = vector.extract_strided_slice %258 {offsets = [0, 0], sizes = [1, 128], strides = [1, 1]} : vector<8x128xf32> to vector<1x128xf32>
    %264 = vector.extract_strided_slice %262 {offsets = [0, 0], sizes = [8, 128], strides = [1, 1]} : vector<32x128xf32> to vector<8x128xf32>
    %265 = vector.broadcast %263 : vector<1x128xf32> to vector<8x128xf32>
    %266 = arith.mulf %265, %264 : vector<8x128xf32>
    %267 = vector.extract_strided_slice %258 {offsets = [1, 0], sizes = [1, 128], strides = [1, 1]} : vector<8x128xf32> to vector<1x128xf32>
    %268 = vector.extract_strided_slice %262 {offsets = [8, 0], sizes = [8, 128], strides = [1, 1]} : vector<32x128xf32> to vector<8x128xf32>
    %269 = vector.broadcast %267 : vector<1x128xf32> to vector<8x128xf32>
    %270 = arith.mulf %269, %268 : vector<8x128xf32>
    %271 = arith.addf %266, %270 : vector<8x128xf32>
    %272 = vector.extract_strided_slice %258 {offsets = [2, 0], sizes = [1, 128], strides = [1, 1]} : vector<8x128xf32> to vector<1x128xf32>
    %273 = vector.extract_strided_slice %262 {offsets = [16, 0], sizes = [8, 128], strides = [1, 1]} : vector<32x128xf32> to vector<8x128xf32>
    %274 = vector.broadcast %272 : vector<1x128xf32> to vector<8x128xf32>
    %275 = arith.mulf %274, %273 : vector<8x128xf32>
    %276 = arith.addf %271, %275 : vector<8x128xf32>
    %277 = vector.extract_strided_slice %258 {offsets = [3, 0], sizes = [1, 128], strides = [1, 1]} : vector<8x128xf32> to vector<1x128xf32>
    %278 = vector.extract_strided_slice %262 {offsets = [24, 0], sizes = [8, 128], strides = [1, 1]} : vector<32x128xf32> to vector<8x128xf32>
    %279 = vector.broadcast %277 : vector<1x128xf32> to vector<8x128xf32>
    %280 = arith.mulf %279, %278 : vector<8x128xf32>
    %281 = arith.addf %276, %280 : vector<8x128xf32>
    %cst_120 = arith.constant 1.000000e+00 : f32
    %282 = arith.mulf %189, %cst_120 : f32
    %283 = vector.broadcast %282 : f32 to vector<8x128xf32>
    %284 = arith.mulf %281, %283 : vector<8x128xf32>
    %285 = math.tanh %284 : vector<8x128xf32>
    %c0_121 = arith.constant 0 : index
    %c0_122 = arith.constant 0 : index
    %286 = vector.load %arg8[%c0_121, %c0_122] : memref<32x8xf32, #tpu.memory_space<vmem>>, vector<32x8xf32>
    %cst_123 = arith.constant dense<0.000000e+00> : vector<32x128xf32>
    %287 = tpu.matmul %286, %285, %cst_123 {dimension_numbers = #tpu.dot_dimension_numbers<[1], [0], [0], [1], [0, 0, 1, 1], [], []>} : vector<32x8xf32>, vector<8x128xf32>, vector<32x128xf32> -> vector<32x128xf32>
    %c0_124 = arith.constant 0 : index
    %c0_125 = arith.constant 0 : index
    %288 = vector.load %arg18[%c0_124, %c0_125] : memref<32x128xf32, #tpu.memory_space<vmem>>, vector<32x128xf32>
    %289 = arith.addf %287, %288 : vector<32x128xf32>
    %cst_126 = arith.constant 0.000000e+00 : f32
    %290 = vector.broadcast %cst_126 : f32 to vector<32x128xf32>
    %291 = arith.maximumf %289, %290 : vector<32x128xf32>
    %c0_127 = arith.constant 0 : index
    %c0_128 = arith.constant 0 : index
    %292 = vector.load %arg10[%c0_127, %c0_128] : memref<32x32xf32, #tpu.memory_space<vmem>>, vector<32x32xf32>
    %cst_129 = arith.constant dense<0.000000e+00> : vector<32x128xf32>
    %293 = tpu.matmul %292, %291, %cst_129 {dimension_numbers = #tpu.dot_dimension_numbers<[1], [0], [0], [1], [0, 0, 1, 1], [], []>} : vector<32x32xf32>, vector<32x128xf32>, vector<32x128xf32> -> vector<32x128xf32>
    %c0_130 = arith.constant 0 : index
    %c0_131 = arith.constant 0 : index
    %294 = vector.load %arg19[%c0_130, %c0_131] : memref<32x128xf32, #tpu.memory_space<vmem>>, vector<32x128xf32>
    %295 = arith.addf %293, %294 : vector<32x128xf32>
    %cst_132 = arith.constant 0.000000e+00 : f32
    %296 = vector.broadcast %cst_132 : f32 to vector<32x128xf32>
    %297 = arith.maximumf %295, %296 : vector<32x128xf32>
    %c0_133 = arith.constant 0 : index
    %c0_134 = arith.constant 0 : index
    %298 = vector.load %arg12[%c0_133, %c0_134] : memref<24x32xf32, #tpu.memory_space<vmem>>, vector<24x32xf32>
    %cst_135 = arith.constant dense<0.000000e+00> : vector<24x128xf32>
    %299 = tpu.matmul %298, %297, %cst_135 {dimension_numbers = #tpu.dot_dimension_numbers<[1], [0], [0], [1], [0, 0, 1, 1], [], []>} : vector<24x32xf32>, vector<32x128xf32>, vector<24x128xf32> -> vector<24x128xf32>
    %c0_136 = arith.constant 0 : index
    %c0_137 = arith.constant 0 : index
    %300 = vector.load %arg20[%c0_136, %c0_137] : memref<24x128xf32, #tpu.memory_space<vmem>>, vector<24x128xf32>
    %301 = arith.addf %299, %300 : vector<24x128xf32>
    %302 = vector.extract_strided_slice %301 {offsets = [0, 0], sizes = [8, 128], strides = [1, 1]} : vector<24x128xf32> to vector<8x128xf32>
    %303 = vector.extract_strided_slice %301 {offsets = [8, 0], sizes = [8, 128], strides = [1, 1]} : vector<24x128xf32> to vector<8x128xf32>
    %304 = vector.extract_strided_slice %301 {offsets = [16, 0], sizes = [8, 128], strides = [1, 1]} : vector<24x128xf32> to vector<8x128xf32>
    %cst_138 = arith.constant dense<0xFF800000> : vector<128xf32>
    %305 = vector.multi_reduction <maximumf>, %304, %cst_138 [0] : vector<8x128xf32> to vector<128xf32>
    %306 = vector.shape_cast %305 : vector<128xf32> to vector<1x128xf32>
    %307 = vector.broadcast %306 : vector<1x128xf32> to vector<8x128xf32>
    %308 = arith.subf %304, %307 : vector<8x128xf32>
    %309 = vector.broadcast %306 : vector<1x128xf32> to vector<8x128xf32>
    %310 = arith.subf %304, %309 : vector<8x128xf32>
    %311 = math.exp %310 : vector<8x128xf32>
    %cst_139 = arith.constant dense<0.000000e+00> : vector<128xf32>
    %312 = vector.multi_reduction <add>, %311, %cst_139 [0] : vector<8x128xf32> to vector<128xf32>
    %313 = vector.shape_cast %312 : vector<128xf32> to vector<1x128xf32>
    %314 = math.log %313 : vector<1x128xf32>
    %315 = vector.broadcast %314 : vector<1x128xf32> to vector<8x128xf32>
    %316 = arith.subf %308, %315 : vector<8x128xf32>
    %cst_140 = arith.constant 0.000000e+00 : f32
    %317 = vector.broadcast %cst_140 : f32 to vector<8x128xf32>
    %318 = arith.subf %317, %303 : vector<8x128xf32>
    %319 = math.exp %318 : vector<8x128xf32>
    %320 = vector.broadcast %260 : vector<1x128xf32> to vector<8x128xf32>
    %321 = arith.subf %320, %302 : vector<8x128xf32>
    %322 = arith.mulf %321, %319 : vector<8x128xf32>
    %323 = arith.mulf %322, %322 : vector<8x128xf32>
    %cst_141 = arith.constant -5.000000e-01 : f32
    %324 = vector.broadcast %cst_141 : f32 to vector<8x128xf32>
    %325 = arith.mulf %324, %323 : vector<8x128xf32>
    %326 = arith.subf %325, %303 : vector<8x128xf32>
    %cst_142 = arith.constant 0.918938517 : f32
    %327 = vector.broadcast %cst_142 : f32 to vector<8x128xf32>
    %328 = arith.subf %326, %327 : vector<8x128xf32>
    %329 = arith.addf %316, %328 : vector<8x128xf32>
    %cst_143 = arith.constant dense<0xFF800000> : vector<128xf32>
    %330 = vector.multi_reduction <maximumf>, %329, %cst_143 [0] : vector<8x128xf32> to vector<128xf32>
    %331 = vector.shape_cast %330 : vector<128xf32> to vector<1x128xf32>
    %332 = vector.broadcast %331 : vector<1x128xf32> to vector<8x128xf32>
    %333 = arith.subf %329, %332 : vector<8x128xf32>
    %334 = math.exp %333 : vector<8x128xf32>
    %cst_144 = arith.constant dense<0.000000e+00> : vector<128xf32>
    %335 = vector.multi_reduction <add>, %334, %cst_144 [0] : vector<8x128xf32> to vector<128xf32>
    %336 = vector.shape_cast %335 : vector<128xf32> to vector<1x128xf32>
    %337 = math.log %336 : vector<1x128xf32>
    %338 = arith.addf %331, %337 : vector<1x128xf32>
    %339 = arith.addf %246, %338 : vector<1x128xf32>
    %c0_145 = arith.constant 0 : index
    %c0_146 = arith.constant 0 : index
    %340 = vector.load %arg15[%c0_145, %c0_146] : memref<16x128xf32, #tpu.memory_space<vmem>>, vector<16x128xf32>
    %341 = vector.broadcast %260 : vector<1x128xf32> to vector<16x128xf32>
    %342 = arith.mulf %340, %341 : vector<16x128xf32>
    %c0_147 = arith.constant 0 : index
    %c0_148 = arith.constant 0 : index
    %343 = vector.load %arg16[%c0_147, %c0_148] : memref<16x128xf32, #tpu.memory_space<vmem>>, vector<16x128xf32>
    %344 = arith.addf %342, %343 : vector<16x128xf32>
    %cst_149 = arith.constant 0.000000e+00 : f32
    %345 = vector.broadcast %cst_149 : f32 to vector<16x128xf32>
    %346 = arith.maximumf %344, %345 : vector<16x128xf32>
    %c0_150 = arith.constant 0 : index
    %c0_151 = arith.constant 0 : index
    %347 = vector.load %arg6[%c0_150, %c0_151] : memref<8x16xf32, #tpu.memory_space<vmem>>, vector<8x16xf32>
    %cst_152 = arith.constant dense<0.000000e+00> : vector<8x128xf32>
    %348 = tpu.matmul %347, %346, %cst_152 {dimension_numbers = #tpu.dot_dimension_numbers<[1], [0], [0], [1], [0, 0, 1, 1], [], []>} : vector<8x16xf32>, vector<16x128xf32>, vector<8x128xf32> -> vector<8x128xf32>
    %c0_153 = arith.constant 0 : index
    %c0_154 = arith.constant 0 : index
    %349 = vector.load %arg17[%c0_153, %c0_154] : memref<8x128xf32, #tpu.memory_space<vmem>>, vector<8x128xf32>
    %350 = arith.addf %348, %349 : vector<8x128xf32>
    %351 = math.tanh %350 : vector<8x128xf32>
    %c4_i32 = arith.constant 4 : i32
    %352 = arith.index_cast %c4_i32 : i32 to index
    %c0_155 = arith.constant 0 : index
    %353 = vector.load %arg1[%352, %c0_155] : memref<8x128xf32, #tpu.memory_space<vmem>>, vector<1x128xf32>
    %c0_156 = arith.constant 0 : index
    %c0_157 = arith.constant 0 : index
    %354 = vector.load %arg3[%c0_156, %c0_157] : memref<32x8xf32, #tpu.memory_space<vmem>>, vector<32x8xf32>
    %cst_158 = arith.constant dense<0.000000e+00> : vector<32x128xf32>
    %355 = tpu.matmul %354, %281, %cst_158 {dimension_numbers = #tpu.dot_dimension_numbers<[1], [0], [0], [1], [0, 0, 1, 1], [], []>} : vector<32x8xf32>, vector<8x128xf32>, vector<32x128xf32> -> vector<32x128xf32>
    %356 = vector.extract_strided_slice %351 {offsets = [0, 0], sizes = [1, 128], strides = [1, 1]} : vector<8x128xf32> to vector<1x128xf32>
    %357 = vector.extract_strided_slice %355 {offsets = [0, 0], sizes = [8, 128], strides = [1, 1]} : vector<32x128xf32> to vector<8x128xf32>
    %358 = vector.broadcast %356 : vector<1x128xf32> to vector<8x128xf32>
    %359 = arith.mulf %358, %357 : vector<8x128xf32>
    %360 = vector.extract_strided_slice %351 {offsets = [1, 0], sizes = [1, 128], strides = [1, 1]} : vector<8x128xf32> to vector<1x128xf32>
    %361 = vector.extract_strided_slice %355 {offsets = [8, 0], sizes = [8, 128], strides = [1, 1]} : vector<32x128xf32> to vector<8x128xf32>
    %362 = vector.broadcast %360 : vector<1x128xf32> to vector<8x128xf32>
    %363 = arith.mulf %362, %361 : vector<8x128xf32>
    %364 = arith.addf %359, %363 : vector<8x128xf32>
    %365 = vector.extract_strided_slice %351 {offsets = [2, 0], sizes = [1, 128], strides = [1, 1]} : vector<8x128xf32> to vector<1x128xf32>
    %366 = vector.extract_strided_slice %355 {offsets = [16, 0], sizes = [8, 128], strides = [1, 1]} : vector<32x128xf32> to vector<8x128xf32>
    %367 = vector.broadcast %365 : vector<1x128xf32> to vector<8x128xf32>
    %368 = arith.mulf %367, %366 : vector<8x128xf32>
    %369 = arith.addf %364, %368 : vector<8x128xf32>
    %370 = vector.extract_strided_slice %351 {offsets = [3, 0], sizes = [1, 128], strides = [1, 1]} : vector<8x128xf32> to vector<1x128xf32>
    %371 = vector.extract_strided_slice %355 {offsets = [24, 0], sizes = [8, 128], strides = [1, 1]} : vector<32x128xf32> to vector<8x128xf32>
    %372 = vector.broadcast %370 : vector<1x128xf32> to vector<8x128xf32>
    %373 = arith.mulf %372, %371 : vector<8x128xf32>
    %374 = arith.addf %369, %373 : vector<8x128xf32>
    %cst_159 = arith.constant 1.000000e+00 : f32
    %375 = arith.mulf %282, %cst_159 : f32
    %376 = vector.broadcast %375 : f32 to vector<8x128xf32>
    %377 = arith.mulf %374, %376 : vector<8x128xf32>
    %378 = math.tanh %377 : vector<8x128xf32>
    %c0_160 = arith.constant 0 : index
    %c0_161 = arith.constant 0 : index
    %379 = vector.load %arg8[%c0_160, %c0_161] : memref<32x8xf32, #tpu.memory_space<vmem>>, vector<32x8xf32>
    %cst_162 = arith.constant dense<0.000000e+00> : vector<32x128xf32>
    %380 = tpu.matmul %379, %378, %cst_162 {dimension_numbers = #tpu.dot_dimension_numbers<[1], [0], [0], [1], [0, 0, 1, 1], [], []>} : vector<32x8xf32>, vector<8x128xf32>, vector<32x128xf32> -> vector<32x128xf32>
    %c0_163 = arith.constant 0 : index
    %c0_164 = arith.constant 0 : index
    %381 = vector.load %arg18[%c0_163, %c0_164] : memref<32x128xf32, #tpu.memory_space<vmem>>, vector<32x128xf32>
    %382 = arith.addf %380, %381 : vector<32x128xf32>
    %cst_165 = arith.constant 0.000000e+00 : f32
    %383 = vector.broadcast %cst_165 : f32 to vector<32x128xf32>
    %384 = arith.maximumf %382, %383 : vector<32x128xf32>
    %c0_166 = arith.constant 0 : index
    %c0_167 = arith.constant 0 : index
    %385 = vector.load %arg10[%c0_166, %c0_167] : memref<32x32xf32, #tpu.memory_space<vmem>>, vector<32x32xf32>
    %cst_168 = arith.constant dense<0.000000e+00> : vector<32x128xf32>
    %386 = tpu.matmul %385, %384, %cst_168 {dimension_numbers = #tpu.dot_dimension_numbers<[1], [0], [0], [1], [0, 0, 1, 1], [], []>} : vector<32x32xf32>, vector<32x128xf32>, vector<32x128xf32> -> vector<32x128xf32>
    %c0_169 = arith.constant 0 : index
    %c0_170 = arith.constant 0 : index
    %387 = vector.load %arg19[%c0_169, %c0_170] : memref<32x128xf32, #tpu.memory_space<vmem>>, vector<32x128xf32>
    %388 = arith.addf %386, %387 : vector<32x128xf32>
    %cst_171 = arith.constant 0.000000e+00 : f32
    %389 = vector.broadcast %cst_171 : f32 to vector<32x128xf32>
    %390 = arith.maximumf %388, %389 : vector<32x128xf32>
    %c0_172 = arith.constant 0 : index
    %c0_173 = arith.constant 0 : index
    %391 = vector.load %arg12[%c0_172, %c0_173] : memref<24x32xf32, #tpu.memory_space<vmem>>, vector<24x32xf32>
    %cst_174 = arith.constant dense<0.000000e+00> : vector<24x128xf32>
    %392 = tpu.matmul %391, %390, %cst_174 {dimension_numbers = #tpu.dot_dimension_numbers<[1], [0], [0], [1], [0, 0, 1, 1], [], []>} : vector<24x32xf32>, vector<32x128xf32>, vector<24x128xf32> -> vector<24x128xf32>
    %c0_175 = arith.constant 0 : index
    %c0_176 = arith.constant 0 : index
    %393 = vector.load %arg20[%c0_175, %c0_176] : memref<24x128xf32, #tpu.memory_space<vmem>>, vector<24x128xf32>
    %394 = arith.addf %392, %393 : vector<24x128xf32>
    %395 = vector.extract_strided_slice %394 {offsets = [0, 0], sizes = [8, 128], strides = [1, 1]} : vector<24x128xf32> to vector<8x128xf32>
    %396 = vector.extract_strided_slice %394 {offsets = [8, 0], sizes = [8, 128], strides = [1, 1]} : vector<24x128xf32> to vector<8x128xf32>
    %397 = vector.extract_strided_slice %394 {offsets = [16, 0], sizes = [8, 128], strides = [1, 1]} : vector<24x128xf32> to vector<8x128xf32>
    %cst_177 = arith.constant dense<0xFF800000> : vector<128xf32>
    %398 = vector.multi_reduction <maximumf>, %397, %cst_177 [0] : vector<8x128xf32> to vector<128xf32>
    %399 = vector.shape_cast %398 : vector<128xf32> to vector<1x128xf32>
    %400 = vector.broadcast %399 : vector<1x128xf32> to vector<8x128xf32>
    %401 = arith.subf %397, %400 : vector<8x128xf32>
    %402 = vector.broadcast %399 : vector<1x128xf32> to vector<8x128xf32>
    %403 = arith.subf %397, %402 : vector<8x128xf32>
    %404 = math.exp %403 : vector<8x128xf32>
    %cst_178 = arith.constant dense<0.000000e+00> : vector<128xf32>
    %405 = vector.multi_reduction <add>, %404, %cst_178 [0] : vector<8x128xf32> to vector<128xf32>
    %406 = vector.shape_cast %405 : vector<128xf32> to vector<1x128xf32>
    %407 = math.log %406 : vector<1x128xf32>
    %408 = vector.broadcast %407 : vector<1x128xf32> to vector<8x128xf32>
    %409 = arith.subf %401, %408 : vector<8x128xf32>
    %cst_179 = arith.constant 0.000000e+00 : f32
    %410 = vector.broadcast %cst_179 : f32 to vector<8x128xf32>
    %411 = arith.subf %410, %396 : vector<8x128xf32>
    %412 = math.exp %411 : vector<8x128xf32>
    %413 = vector.broadcast %353 : vector<1x128xf32> to vector<8x128xf32>
    %414 = arith.subf %413, %395 : vector<8x128xf32>
    %415 = arith.mulf %414, %412 : vector<8x128xf32>
    %416 = arith.mulf %415, %415 : vector<8x128xf32>
    %cst_180 = arith.constant -5.000000e-01 : f32
    %417 = vector.broadcast %cst_180 : f32 to vector<8x128xf32>
    %418 = arith.mulf %417, %416 : vector<8x128xf32>
    %419 = arith.subf %418, %396 : vector<8x128xf32>
    %cst_181 = arith.constant 0.918938517 : f32
    %420 = vector.broadcast %cst_181 : f32 to vector<8x128xf32>
    %421 = arith.subf %419, %420 : vector<8x128xf32>
    %422 = arith.addf %409, %421 : vector<8x128xf32>
    %cst_182 = arith.constant dense<0xFF800000> : vector<128xf32>
    %423 = vector.multi_reduction <maximumf>, %422, %cst_182 [0] : vector<8x128xf32> to vector<128xf32>
    %424 = vector.shape_cast %423 : vector<128xf32> to vector<1x128xf32>
    %425 = vector.broadcast %424 : vector<1x128xf32> to vector<8x128xf32>
    %426 = arith.subf %422, %425 : vector<8x128xf32>
    %427 = math.exp %426 : vector<8x128xf32>
    %cst_183 = arith.constant dense<0.000000e+00> : vector<128xf32>
    %428 = vector.multi_reduction <add>, %427, %cst_183 [0] : vector<8x128xf32> to vector<128xf32>
    %429 = vector.shape_cast %428 : vector<128xf32> to vector<1x128xf32>
    %430 = math.log %429 : vector<1x128xf32>
    %431 = arith.addf %424, %430 : vector<1x128xf32>
    %432 = arith.addf %339, %431 : vector<1x128xf32>
    %c0_184 = arith.constant 0 : index
    %c0_185 = arith.constant 0 : index
    %433 = vector.load %arg15[%c0_184, %c0_185] : memref<16x128xf32, #tpu.memory_space<vmem>>, vector<16x128xf32>
    %434 = vector.broadcast %353 : vector<1x128xf32> to vector<16x128xf32>
    %435 = arith.mulf %433, %434 : vector<16x128xf32>
    %c0_186 = arith.constant 0 : index
    %c0_187 = arith.constant 0 : index
    %436 = vector.load %arg16[%c0_186, %c0_187] : memref<16x128xf32, #tpu.memory_space<vmem>>, vector<16x128xf32>
    %437 = arith.addf %435, %436 : vector<16x128xf32>
    %cst_188 = arith.constant 0.000000e+00 : f32
    %438 = vector.broadcast %cst_188 : f32 to vector<16x128xf32>
    %439 = arith.maximumf %437, %438 : vector<16x128xf32>
    %c0_189 = arith.constant 0 : index
    %c0_190 = arith.constant 0 : index
    %440 = vector.load %arg6[%c0_189, %c0_190] : memref<8x16xf32, #tpu.memory_space<vmem>>, vector<8x16xf32>
    %cst_191 = arith.constant dense<0.000000e+00> : vector<8x128xf32>
    %441 = tpu.matmul %440, %439, %cst_191 {dimension_numbers = #tpu.dot_dimension_numbers<[1], [0], [0], [1], [0, 0, 1, 1], [], []>} : vector<8x16xf32>, vector<16x128xf32>, vector<8x128xf32> -> vector<8x128xf32>
    %c0_192 = arith.constant 0 : index
    %c0_193 = arith.constant 0 : index
    %442 = vector.load %arg17[%c0_192, %c0_193] : memref<8x128xf32, #tpu.memory_space<vmem>>, vector<8x128xf32>
    %443 = arith.addf %441, %442 : vector<8x128xf32>
    %444 = math.tanh %443 : vector<8x128xf32>
    %c5_i32 = arith.constant 5 : i32
    %445 = arith.index_cast %c5_i32 : i32 to index
    %c0_194 = arith.constant 0 : index
    %446 = vector.load %arg1[%445, %c0_194] : memref<8x128xf32, #tpu.memory_space<vmem>>, vector<1x128xf32>
    %c0_195 = arith.constant 0 : index
    %c0_196 = arith.constant 0 : index
    %447 = vector.load %arg3[%c0_195, %c0_196] : memref<32x8xf32, #tpu.memory_space<vmem>>, vector<32x8xf32>
    %cst_197 = arith.constant dense<0.000000e+00> : vector<32x128xf32>
    %448 = tpu.matmul %447, %374, %cst_197 {dimension_numbers = #tpu.dot_dimension_numbers<[1], [0], [0], [1], [0, 0, 1, 1], [], []>} : vector<32x8xf32>, vector<8x128xf32>, vector<32x128xf32> -> vector<32x128xf32>
    %449 = vector.extract_strided_slice %444 {offsets = [0, 0], sizes = [1, 128], strides = [1, 1]} : vector<8x128xf32> to vector<1x128xf32>
    %450 = vector.extract_strided_slice %448 {offsets = [0, 0], sizes = [8, 128], strides = [1, 1]} : vector<32x128xf32> to vector<8x128xf32>
    %451 = vector.broadcast %449 : vector<1x128xf32> to vector<8x128xf32>
    %452 = arith.mulf %451, %450 : vector<8x128xf32>
    %453 = vector.extract_strided_slice %444 {offsets = [1, 0], sizes = [1, 128], strides = [1, 1]} : vector<8x128xf32> to vector<1x128xf32>
    %454 = vector.extract_strided_slice %448 {offsets = [8, 0], sizes = [8, 128], strides = [1, 1]} : vector<32x128xf32> to vector<8x128xf32>
    %455 = vector.broadcast %453 : vector<1x128xf32> to vector<8x128xf32>
    %456 = arith.mulf %455, %454 : vector<8x128xf32>
    %457 = arith.addf %452, %456 : vector<8x128xf32>
    %458 = vector.extract_strided_slice %444 {offsets = [2, 0], sizes = [1, 128], strides = [1, 1]} : vector<8x128xf32> to vector<1x128xf32>
    %459 = vector.extract_strided_slice %448 {offsets = [16, 0], sizes = [8, 128], strides = [1, 1]} : vector<32x128xf32> to vector<8x128xf32>
    %460 = vector.broadcast %458 : vector<1x128xf32> to vector<8x128xf32>
    %461 = arith.mulf %460, %459 : vector<8x128xf32>
    %462 = arith.addf %457, %461 : vector<8x128xf32>
    %463 = vector.extract_strided_slice %444 {offsets = [3, 0], sizes = [1, 128], strides = [1, 1]} : vector<8x128xf32> to vector<1x128xf32>
    %464 = vector.extract_strided_slice %448 {offsets = [24, 0], sizes = [8, 128], strides = [1, 1]} : vector<32x128xf32> to vector<8x128xf32>
    %465 = vector.broadcast %463 : vector<1x128xf32> to vector<8x128xf32>
    %466 = arith.mulf %465, %464 : vector<8x128xf32>
    %467 = arith.addf %462, %466 : vector<8x128xf32>
    %cst_198 = arith.constant 1.000000e+00 : f32
    %468 = arith.mulf %375, %cst_198 : f32
    %469 = vector.broadcast %468 : f32 to vector<8x128xf32>
    %470 = arith.mulf %467, %469 : vector<8x128xf32>
    %471 = math.tanh %470 : vector<8x128xf32>
    %c0_199 = arith.constant 0 : index
    %c0_200 = arith.constant 0 : index
    %472 = vector.load %arg8[%c0_199, %c0_200] : memref<32x8xf32, #tpu.memory_space<vmem>>, vector<32x8xf32>
    %cst_201 = arith.constant dense<0.000000e+00> : vector<32x128xf32>
    %473 = tpu.matmul %472, %471, %cst_201 {dimension_numbers = #tpu.dot_dimension_numbers<[1], [0], [0], [1], [0, 0, 1, 1], [], []>} : vector<32x8xf32>, vector<8x128xf32>, vector<32x128xf32> -> vector<32x128xf32>
    %c0_202 = arith.constant 0 : index
    %c0_203 = arith.constant 0 : index
    %474 = vector.load %arg18[%c0_202, %c0_203] : memref<32x128xf32, #tpu.memory_space<vmem>>, vector<32x128xf32>
    %475 = arith.addf %473, %474 : vector<32x128xf32>
    %cst_204 = arith.constant 0.000000e+00 : f32
    %476 = vector.broadcast %cst_204 : f32 to vector<32x128xf32>
    %477 = arith.maximumf %475, %476 : vector<32x128xf32>
    %c0_205 = arith.constant 0 : index
    %c0_206 = arith.constant 0 : index
    %478 = vector.load %arg10[%c0_205, %c0_206] : memref<32x32xf32, #tpu.memory_space<vmem>>, vector<32x32xf32>
    %cst_207 = arith.constant dense<0.000000e+00> : vector<32x128xf32>
    %479 = tpu.matmul %478, %477, %cst_207 {dimension_numbers = #tpu.dot_dimension_numbers<[1], [0], [0], [1], [0, 0, 1, 1], [], []>} : vector<32x32xf32>, vector<32x128xf32>, vector<32x128xf32> -> vector<32x128xf32>
    %c0_208 = arith.constant 0 : index
    %c0_209 = arith.constant 0 : index
    %480 = vector.load %arg19[%c0_208, %c0_209] : memref<32x128xf32, #tpu.memory_space<vmem>>, vector<32x128xf32>
    %481 = arith.addf %479, %480 : vector<32x128xf32>
    %cst_210 = arith.constant 0.000000e+00 : f32
    %482 = vector.broadcast %cst_210 : f32 to vector<32x128xf32>
    %483 = arith.maximumf %481, %482 : vector<32x128xf32>
    %c0_211 = arith.constant 0 : index
    %c0_212 = arith.constant 0 : index
    %484 = vector.load %arg12[%c0_211, %c0_212] : memref<24x32xf32, #tpu.memory_space<vmem>>, vector<24x32xf32>
    %cst_213 = arith.constant dense<0.000000e+00> : vector<24x128xf32>
    %485 = tpu.matmul %484, %483, %cst_213 {dimension_numbers = #tpu.dot_dimension_numbers<[1], [0], [0], [1], [0, 0, 1, 1], [], []>} : vector<24x32xf32>, vector<32x128xf32>, vector<24x128xf32> -> vector<24x128xf32>
    %c0_214 = arith.constant 0 : index
    %c0_215 = arith.constant 0 : index
    %486 = vector.load %arg20[%c0_214, %c0_215] : memref<24x128xf32, #tpu.memory_space<vmem>>, vector<24x128xf32>
    %487 = arith.addf %485, %486 : vector<24x128xf32>
    %488 = vector.extract_strided_slice %487 {offsets = [0, 0], sizes = [8, 128], strides = [1, 1]} : vector<24x128xf32> to vector<8x128xf32>
    %489 = vector.extract_strided_slice %487 {offsets = [8, 0], sizes = [8, 128], strides = [1, 1]} : vector<24x128xf32> to vector<8x128xf32>
    %490 = vector.extract_strided_slice %487 {offsets = [16, 0], sizes = [8, 128], strides = [1, 1]} : vector<24x128xf32> to vector<8x128xf32>
    %cst_216 = arith.constant dense<0xFF800000> : vector<128xf32>
    %491 = vector.multi_reduction <maximumf>, %490, %cst_216 [0] : vector<8x128xf32> to vector<128xf32>
    %492 = vector.shape_cast %491 : vector<128xf32> to vector<1x128xf32>
    %493 = vector.broadcast %492 : vector<1x128xf32> to vector<8x128xf32>
    %494 = arith.subf %490, %493 : vector<8x128xf32>
    %495 = vector.broadcast %492 : vector<1x128xf32> to vector<8x128xf32>
    %496 = arith.subf %490, %495 : vector<8x128xf32>
    %497 = math.exp %496 : vector<8x128xf32>
    %cst_217 = arith.constant dense<0.000000e+00> : vector<128xf32>
    %498 = vector.multi_reduction <add>, %497, %cst_217 [0] : vector<8x128xf32> to vector<128xf32>
    %499 = vector.shape_cast %498 : vector<128xf32> to vector<1x128xf32>
    %500 = math.log %499 : vector<1x128xf32>
    %501 = vector.broadcast %500 : vector<1x128xf32> to vector<8x128xf32>
    %502 = arith.subf %494, %501 : vector<8x128xf32>
    %cst_218 = arith.constant 0.000000e+00 : f32
    %503 = vector.broadcast %cst_218 : f32 to vector<8x128xf32>
    %504 = arith.subf %503, %489 : vector<8x128xf32>
    %505 = math.exp %504 : vector<8x128xf32>
    %506 = vector.broadcast %446 : vector<1x128xf32> to vector<8x128xf32>
    %507 = arith.subf %506, %488 : vector<8x128xf32>
    %508 = arith.mulf %507, %505 : vector<8x128xf32>
    %509 = arith.mulf %508, %508 : vector<8x128xf32>
    %cst_219 = arith.constant -5.000000e-01 : f32
    %510 = vector.broadcast %cst_219 : f32 to vector<8x128xf32>
    %511 = arith.mulf %510, %509 : vector<8x128xf32>
    %512 = arith.subf %511, %489 : vector<8x128xf32>
    %cst_220 = arith.constant 0.918938517 : f32
    %513 = vector.broadcast %cst_220 : f32 to vector<8x128xf32>
    %514 = arith.subf %512, %513 : vector<8x128xf32>
    %515 = arith.addf %502, %514 : vector<8x128xf32>
    %cst_221 = arith.constant dense<0xFF800000> : vector<128xf32>
    %516 = vector.multi_reduction <maximumf>, %515, %cst_221 [0] : vector<8x128xf32> to vector<128xf32>
    %517 = vector.shape_cast %516 : vector<128xf32> to vector<1x128xf32>
    %518 = vector.broadcast %517 : vector<1x128xf32> to vector<8x128xf32>
    %519 = arith.subf %515, %518 : vector<8x128xf32>
    %520 = math.exp %519 : vector<8x128xf32>
    %cst_222 = arith.constant dense<0.000000e+00> : vector<128xf32>
    %521 = vector.multi_reduction <add>, %520, %cst_222 [0] : vector<8x128xf32> to vector<128xf32>
    %522 = vector.shape_cast %521 : vector<128xf32> to vector<1x128xf32>
    %523 = math.log %522 : vector<1x128xf32>
    %524 = arith.addf %517, %523 : vector<1x128xf32>
    %525 = arith.addf %432, %524 : vector<1x128xf32>
    %c0_223 = arith.constant 0 : index
    %c0_224 = arith.constant 0 : index
    %526 = vector.load %arg15[%c0_223, %c0_224] : memref<16x128xf32, #tpu.memory_space<vmem>>, vector<16x128xf32>
    %527 = vector.broadcast %446 : vector<1x128xf32> to vector<16x128xf32>
    %528 = arith.mulf %526, %527 : vector<16x128xf32>
    %c0_225 = arith.constant 0 : index
    %c0_226 = arith.constant 0 : index
    %529 = vector.load %arg16[%c0_225, %c0_226] : memref<16x128xf32, #tpu.memory_space<vmem>>, vector<16x128xf32>
    %530 = arith.addf %528, %529 : vector<16x128xf32>
    %cst_227 = arith.constant 0.000000e+00 : f32
    %531 = vector.broadcast %cst_227 : f32 to vector<16x128xf32>
    %532 = arith.maximumf %530, %531 : vector<16x128xf32>
    %c0_228 = arith.constant 0 : index
    %c0_229 = arith.constant 0 : index
    %533 = vector.load %arg6[%c0_228, %c0_229] : memref<8x16xf32, #tpu.memory_space<vmem>>, vector<8x16xf32>
    %cst_230 = arith.constant dense<0.000000e+00> : vector<8x128xf32>
    %534 = tpu.matmul %533, %532, %cst_230 {dimension_numbers = #tpu.dot_dimension_numbers<[1], [0], [0], [1], [0, 0, 1, 1], [], []>} : vector<8x16xf32>, vector<16x128xf32>, vector<8x128xf32> -> vector<8x128xf32>
    %c0_231 = arith.constant 0 : index
    %c0_232 = arith.constant 0 : index
    %535 = vector.load %arg17[%c0_231, %c0_232] : memref<8x128xf32, #tpu.memory_space<vmem>>, vector<8x128xf32>
    %536 = arith.addf %534, %535 : vector<8x128xf32>
    %537 = math.tanh %536 : vector<8x128xf32>
    %c6_i32 = arith.constant 6 : i32
    %538 = arith.index_cast %c6_i32 : i32 to index
    %c0_233 = arith.constant 0 : index
    %539 = vector.load %arg1[%538, %c0_233] : memref<8x128xf32, #tpu.memory_space<vmem>>, vector<1x128xf32>
    %c0_234 = arith.constant 0 : index
    %c0_235 = arith.constant 0 : index
    %540 = vector.load %arg3[%c0_234, %c0_235] : memref<32x8xf32, #tpu.memory_space<vmem>>, vector<32x8xf32>
    %cst_236 = arith.constant dense<0.000000e+00> : vector<32x128xf32>
    %541 = tpu.matmul %540, %467, %cst_236 {dimension_numbers = #tpu.dot_dimension_numbers<[1], [0], [0], [1], [0, 0, 1, 1], [], []>} : vector<32x8xf32>, vector<8x128xf32>, vector<32x128xf32> -> vector<32x128xf32>
    %542 = vector.extract_strided_slice %537 {offsets = [0, 0], sizes = [1, 128], strides = [1, 1]} : vector<8x128xf32> to vector<1x128xf32>
    %543 = vector.extract_strided_slice %541 {offsets = [0, 0], sizes = [8, 128], strides = [1, 1]} : vector<32x128xf32> to vector<8x128xf32>
    %544 = vector.broadcast %542 : vector<1x128xf32> to vector<8x128xf32>
    %545 = arith.mulf %544, %543 : vector<8x128xf32>
    %546 = vector.extract_strided_slice %537 {offsets = [1, 0], sizes = [1, 128], strides = [1, 1]} : vector<8x128xf32> to vector<1x128xf32>
    %547 = vector.extract_strided_slice %541 {offsets = [8, 0], sizes = [8, 128], strides = [1, 1]} : vector<32x128xf32> to vector<8x128xf32>
    %548 = vector.broadcast %546 : vector<1x128xf32> to vector<8x128xf32>
    %549 = arith.mulf %548, %547 : vector<8x128xf32>
    %550 = arith.addf %545, %549 : vector<8x128xf32>
    %551 = vector.extract_strided_slice %537 {offsets = [2, 0], sizes = [1, 128], strides = [1, 1]} : vector<8x128xf32> to vector<1x128xf32>
    %552 = vector.extract_strided_slice %541 {offsets = [16, 0], sizes = [8, 128], strides = [1, 1]} : vector<32x128xf32> to vector<8x128xf32>
    %553 = vector.broadcast %551 : vector<1x128xf32> to vector<8x128xf32>
    %554 = arith.mulf %553, %552 : vector<8x128xf32>
    %555 = arith.addf %550, %554 : vector<8x128xf32>
    %556 = vector.extract_strided_slice %537 {offsets = [3, 0], sizes = [1, 128], strides = [1, 1]} : vector<8x128xf32> to vector<1x128xf32>
    %557 = vector.extract_strided_slice %541 {offsets = [24, 0], sizes = [8, 128], strides = [1, 1]} : vector<32x128xf32> to vector<8x128xf32>
    %558 = vector.broadcast %556 : vector<1x128xf32> to vector<8x128xf32>
    %559 = arith.mulf %558, %557 : vector<8x128xf32>
    %560 = arith.addf %555, %559 : vector<8x128xf32>
    %cst_237 = arith.constant 1.000000e+00 : f32
    %561 = arith.mulf %468, %cst_237 : f32
    %562 = vector.broadcast %561 : f32 to vector<8x128xf32>
    %563 = arith.mulf %560, %562 : vector<8x128xf32>
    %564 = math.tanh %563 : vector<8x128xf32>
    %c0_238 = arith.constant 0 : index
    %c0_239 = arith.constant 0 : index
    %565 = vector.load %arg8[%c0_238, %c0_239] : memref<32x8xf32, #tpu.memory_space<vmem>>, vector<32x8xf32>
    %cst_240 = arith.constant dense<0.000000e+00> : vector<32x128xf32>
    %566 = tpu.matmul %565, %564, %cst_240 {dimension_numbers = #tpu.dot_dimension_numbers<[1], [0], [0], [1], [0, 0, 1, 1], [], []>} : vector<32x8xf32>, vector<8x128xf32>, vector<32x128xf32> -> vector<32x128xf32>
    %c0_241 = arith.constant 0 : index
    %c0_242 = arith.constant 0 : index
    %567 = vector.load %arg18[%c0_241, %c0_242] : memref<32x128xf32, #tpu.memory_space<vmem>>, vector<32x128xf32>
    %568 = arith.addf %566, %567 : vector<32x128xf32>
    %cst_243 = arith.constant 0.000000e+00 : f32
    %569 = vector.broadcast %cst_243 : f32 to vector<32x128xf32>
    %570 = arith.maximumf %568, %569 : vector<32x128xf32>
    %c0_244 = arith.constant 0 : index
    %c0_245 = arith.constant 0 : index
    %571 = vector.load %arg10[%c0_244, %c0_245] : memref<32x32xf32, #tpu.memory_space<vmem>>, vector<32x32xf32>
    %cst_246 = arith.constant dense<0.000000e+00> : vector<32x128xf32>
    %572 = tpu.matmul %571, %570, %cst_246 {dimension_numbers = #tpu.dot_dimension_numbers<[1], [0], [0], [1], [0, 0, 1, 1], [], []>} : vector<32x32xf32>, vector<32x128xf32>, vector<32x128xf32> -> vector<32x128xf32>
    %c0_247 = arith.constant 0 : index
    %c0_248 = arith.constant 0 : index
    %573 = vector.load %arg19[%c0_247, %c0_248] : memref<32x128xf32, #tpu.memory_space<vmem>>, vector<32x128xf32>
    %574 = arith.addf %572, %573 : vector<32x128xf32>
    %cst_249 = arith.constant 0.000000e+00 : f32
    %575 = vector.broadcast %cst_249 : f32 to vector<32x128xf32>
    %576 = arith.maximumf %574, %575 : vector<32x128xf32>
    %c0_250 = arith.constant 0 : index
    %c0_251 = arith.constant 0 : index
    %577 = vector.load %arg12[%c0_250, %c0_251] : memref<24x32xf32, #tpu.memory_space<vmem>>, vector<24x32xf32>
    %cst_252 = arith.constant dense<0.000000e+00> : vector<24x128xf32>
    %578 = tpu.matmul %577, %576, %cst_252 {dimension_numbers = #tpu.dot_dimension_numbers<[1], [0], [0], [1], [0, 0, 1, 1], [], []>} : vector<24x32xf32>, vector<32x128xf32>, vector<24x128xf32> -> vector<24x128xf32>
    %c0_253 = arith.constant 0 : index
    %c0_254 = arith.constant 0 : index
    %579 = vector.load %arg20[%c0_253, %c0_254] : memref<24x128xf32, #tpu.memory_space<vmem>>, vector<24x128xf32>
    %580 = arith.addf %578, %579 : vector<24x128xf32>
    %581 = vector.extract_strided_slice %580 {offsets = [0, 0], sizes = [8, 128], strides = [1, 1]} : vector<24x128xf32> to vector<8x128xf32>
    %582 = vector.extract_strided_slice %580 {offsets = [8, 0], sizes = [8, 128], strides = [1, 1]} : vector<24x128xf32> to vector<8x128xf32>
    %583 = vector.extract_strided_slice %580 {offsets = [16, 0], sizes = [8, 128], strides = [1, 1]} : vector<24x128xf32> to vector<8x128xf32>
    %cst_255 = arith.constant dense<0xFF800000> : vector<128xf32>
    %584 = vector.multi_reduction <maximumf>, %583, %cst_255 [0] : vector<8x128xf32> to vector<128xf32>
    %585 = vector.shape_cast %584 : vector<128xf32> to vector<1x128xf32>
    %586 = vector.broadcast %585 : vector<1x128xf32> to vector<8x128xf32>
    %587 = arith.subf %583, %586 : vector<8x128xf32>
    %588 = vector.broadcast %585 : vector<1x128xf32> to vector<8x128xf32>
    %589 = arith.subf %583, %588 : vector<8x128xf32>
    %590 = math.exp %589 : vector<8x128xf32>
    %cst_256 = arith.constant dense<0.000000e+00> : vector<128xf32>
    %591 = vector.multi_reduction <add>, %590, %cst_256 [0] : vector<8x128xf32> to vector<128xf32>
    %592 = vector.shape_cast %591 : vector<128xf32> to vector<1x128xf32>
    %593 = math.log %592 : vector<1x128xf32>
    %594 = vector.broadcast %593 : vector<1x128xf32> to vector<8x128xf32>
    %595 = arith.subf %587, %594 : vector<8x128xf32>
    %cst_257 = arith.constant 0.000000e+00 : f32
    %596 = vector.broadcast %cst_257 : f32 to vector<8x128xf32>
    %597 = arith.subf %596, %582 : vector<8x128xf32>
    %598 = math.exp %597 : vector<8x128xf32>
    %599 = vector.broadcast %539 : vector<1x128xf32> to vector<8x128xf32>
    %600 = arith.subf %599, %581 : vector<8x128xf32>
    %601 = arith.mulf %600, %598 : vector<8x128xf32>
    %602 = arith.mulf %601, %601 : vector<8x128xf32>
    %cst_258 = arith.constant -5.000000e-01 : f32
    %603 = vector.broadcast %cst_258 : f32 to vector<8x128xf32>
    %604 = arith.mulf %603, %602 : vector<8x128xf32>
    %605 = arith.subf %604, %582 : vector<8x128xf32>
    %cst_259 = arith.constant 0.918938517 : f32
    %606 = vector.broadcast %cst_259 : f32 to vector<8x128xf32>
    %607 = arith.subf %605, %606 : vector<8x128xf32>
    %608 = arith.addf %595, %607 : vector<8x128xf32>
    %cst_260 = arith.constant dense<0xFF800000> : vector<128xf32>
    %609 = vector.multi_reduction <maximumf>, %608, %cst_260 [0] : vector<8x128xf32> to vector<128xf32>
    %610 = vector.shape_cast %609 : vector<128xf32> to vector<1x128xf32>
    %611 = vector.broadcast %610 : vector<1x128xf32> to vector<8x128xf32>
    %612 = arith.subf %608, %611 : vector<8x128xf32>
    %613 = math.exp %612 : vector<8x128xf32>
    %cst_261 = arith.constant dense<0.000000e+00> : vector<128xf32>
    %614 = vector.multi_reduction <add>, %613, %cst_261 [0] : vector<8x128xf32> to vector<128xf32>
    %615 = vector.shape_cast %614 : vector<128xf32> to vector<1x128xf32>
    %616 = math.log %615 : vector<1x128xf32>
    %617 = arith.addf %610, %616 : vector<1x128xf32>
    %618 = arith.addf %525, %617 : vector<1x128xf32>
    %c0_262 = arith.constant 0 : index
    %c0_263 = arith.constant 0 : index
    %619 = vector.load %arg15[%c0_262, %c0_263] : memref<16x128xf32, #tpu.memory_space<vmem>>, vector<16x128xf32>
    %620 = vector.broadcast %539 : vector<1x128xf32> to vector<16x128xf32>
    %621 = arith.mulf %619, %620 : vector<16x128xf32>
    %c0_264 = arith.constant 0 : index
    %c0_265 = arith.constant 0 : index
    %622 = vector.load %arg16[%c0_264, %c0_265] : memref<16x128xf32, #tpu.memory_space<vmem>>, vector<16x128xf32>
    %623 = arith.addf %621, %622 : vector<16x128xf32>
    %cst_266 = arith.constant 0.000000e+00 : f32
    %624 = vector.broadcast %cst_266 : f32 to vector<16x128xf32>
    %625 = arith.maximumf %623, %624 : vector<16x128xf32>
    %c0_267 = arith.constant 0 : index
    %c0_268 = arith.constant 0 : index
    %626 = vector.load %arg6[%c0_267, %c0_268] : memref<8x16xf32, #tpu.memory_space<vmem>>, vector<8x16xf32>
    %cst_269 = arith.constant dense<0.000000e+00> : vector<8x128xf32>
    %627 = tpu.matmul %626, %625, %cst_269 {dimension_numbers = #tpu.dot_dimension_numbers<[1], [0], [0], [1], [0, 0, 1, 1], [], []>} : vector<8x16xf32>, vector<16x128xf32>, vector<8x128xf32> -> vector<8x128xf32>
    %c0_270 = arith.constant 0 : index
    %c0_271 = arith.constant 0 : index
    %628 = vector.load %arg17[%c0_270, %c0_271] : memref<8x128xf32, #tpu.memory_space<vmem>>, vector<8x128xf32>
    %629 = arith.addf %627, %628 : vector<8x128xf32>
    %630 = math.tanh %629 : vector<8x128xf32>
    %c7_i32 = arith.constant 7 : i32
    %631 = arith.index_cast %c7_i32 : i32 to index
    %c0_272 = arith.constant 0 : index
    %632 = vector.load %arg1[%631, %c0_272] : memref<8x128xf32, #tpu.memory_space<vmem>>, vector<1x128xf32>
    %c0_273 = arith.constant 0 : index
    %c0_274 = arith.constant 0 : index
    %633 = vector.load %arg3[%c0_273, %c0_274] : memref<32x8xf32, #tpu.memory_space<vmem>>, vector<32x8xf32>
    %cst_275 = arith.constant dense<0.000000e+00> : vector<32x128xf32>
    %634 = tpu.matmul %633, %560, %cst_275 {dimension_numbers = #tpu.dot_dimension_numbers<[1], [0], [0], [1], [0, 0, 1, 1], [], []>} : vector<32x8xf32>, vector<8x128xf32>, vector<32x128xf32> -> vector<32x128xf32>
    %635 = vector.extract_strided_slice %630 {offsets = [0, 0], sizes = [1, 128], strides = [1, 1]} : vector<8x128xf32> to vector<1x128xf32>
    %636 = vector.extract_strided_slice %634 {offsets = [0, 0], sizes = [8, 128], strides = [1, 1]} : vector<32x128xf32> to vector<8x128xf32>
    %637 = vector.broadcast %635 : vector<1x128xf32> to vector<8x128xf32>
    %638 = arith.mulf %637, %636 : vector<8x128xf32>
    %639 = vector.extract_strided_slice %630 {offsets = [1, 0], sizes = [1, 128], strides = [1, 1]} : vector<8x128xf32> to vector<1x128xf32>
    %640 = vector.extract_strided_slice %634 {offsets = [8, 0], sizes = [8, 128], strides = [1, 1]} : vector<32x128xf32> to vector<8x128xf32>
    %641 = vector.broadcast %639 : vector<1x128xf32> to vector<8x128xf32>
    %642 = arith.mulf %641, %640 : vector<8x128xf32>
    %643 = arith.addf %638, %642 : vector<8x128xf32>
    %644 = vector.extract_strided_slice %630 {offsets = [2, 0], sizes = [1, 128], strides = [1, 1]} : vector<8x128xf32> to vector<1x128xf32>
    %645 = vector.extract_strided_slice %634 {offsets = [16, 0], sizes = [8, 128], strides = [1, 1]} : vector<32x128xf32> to vector<8x128xf32>
    %646 = vector.broadcast %644 : vector<1x128xf32> to vector<8x128xf32>
    %647 = arith.mulf %646, %645 : vector<8x128xf32>
    %648 = arith.addf %643, %647 : vector<8x128xf32>
    %649 = vector.extract_strided_slice %630 {offsets = [3, 0], sizes = [1, 128], strides = [1, 1]} : vector<8x128xf32> to vector<1x128xf32>
    %650 = vector.extract_strided_slice %634 {offsets = [24, 0], sizes = [8, 128], strides = [1, 1]} : vector<32x128xf32> to vector<8x128xf32>
    %651 = vector.broadcast %649 : vector<1x128xf32> to vector<8x128xf32>
    %652 = arith.mulf %651, %650 : vector<8x128xf32>
    %653 = arith.addf %648, %652 : vector<8x128xf32>
    %cst_276 = arith.constant 1.000000e+00 : f32
    %654 = arith.mulf %561, %cst_276 : f32
    %655 = vector.broadcast %654 : f32 to vector<8x128xf32>
    %656 = arith.mulf %653, %655 : vector<8x128xf32>
    %657 = math.tanh %656 : vector<8x128xf32>
    %c0_277 = arith.constant 0 : index
    %c0_278 = arith.constant 0 : index
    %658 = vector.load %arg8[%c0_277, %c0_278] : memref<32x8xf32, #tpu.memory_space<vmem>>, vector<32x8xf32>
    %cst_279 = arith.constant dense<0.000000e+00> : vector<32x128xf32>
    %659 = tpu.matmul %658, %657, %cst_279 {dimension_numbers = #tpu.dot_dimension_numbers<[1], [0], [0], [1], [0, 0, 1, 1], [], []>} : vector<32x8xf32>, vector<8x128xf32>, vector<32x128xf32> -> vector<32x128xf32>
    %c0_280 = arith.constant 0 : index
    %c0_281 = arith.constant 0 : index
    %660 = vector.load %arg18[%c0_280, %c0_281] : memref<32x128xf32, #tpu.memory_space<vmem>>, vector<32x128xf32>
    %661 = arith.addf %659, %660 : vector<32x128xf32>
    %cst_282 = arith.constant 0.000000e+00 : f32
    %662 = vector.broadcast %cst_282 : f32 to vector<32x128xf32>
    %663 = arith.maximumf %661, %662 : vector<32x128xf32>
    %c0_283 = arith.constant 0 : index
    %c0_284 = arith.constant 0 : index
    %664 = vector.load %arg10[%c0_283, %c0_284] : memref<32x32xf32, #tpu.memory_space<vmem>>, vector<32x32xf32>
    %cst_285 = arith.constant dense<0.000000e+00> : vector<32x128xf32>
    %665 = tpu.matmul %664, %663, %cst_285 {dimension_numbers = #tpu.dot_dimension_numbers<[1], [0], [0], [1], [0, 0, 1, 1], [], []>} : vector<32x32xf32>, vector<32x128xf32>, vector<32x128xf32> -> vector<32x128xf32>
    %c0_286 = arith.constant 0 : index
    %c0_287 = arith.constant 0 : index
    %666 = vector.load %arg19[%c0_286, %c0_287] : memref<32x128xf32, #tpu.memory_space<vmem>>, vector<32x128xf32>
    %667 = arith.addf %665, %666 : vector<32x128xf32>
    %cst_288 = arith.constant 0.000000e+00 : f32
    %668 = vector.broadcast %cst_288 : f32 to vector<32x128xf32>
    %669 = arith.maximumf %667, %668 : vector<32x128xf32>
    %c0_289 = arith.constant 0 : index
    %c0_290 = arith.constant 0 : index
    %670 = vector.load %arg12[%c0_289, %c0_290] : memref<24x32xf32, #tpu.memory_space<vmem>>, vector<24x32xf32>
    %cst_291 = arith.constant dense<0.000000e+00> : vector<24x128xf32>
    %671 = tpu.matmul %670, %669, %cst_291 {dimension_numbers = #tpu.dot_dimension_numbers<[1], [0], [0], [1], [0, 0, 1, 1], [], []>} : vector<24x32xf32>, vector<32x128xf32>, vector<24x128xf32> -> vector<24x128xf32>
    %c0_292 = arith.constant 0 : index
    %c0_293 = arith.constant 0 : index
    %672 = vector.load %arg20[%c0_292, %c0_293] : memref<24x128xf32, #tpu.memory_space<vmem>>, vector<24x128xf32>
    %673 = arith.addf %671, %672 : vector<24x128xf32>
    %674 = vector.extract_strided_slice %673 {offsets = [0, 0], sizes = [8, 128], strides = [1, 1]} : vector<24x128xf32> to vector<8x128xf32>
    %675 = vector.extract_strided_slice %673 {offsets = [8, 0], sizes = [8, 128], strides = [1, 1]} : vector<24x128xf32> to vector<8x128xf32>
    %676 = vector.extract_strided_slice %673 {offsets = [16, 0], sizes = [8, 128], strides = [1, 1]} : vector<24x128xf32> to vector<8x128xf32>
    %cst_294 = arith.constant dense<0xFF800000> : vector<128xf32>
    %677 = vector.multi_reduction <maximumf>, %676, %cst_294 [0] : vector<8x128xf32> to vector<128xf32>
    %678 = vector.shape_cast %677 : vector<128xf32> to vector<1x128xf32>
    %679 = vector.broadcast %678 : vector<1x128xf32> to vector<8x128xf32>
    %680 = arith.subf %676, %679 : vector<8x128xf32>
    %681 = vector.broadcast %678 : vector<1x128xf32> to vector<8x128xf32>
    %682 = arith.subf %676, %681 : vector<8x128xf32>
    %683 = math.exp %682 : vector<8x128xf32>
    %cst_295 = arith.constant dense<0.000000e+00> : vector<128xf32>
    %684 = vector.multi_reduction <add>, %683, %cst_295 [0] : vector<8x128xf32> to vector<128xf32>
    %685 = vector.shape_cast %684 : vector<128xf32> to vector<1x128xf32>
    %686 = math.log %685 : vector<1x128xf32>
    %687 = vector.broadcast %686 : vector<1x128xf32> to vector<8x128xf32>
    %688 = arith.subf %680, %687 : vector<8x128xf32>
    %cst_296 = arith.constant 0.000000e+00 : f32
    %689 = vector.broadcast %cst_296 : f32 to vector<8x128xf32>
    %690 = arith.subf %689, %675 : vector<8x128xf32>
    %691 = math.exp %690 : vector<8x128xf32>
    %692 = vector.broadcast %632 : vector<1x128xf32> to vector<8x128xf32>
    %693 = arith.subf %692, %674 : vector<8x128xf32>
    %694 = arith.mulf %693, %691 : vector<8x128xf32>
    %695 = arith.mulf %694, %694 : vector<8x128xf32>
    %cst_297 = arith.constant -5.000000e-01 : f32
    %696 = vector.broadcast %cst_297 : f32 to vector<8x128xf32>
    %697 = arith.mulf %696, %695 : vector<8x128xf32>
    %698 = arith.subf %697, %675 : vector<8x128xf32>
    %cst_298 = arith.constant 0.918938517 : f32
    %699 = vector.broadcast %cst_298 : f32 to vector<8x128xf32>
    %700 = arith.subf %698, %699 : vector<8x128xf32>
    %701 = arith.addf %688, %700 : vector<8x128xf32>
    %cst_299 = arith.constant dense<0xFF800000> : vector<128xf32>
    %702 = vector.multi_reduction <maximumf>, %701, %cst_299 [0] : vector<8x128xf32> to vector<128xf32>
    %703 = vector.shape_cast %702 : vector<128xf32> to vector<1x128xf32>
    %704 = vector.broadcast %703 : vector<1x128xf32> to vector<8x128xf32>
    %705 = arith.subf %701, %704 : vector<8x128xf32>
    %706 = math.exp %705 : vector<8x128xf32>
    %cst_300 = arith.constant dense<0.000000e+00> : vector<128xf32>
    %707 = vector.multi_reduction <add>, %706, %cst_300 [0] : vector<8x128xf32> to vector<128xf32>
    %708 = vector.shape_cast %707 : vector<128xf32> to vector<1x128xf32>
    %709 = math.log %708 : vector<1x128xf32>
    %710 = arith.addf %703, %709 : vector<1x128xf32>
    %711 = arith.addf %618, %710 : vector<1x128xf32>
    %c0_301 = arith.constant 0 : index
    %c0_302 = arith.constant 0 : index
    %712 = vector.load %arg15[%c0_301, %c0_302] : memref<16x128xf32, #tpu.memory_space<vmem>>, vector<16x128xf32>
    %713 = vector.broadcast %632 : vector<1x128xf32> to vector<16x128xf32>
    %714 = arith.mulf %712, %713 : vector<16x128xf32>
    %c0_303 = arith.constant 0 : index
    %c0_304 = arith.constant 0 : index
    %715 = vector.load %arg16[%c0_303, %c0_304] : memref<16x128xf32, #tpu.memory_space<vmem>>, vector<16x128xf32>
    %716 = arith.addf %714, %715 : vector<16x128xf32>
    %cst_305 = arith.constant 0.000000e+00 : f32
    %717 = vector.broadcast %cst_305 : f32 to vector<16x128xf32>
    %718 = arith.maximumf %716, %717 : vector<16x128xf32>
    %c0_306 = arith.constant 0 : index
    %c0_307 = arith.constant 0 : index
    %719 = vector.load %arg6[%c0_306, %c0_307] : memref<8x16xf32, #tpu.memory_space<vmem>>, vector<8x16xf32>
    %cst_308 = arith.constant dense<0.000000e+00> : vector<8x128xf32>
    %720 = tpu.matmul %719, %718, %cst_308 {dimension_numbers = #tpu.dot_dimension_numbers<[1], [0], [0], [1], [0, 0, 1, 1], [], []>} : vector<8x16xf32>, vector<16x128xf32>, vector<8x128xf32> -> vector<8x128xf32>
    %c0_309 = arith.constant 0 : index
    %c0_310 = arith.constant 0 : index
    %721 = vector.load %arg17[%c0_309, %c0_310] : memref<8x128xf32, #tpu.memory_space<vmem>>, vector<8x128xf32>
    %722 = arith.addf %720, %721 : vector<8x128xf32>
    %723 = math.tanh %722 : vector<8x128xf32>
    %c7_i32_311 = arith.constant 7 : i32
    %c0_312 = arith.constant 0 : index
    %c0_313 = arith.constant 0 : index
    %724 = vector.load %arg14[%c0_312, %c0_313] : memref<1x128xf32, #tpu.memory_space<vmem>>, vector<1x128xf32>
    tpu.vector_store %arg14[%c0_312, %c0_313], %711 {strides = array<i32>} : memref<1x128xf32, #tpu.memory_space<vmem>>, vector<1x128xf32>,
    return
  }
  func.func @transform_0(%arg0: i32) -> (i32, i32) {
    %c0_i32 = arith.constant 0 : i32
    %c0_i32_0 = arith.constant 0 : i32
    return %c0_i32, %arg0 : i32, i32
  }
  func.func @transform_1(%arg0: i32) -> (i32, i32) {
    %c0_i32 = arith.constant 0 : i32
    %c0_i32_0 = arith.constant 0 : i32
    %c0_i32_1 = arith.constant 0 : i32
    return %c0_i32, %c0_i32_0 : i32, i32
  }
  func.func @transform_2(%arg0: i32) -> (i32, i32) {
    %c0_i32 = arith.constant 0 : i32
    %c0_i32_0 = arith.constant 0 : i32
    %c0_i32_1 = arith.constant 0 : i32
    return %c0_i32, %c0_i32_0 : i32, i32
  }
  func.func @transform_3(%arg0: i32) -> (i32, i32) {
    %c0_i32 = arith.constant 0 : i32
    %c0_i32_0 = arith.constant 0 : i32
    %c0_i32_1 = arith.constant 0 : i32
    return %c0_i32, %c0_i32_0 : i32, i32
  }
  func.func @transform_4(%arg0: i32) -> (i32, i32) {
    %c0_i32 = arith.constant 0 : i32
    %c0_i32_0 = arith.constant 0 : i32
    %c0_i32_1 = arith.constant 0 : i32
    return %c0_i32, %c0_i32_0 : i32, i32
  }
  func.func @transform_5(%arg0: i32) -> (i32, i32) {
    %c0_i32 = arith.constant 0 : i32
    %c0_i32_0 = arith.constant 0 : i32
    %c0_i32_1 = arith.constant 0 : i32
    return %c0_i32, %c0_i32_0 : i32, i32
  }
  func.func @transform_6(%arg0: i32) -> (i32, i32) {
    %c0_i32 = arith.constant 0 : i32
    %c0_i32_0 = arith.constant 0 : i32
    %c0_i32_1 = arith.constant 0 : i32
    return %c0_i32, %c0_i32_0 : i32, i32
  }
  func.func @transform_7(%arg0: i32) -> (i32, i32) {
    %c0_i32 = arith.constant 0 : i32
    %c0_i32_0 = arith.constant 0 : i32
    %c0_i32_1 = arith.constant 0 : i32
    return %c0_i32, %c0_i32_0 : i32, i32
  }
  func.func @transform_8(%arg0: i32) -> (i32, i32) {
    %c0_i32 = arith.constant 0 : i32
    %c0_i32_0 = arith.constant 0 : i32
    %c0_i32_1 = arith.constant 0 : i32
    return %c0_i32, %c0_i32_0 : i32, i32
  }
  func.func @transform_9(%arg0: i32) -> (i32, i32) {
    %c0_i32 = arith.constant 0 : i32
    %c0_i32_0 = arith.constant 0 : i32
    %c0_i32_1 = arith.constant 0 : i32
    return %c0_i32, %c0_i32_0 : i32, i32
  }
  func.func @transform_10(%arg0: i32) -> (i32, i32) {
    %c0_i32 = arith.constant 0 : i32
    %c0_i32_0 = arith.constant 0 : i32
    %c0_i32_1 = arith.constant 0 : i32
    return %c0_i32, %c0_i32_0 : i32, i32
  }
  func.func @transform_11(%arg0: i32) -> (i32, i32) {
    %c0_i32 = arith.constant 0 : i32
    %c0_i32_0 = arith.constant 0 : i32
    %c0_i32_1 = arith.constant 0 : i32
    return %c0_i32, %c0_i32_0 : i32, i32
  }
  func.func @transform_12(%arg0: i32) -> (i32, i32) {
    %c0_i32 = arith.constant 0 : i32
    %c0_i32_0 = arith.constant 0 : i32
    %c0_i32_1 = arith.constant 0 : i32
    return %c0_i32, %c0_i32_0 : i32, i32
  }
  func.func @transform_13(%arg0: i32) -> (i32, i32) {
    %c0_i32 = arith.constant 0 : i32
    %c0_i32_0 = arith.constant 0 : i32
    return %c0_i32, %arg0 : i32, i32
  }
}

</mosaic_0001>

<llo_original>
// kernel: tpu_custom_call.1
$region0: #{tpu_custom_call.1}
  #allocation0 [shape = 'u32[]', space=smem, size = 0x4, offset = 0x4, fixed_abs, tag = 'smem constant byte address 0x4 - core index']
  #allocation1 [shape = 'u32[72,128]{1,0:T(1,128)}', space=vmem, size = 0x9000, scoped, tag = 'internal scratch']
  #allocation2 [shape = 'f32[16,128]{1,0:T(8,128)}', space=vmem, size = 0x2000, scoped, tag = 'scratch operand']
  #allocation3 [shape = 'f32[16,128]{1,0:T(8,128)}', space=vmem, size = 0x2000, scoped, tag = 'scratch operand']
  #allocation4 [shape = 'f32[8,128]{1,0:T(8,128)}', space=vmem, size = 0x1000, scoped, tag = 'scratch operand']
  #allocation5 [shape = 'f32[32,128]{1,0:T(8,128)}', space=vmem, size = 0x4000, scoped, tag = 'scratch operand']
  #allocation6 [shape = 'f32[32,128]{1,0:T(8,128)}', space=vmem, size = 0x4000, scoped, tag = 'scratch operand']
  #allocation7 [shape = 'f32[24,128]{1,0:T(8,128)}', space=vmem, size = 0x3000, scoped, tag = 'scratch operand']
  %s0 = inlined_call_operand.vmem [shape: f32[8,128], index: 0, kind: input, shape index: {}]
  %s1 = inlined_call_operand.vmem [shape: f32[8,1], index: 1, kind: input, shape index: {}]
  %s2 = inlined_call_operand.vmem [shape: f32[32,8], index: 2, kind: input, shape index: {}]
  %s3 = inlined_call_operand.vmem [shape: f32[16,1], index: 3, kind: input, shape index: {}]
  %s4 = inlined_call_operand.vmem [shape: f32[16,1], index: 4, kind: input, shape index: {}]
  %s5 = inlined_call_operand.vmem [shape: f32[8,16], index: 5, kind: input, shape index: {}]
  %s6 = inlined_call_operand.vmem [shape: f32[8,1], index: 6, kind: input, shape index: {}]
  %s7 = inlined_call_operand.vmem [shape: f32[32,8], index: 7, kind: input, shape index: {}]
  %s8 = inlined_call_operand.vmem [shape: f32[32,1], index: 8, kind: input, shape index: {}]
  %s9 = inlined_call_operand.vmem [shape: f32[32,32], index: 9, kind: input, shape index: {}]
  %s10 = inlined_call_operand.vmem [shape: f32[32,1], index: 10, kind: input, shape index: {}]
  %s11 = inlined_call_operand.vmem [shape: f32[24,32], index: 11, kind: input, shape index: {}]
  %s12 = inlined_call_operand.vmem [shape: f32[24,1], index: 12, kind: input, shape index: {}]
  %s13 = inlined_call_operand.hbm [shape: f32[1,128], index: 13, kind: output, shape index: {}]
  %s14 = sld [smem:[#allocation0]]
  $region66: #{tpu_custom_call.1} parent=0
    _
  %s16 = ssub.s32 1, %s14
  %s17 = scalar_select 0, %s16, %s14
  $region1: #{tpu_custom_call.1} parent=0
    #allocation8 [shape = 'u8[512]{0}', space=vmem, size = 0x400, scoped, tag = 'output window, operand 0, single buffered']
    #allocation9 [shape = 's32[1]{0}', space=sflag, size = 0x4, scoped, tag = 'scoped memory for tpu_custom_call.1']
    %18 = vsyncpa [#allocation9], 0
    // Predicated region
    $region2: #{tpu_custom_call.1} parent=1 // pred_check
      _
    $region3: #{tpu_custom_call.1} parent=1 // pred_check_branch
      %20 = sbr.rel (0) target = $region5
    $region4: #{tpu_custom_call.1} parent=1 // pred_region
      _
    $region5: #{tpu_custom_call.1} parent=1 // pred_fallthru
      _
    // Predicated region
    $region6: #{tpu_custom_call.1} parent=1 // pred_check
      _
    $region7: #{tpu_custom_call.1} parent=1 // pred_check_branch
      %22 = sbr.rel (0) target = $region9
    $region8: #{tpu_custom_call.1} parent=1 // pred_region
      _
    $region9: #{tpu_custom_call.1} parent=1 // pred_fallthru
      _
    // Predicated region
    $region10: #{tpu_custom_call.1} parent=1 // pred_check
      _
    $region11: #{tpu_custom_call.1} parent=1 // pred_check_branch
      %24 = sbr.rel (0) target = $region13
    $region12: #{tpu_custom_call.1} parent=1 // pred_region
      _
    $region13: #{tpu_custom_call.1} parent=1 // pred_fallthru
      _
    // Predicated region
    $region14: #{tpu_custom_call.1} parent=1 // pred_check
      _
    $region15: #{tpu_custom_call.1} parent=1 // pred_check_branch
      %26 = sbr.rel (0) target = $region17
    $region16: #{tpu_custom_call.1} parent=1 // pred_region
      _
    $region17: #{tpu_custom_call.1} parent=1 // pred_fallthru
      _
    // Predicated region
    $region18: #{tpu_custom_call.1} parent=1 // pred_check
      _
    $region19: #{tpu_custom_call.1} parent=1 // pred_check_branch
      %28 = sbr.rel (0) target = $region21
    $region20: #{tpu_custom_call.1} parent=1 // pred_region
      _
    $region21: #{tpu_custom_call.1} parent=1 // pred_fallthru
      _
    // Predicated region
    $region22: #{tpu_custom_call.1} parent=1 // pred_check
      _
    $region23: #{tpu_custom_call.1} parent=1 // pred_check_branch
      %30 = sbr.rel (0) target = $region25
    $region24: #{tpu_custom_call.1} parent=1 // pred_region
      _
    $region25: #{tpu_custom_call.1} parent=1 // pred_fallthru
      _
    // Predicated region
    $region26: #{tpu_custom_call.1} parent=1 // pred_check
      _
    $region27: #{tpu_custom_call.1} parent=1 // pred_check_branch
      %32 = sbr.rel (0) target = $region29
    $region28: #{tpu_custom_call.1} parent=1 // pred_region
      _
    $region29: #{tpu_custom_call.1} parent=1 // pred_fallthru
      _
    // Predicated region
    $region30: #{tpu_custom_call.1} parent=1 // pred_check
      _
    $region31: #{tpu_custom_call.1} parent=1 // pred_check_branch
      %34 = sbr.rel (0) target = $region33
    $region32: #{tpu_custom_call.1} parent=1 // pred_region
      _
    $region33: #{tpu_custom_call.1} parent=1 // pred_fallthru
      _
    // Predicated region
    $region34: #{tpu_custom_call.1} parent=1 // pred_check
      _
    $region35: #{tpu_custom_call.1} parent=1 // pred_check_branch
      %36 = sbr.rel (0) target = $region37
    $region36: #{tpu_custom_call.1} parent=1 // pred_region
      _
    $region37: #{tpu_custom_call.1} parent=1 // pred_fallthru
      _
    // Predicated region
    $region38: #{tpu_custom_call.1} parent=1 // pred_check
      _
    $region39: #{tpu_custom_call.1} parent=1 // pred_check_branch
      %38 = sbr.rel (0) target = $region41
    $region40: #{tpu_custom_call.1} parent=1 // pred_region
      _
    $region41: #{tpu_custom_call.1} parent=1 // pred_fallthru
      _
    // Predicated region
    $region42: #{tpu_custom_call.1} parent=1 // pred_check
      _
    $region43: #{tpu_custom_call.1} parent=1 // pred_check_branch
      %40 = sbr.rel (0) target = $region45
    $region44: #{tpu_custom_call.1} parent=1 // pred_region
      _
    $region45: #{tpu_custom_call.1} parent=1 // pred_fallthru
      _
    // Predicated region
    $region46: #{tpu_custom_call.1} parent=1 // pred_check
      _
    $region47: #{tpu_custom_call.1} parent=1 // pred_check_branch
      %42 = sbr.rel (0) target = $region49
    $region48: #{tpu_custom_call.1} parent=1 // pred_region
      _
    $region49: #{tpu_custom_call.1} parent=1 // pred_fallthru
      _
    // Predicated region
    $region50: #{tpu_custom_call.1} parent=1 // pred_check
      _
    $region51: #{tpu_custom_call.1} parent=1 // pred_check_branch
      %44 = sbr.rel (0) target = $region53
    $region52: #{tpu_custom_call.1} parent=1 // pred_region
      _
    $region53: #{tpu_custom_call.1} parent=1 // pred_fallthru
      _
    %p45 = scmp.eq.s32.totalorder 0, 0
    // Predicated region
    $region54: #{tpu_custom_call.1} parent=1 // pred_check
      %p46 = pneg %p45
    $region55: #{tpu_custom_call.1} parent=1 // pred_check_branch
      %48 = sbr.rel (%p46) target = $region57
    $region56: #{tpu_custom_call.1} parent=1 // pred_region
      %v49 = vld [vmem:[%s3] sm:$0xff]
      %v50 = vld [vmem:[%s3 + $0x8] sm:$0xff]
      %52 = vset.pattern.permute.xlu0 0
      %53 = vperm.xlu0 %52, %v49
      %v54 = vpop.permute.xlu0 %53
      %57 = vset.pattern.permute.xlu0 0
      %58 = vperm.xlu0 %57, %v50
      %v59 = vpop.permute.xlu0 %58
      %61 = vst [vmem:[#allocation2] sm:$0xff] %v54
      %62 = vst [vmem:[#allocation2 + $0x8] sm:$0xff] %v59
      %v63 = vld [vmem:[%s4] sm:$0xff]
      %v64 = vld [vmem:[%s4 + $0x8] sm:$0xff]
      %66 = vset.pattern.permute.xlu0 0
      %67 = vperm.xlu0 %66, %v63
      %v68 = vpop.permute.xlu0 %67
      %71 = vset.pattern.permute.xlu0 0
      %72 = vperm.xlu0 %71, %v64
      %v73 = vpop.permute.xlu0 %72
      %75 = vst [vmem:[#allocation3] sm:$0xff] %v68
      %76 = vst [vmem:[#allocation3 + $0x8] sm:$0xff] %v73
      %v77 = vld [vmem:[%s6] sm:$0xff]
      %79 = vset.pattern.permute.xlu0 0
      %80 = vperm.xlu0 %79, %v77
      %v81 = vpop.permute.xlu0 %80
      %83 = vst [vmem:[#allocation4] sm:$0xff] %v81
      %v84 = vld [vmem:[%s8] sm:$0xff]
      %v85 = vld [vmem:[%s8 + $0x8] sm:$0xff]
      %v86 = vld [vmem:[%s8 + $0x10] sm:$0xff]
      %v87 = vld [vmem:[%s8 + $0x18] sm:$0xff]
      %89 = vset.pattern.permute.xlu0 0
      %90 = vperm.xlu0 %89, %v84
      %v91 = vpop.permute.xlu0 %90
      %94 = vset.pattern.permute.xlu0 0
      %95 = vperm.xlu0 %94, %v85
      %v96 = vpop.permute.xlu0 %95
      %99 = vset.pattern.permute.xlu0 0
      %100 = vperm.xlu0 %99, %v86
      %v101 = vpop.permute.xlu0 %100
      %104 = vset.pattern.permute.xlu0 0
      %105 = vperm.xlu0 %104, %v87
      %v106 = vpop.permute.xlu0 %105
      %108 = vst [vmem:[#allocation5] sm:$0xff] %v91
      %109 = vst [vmem:[#allocation5 + $0x8] sm:$0xff] %v96
      %110 = vst [vmem:[#allocation5 + $0x10] sm:$0xff] %v101
      %111 = vst [vmem:[#allocation5 + $0x18] sm:$0xff] %v106
      %v112 = vld [vmem:[%s10] sm:$0xff]
      %v113 = vld [vmem:[%s10 + $0x8] sm:$0xff]
      %v114 = vld [vmem:[%s10 + $0x10] sm:$0xff]
      %v115 = vld [vmem:[%s10 + $0x18] sm:$0xff]
      %117 = vset.pattern.permute.xlu0 0
      %118 = vperm.xlu0 %117, %v112
      %v119 = vpop.permute.xlu0 %118
      %122 = vset.pattern.permute.xlu0 0
      %123 = vperm.xlu0 %122, %v113
      %v124 = vpop.permute.xlu0 %123
      %127 = vset.pattern.permute.xlu0 0
      %128 = vperm.xlu0 %127, %v114
      %v129 = vpop.permute.xlu0 %128
      %132 = vset.pattern.permute.xlu0 0
      %133 = vperm.xlu0 %132, %v115
      %v134 = vpop.permute.xlu0 %133
      %136 = vst [vmem:[#allocation6] sm:$0xff] %v119
      %137 = vst [vmem:[#allocation6 + $0x8] sm:$0xff] %v124
      %138 = vst [vmem:[#allocation6 + $0x10] sm:$0xff] %v129
      %139 = vst [vmem:[#allocation6 + $0x18] sm:$0xff] %v134
      %v140 = vld [vmem:[%s12] sm:$0xff]
      %v141 = vld [vmem:[%s12 + $0x8] sm:$0xff]
      %v142 = vld [vmem:[%s12 + $0x10] sm:$0xff]
      %144 = vset.pattern.permute.xlu0 0
      %145 = vperm.xlu0 %144, %v140
      %v146 = vpop.permute.xlu0 %145
      %149 = vset.pattern.permute.xlu0 0
      %150 = vperm.xlu0 %149, %v141
      %v151 = vpop.permute.xlu0 %150
      %154 = vset.pattern.permute.xlu0 0
      %155 = vperm.xlu0 %154, %v142
      %v156 = vpop.permute.xlu0 %155
      %158 = vst [vmem:[#allocation7] sm:$0xff] %v146
      %159 = vst [vmem:[#allocation7 + $0x8] sm:$0xff] %v151
      %160 = vst [vmem:[#allocation7 + $0x10] sm:$0xff] %v156
    $region57: #{tpu_custom_call.1} parent=1 // pred_fallthru
      _
    %v161 = vld [vmem:[%s0] sm:$0x1]
    %v162 = vld [vmem:[%s1] sm:$0xff]
    %164 = vset.pattern.permute.xlu0 0
    %165 = vperm.xlu0 %164, %v162
    %v166 = vpop.permute.xlu0 %165
    %v168 = vtanh.pop %v166
    %v169 = vld [vmem:[%s7] sm:$0xff]
    %v170 = vld [vmem:[%s7 + $0x8] sm:$0xff]
    %v171 = vld [vmem:[%s7 + $0x10] sm:$0xff]
    %v172 = vld [vmem:[%s7 + $0x18] sm:$0xff]
    %v173 = vld [vmem:[#allocation5] sm:$0xff]
    %v174 = vld [vmem:[#allocation5 + $0x8] sm:$0xff]
    %v175 = vld [vmem:[#allocation5 + $0x10] sm:$0xff]
    %v176 = vld [vmem:[#allocation5 + $0x18] sm:$0xff]
    %vm177 = vcmask 64512
    %v179 = vsel %vm177, %v169, 0
    %v182 = vsel %vm177, %v170, 0
    %v185 = vsel %vm177, %v171, 0
    %v188 = vsel %vm177, %v172, 0
    %190 = vmatpush.msra.mxu0 0.0
    %191 = vmatpush.msra.mxu0 0.0
    %192 = vmatpush.msra.mxu0 0.0
    %193 = vmatpush.msra.mxu0 0.0
    %194 = vmatpush.msra.mxu0 0.0
    %195 = vmatpush.msra.mxu0 0.0
    %196 = vmatpush.msra.mxu0 0.0
    %197 = vmatpush.msra.mxu0 0.0
    %198 = vmatpush.msra.mxu0 0.0
    %199 = vmatpush.msra.mxu0 0.0
    %200 = vmatpush.msra.mxu0 0.0
    %201 = vmatpush.msra.mxu0 0.0
    %202 = vmatpush.msra.mxu0 0.0
    %203 = vmatpush.msra.mxu0 0.0
    %204 = vmatpush.msra.mxu0 0.0
    %205 = vmatpush.msra.mxu0 %v168
    %206 = vmatmul.f32.gmra.mxu0 %v179
    %v207 = vpop.f32.mrf.mxu0
    %v208 = vadd.f32 %v173, %v207
    %209 = vmatmul.f32.gmra.mxu0 %v182
    %v210 = vpop.f32.mrf.mxu0
    %v211 = vadd.f32 %v174, %v210
    %212 = vmatmul.f32.gmra.mxu0 %v185
    %v213 = vpop.f32.mrf.mxu0
    %v214 = vadd.f32 %v175, %v213
    %215 = vmatmul.f32.gmra.mxu0 %v188
    %v216 = vpop.f32.mrf.mxu0
    %v217 = vadd.f32 %v176, %v216
    %218 = vdwg.mxu0
    %v219 = vmax.f32 %v208, 0.0
    %v220 = vmax.f32 %v211, 0.0
    %v221 = vmax.f32 %v214, 0.0
    %v222 = vmax.f32 %v217, 0.0
    %v223 = vld [vmem:[%s9] sm:$0xff]
    %v224 = vld [vmem:[%s9 + $0x8] sm:$0xff]
    %v225 = vld [vmem:[%s9 + $0x10] sm:$0xff]
    %v226 = vld [vmem:[%s9 + $0x18] sm:$0xff]
    %v227 = vld [vmem:[#allocation6] sm:$0xff]
    %v228 = vld [vmem:[#allocation6 + $0x8] sm:$0xff]
    %v229 = vld [vmem:[#allocation6 + $0x10] sm:$0xff]
    %v230 = vld [vmem:[#allocation6 + $0x18] sm:$0xff]
    %vm231 = vcmask 261120
    %v233 = vsel %vm231, %v223, 0
    %v236 = vsel %vm231, %v224, 0
    %v239 = vsel %vm231, %v225, 0
    %v242 = vsel %vm231, %v226, 0
    %244 = vmatpush.msra.mxu0 0.0
    %245 = vmatpush.msra.mxu0 0.0
    %246 = vmatpush.msra.mxu0 0.0
    %247 = vmatpush.msra.mxu0 0.0
    %248 = vmatpush.msra.mxu0 0.0
    %249 = vmatpush.msra.mxu0 0.0
    %250 = vmatpush.msra.mxu0 0.0
    %251 = vmatpush.msra.mxu0 0.0
    %252 = vmatpush.msra.mxu0 0.0
    %253 = vmatpush.msra.mxu0 0.0
    %254 = vmatpush.msra.mxu0 0.0
    %255 = vmatpush.msra.mxu0 0.0
    %256 = vmatpush.msra.mxu0 %v222
    %257 = vmatpush.msra.mxu0 %v221
    %258 = vmatpush.msra.mxu0 %v220
    %259 = vmatpush.msra.mxu0 %v219
    %260 = vmatmul.f32.gmra.mxu0 %v233
    %v261 = vpop.f32.mrf.mxu0
    %v262 = vadd.f32 %v227, %v261
    %263 = vmatmul.f32.gmra.mxu0 %v236
    %v264 = vpop.f32.mrf.mxu0
    %v265 = vadd.f32 %v228, %v264
    %266 = vmatmul.f32.gmra.mxu0 %v239
    %v267 = vpop.f32.mrf.mxu0
    %v268 = vadd.f32 %v229, %v267
    %269 = vmatmul.f32.gmra.mxu0 %v242
    %v270 = vpop.f32.mrf.mxu0
    %v271 = vadd.f32 %v230, %v270
    %272 = vdwg.mxu0
    %v273 = vmax.f32 %v262, 0.0
    %v274 = vmax.f32 %v265, 0.0
    %v275 = vmax.f32 %v268, 0.0
    %v276 = vmax.f32 %v271, 0.0
    %v277 = vld [vmem:[%s11] sm:$0xff]
    %v278 = vld [vmem:[%s11 + $0x8] sm:$0xff]
    %v279 = vld [vmem:[%s11 + $0x10] sm:$0xff]
    %v280 = vld [vmem:[#allocation7] sm:$0xff]
    %v281 = vld [vmem:[#allocation7 + $0x8] sm:$0xff]
    %v282 = vld [vmem:[#allocation7 + $0x10] sm:$0xff]
    %v284 = vsel %vm231, %v277, 0
    %v287 = vsel %vm231, %v278, 0
    %v290 = vsel %vm231, %v279, 0
    %292 = vmatpush.msra.mxu0 0.0
    %293 = vmatpush.msra.mxu0 0.0
    %294 = vmatpush.msra.mxu0 0.0
    %295 = vmatpush.msra.mxu0 0.0
    %296 = vmatpush.msra.mxu0 0.0
    %297 = vmatpush.msra.mxu0 0.0
    %298 = vmatpush.msra.mxu0 0.0
    %299 = vmatpush.msra.mxu0 0.0
    %300 = vmatpush.msra.mxu0 0.0
    %301 = vmatpush.msra.mxu0 0.0
    %302 = vmatpush.msra.mxu0 0.0
    %303 = vmatpush.msra.mxu0 0.0
    %304 = vmatpush.msra.mxu0 %v276
    %305 = vmatpush.msra.mxu0 %v275
    %306 = vmatpush.msra.mxu0 %v274
    %307 = vmatpush.msra.mxu0 %v273
    %308 = vmatmul.f32.gmra.mxu0 %v284
    %v309 = vpop.f32.mrf.mxu0
    %v310 = vadd.f32 %v280, %v309
    %311 = vmatmul.f32.gmra.mxu0 %v287
    %v312 = vpop.f32.mrf.mxu0
    %v313 = vadd.f32 %v281, %v312
    %314 = vmatmul.f32.gmra.mxu0 %v290
    %v315 = vpop.f32.mrf.mxu0
    %v316 = vadd.f32 %v282, %v315
    %317 = vdwg.mxu0
    %v318 = vrot.slane %v316, 4
    %v319 = vmax.f32 %v316, %v318
    %v320 = vrot.slane %v319, 2
    %v321 = vmax.f32 %v319, %v320
    %v322 = vrot.slane %v321, 1
    %v323 = vmax.f32 %v321, %v322
    %v324 = vsub.f32 %v316, %v323
    %v325 = vmul.f32 %v324, 1.442695
    %v326 = vpow.pop %v325
    %v327 = vrot.slane %v326, 4
    %v328 = vadd.f32 %v326, %v327
    %v329 = vrot.slane %v328, 2
    %v330 = vadd.f32 %v328, %v329
    %v331 = vrot.slane %v330, 1
    %v332 = vadd.f32 %v330, %v331
    %v333 = vlog2.pop %v332
    %v334 = vmul.f32 %v333, 0.6931472
    %v335 = vsub.f32 %v324, %v334
    %v336 = vsub.f32 0.0, %v313
    %v337 = vmul.f32 %v336, 1.442695
    %v338 = vpow.pop %v337
    %v339 = vperm.slane %v161, 0
    %v340 = vsub.f32 %v339, %v310
    %v341 = vmul.f32 %v340, %v338
    %v342 = vmul.f32 %v341, %v341
    %v343 = vmul.f32 %v342, -0.5
    %v344 = vsub.f32 %v343, %v313
    %v345 = vsub.f32 %v344, 0.9189385
    %v346 = vadd.f32 %v335, %v345
    %v347 = vrot.slane %v346, 4
    %v348 = vmax.f32 %v346, %v347
    %v349 = vrot.slane %v348, 2
    %v350 = vmax.f32 %v348, %v349
    %v351 = vrot.slane %v350, 1
    %v352 = vmax.f32 %v350, %v351
    %v353 = vsub.f32 %v346, %v352
    %v354 = vmul.f32 %v353, 1.442695
    %v355 = vpow.pop %v354
    %v356 = vrot.slane %v355, 4
    %v357 = vadd.f32 %v355, %v356
    %v358 = vrot.slane %v357, 2
    %v359 = vadd.f32 %v357, %v358
    %v360 = vrot.slane %v359, 1
    %v361 = vadd.f32 %v359, %v360
    %v362 = vlog2.pop %v361
    %v363 = vmul.f32 %v362, 0.6931472
    %v364 = vadd.f32 %v352, %v363
    %v365 = vld [vmem:[#allocation2] sm:$0xff]
    %v366 = vld [vmem:[#allocation2 + $0x8] sm:$0xff]
    %v367 = vmul.f32 %v365, %v339
    %v368 = vmul.f32 %v366, %v339
    %v369 = vld [vmem:[#allocation3] sm:$0xff]
    %v370 = vld [vmem:[#allocation3 + $0x8] sm:$0xff]
    %v371 = vadd.f32 %v367, %v369
    %v372 = vadd.f32 %v368, %v370
    %v373 = vmax.f32 %v371, 0.0
    %v374 = vmax.f32 %v372, 0.0
    %v375 = vld [vmem:[%s5] sm:$0xff]
    %v376 = vld [vmem:[#allocation4] sm:$0xff]
    %vm377 = vcmask 130048
    %v379 = vsel %vm377, %v375, 0
    %381 = vmatpush.msra.mxu0 0.0
    %382 = vmatpush.msra.mxu0 0.0
    %383 = vmatpush.msra.mxu0 0.0
    %384 = vmatpush.msra.mxu0 0.0
    %385 = vmatpush.msra.mxu0 0.0
    %386 = vmatpush.msra.mxu0 0.0
    %387 = vmatpush.msra.mxu0 0.0
    %388 = vmatpush.msra.mxu0 0.0
    %389 = vmatpush.msra.mxu0 0.0
    %390 = vmatpush.msra.mxu0 0.0
    %391 = vmatpush.msra.mxu0 0.0
    %392 = vmatpush.msra.mxu0 0.0
    %393 = vmatpush.msra.mxu0 0.0
    %394 = vmatpush.msra.mxu0 0.0
    %395 = vmatpush.msra.mxu0 %v374
    %396 = vmatpush.msra.mxu0 %v373
    %397 = vmatmul.f32.gmra.mxu0 %v379
    %v398 = vpop.f32.mrf.mxu0
    %v399 = vadd.f32 %v376, %v398
    %400 = vdwg.mxu0
    %v401 = vtanh.pop %v399
    %v402 = vld [vmem:[%s0 + $0x1] sm:$0x1]
    %v403 = vld [vmem:[%s2] sm:$0xff]
    %v404 = vld [vmem:[%s2 + $0x8] sm:$0xff]
    %v405 = vld [vmem:[%s2 + $0x10] sm:$0xff]
    %v406 = vld [vmem:[%s2 + $0x18] sm:$0xff]
    %v408 = vsel %vm177, %v403, 0
    %v411 = vsel %vm177, %v404, 0
    %v414 = vsel %vm177, %v405, 0
    %v417 = vsel %vm177, %v406, 0
    %419 = vmatpush.msra.mxu0 0.0
    %420 = vmatpush.msra.mxu0 0.0
    %421 = vmatpush.msra.mxu0 0.0
    %422 = vmatpush.msra.mxu0 0.0
    %423 = vmatpush.msra.mxu0 0.0
    %424 = vmatpush.msra.mxu0 0.0
    %425 = vmatpush.msra.mxu0 0.0
    %426 = vmatpush.msra.mxu0 0.0
    %427 = vmatpush.msra.mxu0 0.0
    %428 = vmatpush.msra.mxu0 0.0
    %429 = vmatpush.msra.mxu0 0.0
    %430 = vmatpush.msra.mxu0 0.0
    %431 = vmatpush.msra.mxu0 0.0
    %432 = vmatpush.msra.mxu0 0.0
    %433 = vmatpush.msra.mxu0 0.0
    %434 = vmatpush.msra.mxu0 %v166
    %435 = vmatmul.f32.gmra.mxu0 %v408
    %v436 = vpop.f32.mrf.mxu0
    %v437 = vadd.f32 0.0, %v436
    %438 = vmatmul.f32.gmra.mxu0 %v411
    %v439 = vpop.f32.mrf.mxu0
    %v440 = vadd.f32 0.0, %v439
    %441 = vmatmul.f32.gmra.mxu0 %v414
    %v442 = vpop.f32.mrf.mxu0
    %v443 = vadd.f32 0.0, %v442
    %444 = vmatmul.f32.gmra.mxu0 %v417
    %v445 = vpop.f32.mrf.mxu0
    %v446 = vadd.f32 0.0, %v445
    %447 = vdwg.mxu0
    %v448 = vperm.slane %v401, 0
    %v449 = vmul.f32 %v448, %v437
    %v450 = vperm.slane %v401, 1
    %v451 = vmul.f32 %v450, %v440
    %v452 = vadd.f32 %v449, %v451
    %v453 = vperm.slane %v401, 2
    %v454 = vmul.f32 %v453, %v443
    %v455 = vadd.f32 %v452, %v454
    %v456 = vperm.slane %v401, 3
    %v457 = vmul.f32 %v456, %v446
    %v458 = vadd.f32 %v455, %v457
    %v459 = vtanh.pop %v458
    %460 = vmatpush.msra.mxu0 0.0
    %461 = vmatpush.msra.mxu0 0.0
    %462 = vmatpush.msra.mxu0 0.0
    %463 = vmatpush.msra.mxu0 0.0
    %464 = vmatpush.msra.mxu0 0.0
    %465 = vmatpush.msra.mxu0 0.0
    %466 = vmatpush.msra.mxu0 0.0
    %467 = vmatpush.msra.mxu0 0.0
    %468 = vmatpush.msra.mxu0 0.0
    %469 = vmatpush.msra.mxu0 0.0
    %470 = vmatpush.msra.mxu0 0.0
    %471 = vmatpush.msra.mxu0 0.0
    %472 = vmatpush.msra.mxu0 0.0
    %473 = vmatpush.msra.mxu0 0.0
    %474 = vmatpush.msra.mxu0 0.0
    %475 = vmatpush.msra.mxu0 %v459
    %476 = vmatmul.f32.gmra.mxu0 %v179
    %v477 = vpop.f32.mrf.mxu0
    %v478 = vadd.f32 %v173, %v477
    %479 = vmatmul.f32.gmra.mxu0 %v182
    %v480 = vpop.f32.mrf.mxu0
    %v481 = vadd.f32 %v174, %v480
    %482 = vmatmul.f32.gmra.mxu0 %v185
    %v483 = vpop.f32.mrf.mxu0
    %v484 = vadd.f32 %v175, %v483
    %485 = vmatmul.f32.gmra.mxu0 %v188
    %v486 = vpop.f32.mrf.mxu0
    %v487 = vadd.f32 %v176, %v486
    %488 = vdwg.mxu0
    %v489 = vmax.f32 %v478, 0.0
    %v490 = vmax.f32 %v481, 0.0
    %v491 = vmax.f32 %v484, 0.0
    %v492 = vmax.f32 %v487, 0.0
    %493 = vmatpush.msra.mxu0 0.0
    %494 = vmatpush.msra.mxu0 0.0
    %495 = vmatpush.msra.mxu0 0.0
    %496 = vmatpush.msra.mxu0 0.0
    %497 = vmatpush.msra.mxu0 0.0
    %498 = vmatpush.msra.mxu0 0.0
    %499 = vmatpush.msra.mxu0 0.0
    %500 = vmatpush.msra.mxu0 0.0
    %501 = vmatpush.msra.mxu0 0.0
    %502 = vmatpush.msra.mxu0 0.0
    %503 = vmatpush.msra.mxu0 0.0
    %504 = vmatpush.msra.mxu0 0.0
    %505 = vmatpush.msra.mxu0 %v492
    %506 = vmatpush.msra.mxu0 %v491
    %507 = vmatpush.msra.mxu0 %v490
    %508 = vmatpush.msra.mxu0 %v489
    %509 = vmatmul.f32.gmra.mxu0 %v233
    %v510 = vpop.f32.mrf.mxu0
    %v511 = vadd.f32 %v227, %v510
    %512 = vmatmul.f32.gmra.mxu0 %v236
    %v513 = vpop.f32.mrf.mxu0
    %v514 = vadd.f32 %v228, %v513
    %515 = vmatmul.f32.gmra.mxu0 %v239
    %v516 = vpop.f32.mrf.mxu0
    %v517 = vadd.f32 %v229, %v516
    %518 = vmatmul.f32.gmra.mxu0 %v242
    %v519 = vpop.f32.mrf.mxu0
    %v520 = vadd.f32 %v230, %v519
    %521 = vdwg.mxu0
    %v522 = vmax.f32 %v511, 0.0
    %v523 = vmax.f32 %v514, 0.0
    %v524 = vmax.f32 %v517, 0.0
    %v525 = vmax.f32 %v520, 0.0
    %526 = vmatpush.msra.mxu0 0.0
    %527 = vmatpush.msra.mxu0 0.0
    %528 = vmatpush.msra.mxu0 0.0
    %529 = vmatpush.msra.mxu0 0.0
    %530 = vmatpush.msra.mxu0 0.0
    %531 = vmatpush.msra.mxu0 0.0
    %532 = vmatpush.msra.mxu0 0.0
    %533 = vmatpush.msra.mxu0 0.0
    %534 = vmatpush.msra.mxu0 0.0
    %535 = vmatpush.msra.mxu0 0.0
    %536 = vmatpush.msra.mxu0 0.0
    %537 = vmatpush.msra.mxu0 0.0
    %538 = vmatpush.msra.mxu0 %v525
    %539 = vmatpush.msra.mxu0 %v524
    %540 = vmatpush.msra.mxu0 %v523
    %541 = vmatpush.msra.mxu0 %v522
    %542 = vmatmul.f32.gmra.mxu0 %v284
    %v543 = vpop.f32.mrf.mxu0
    %v544 = vadd.f32 %v280, %v543
    %545 = vmatmul.f32.gmra.mxu0 %v287
    %v546 = vpop.f32.mrf.mxu0
    %v547 = vadd.f32 %v281, %v546
    %548 = vmatmul.f32.gmra.mxu0 %v290
    %v549 = vpop.f32.mrf.mxu0
    %v550 = vadd.f32 %v282, %v549
    %551 = vdwg.mxu0
    %v552 = vrot.slane %v550, 4
    %v553 = vmax.f32 %v550, %v552
    %v554 = vrot.slane %v553, 2
    %v555 = vmax.f32 %v553, %v554
    %v556 = vrot.slane %v555, 1
    %v557 = vmax.f32 %v555, %v556
    %v558 = vsub.f32 %v550, %v557
    %v559 = vmul.f32 %v558, 1.442695
    %v560 = vpow.pop %v559
    %v561 = vrot.slane %v560, 4
    %v562 = vadd.f32 %v560, %v561
    %v563 = vrot.slane %v562, 2
    %v564 = vadd.f32 %v562, %v563
    %v565 = vrot.slane %v564, 1
    %v566 = vadd.f32 %v564, %v565
    %v567 = vlog2.pop %v566
    %v568 = vmul.f32 %v567, 0.6931472
    %v569 = vsub.f32 %v558, %v568
    %v570 = vsub.f32 0.0, %v547
    %v571 = vmul.f32 %v570, 1.442695
    %v572 = vpow.pop %v571
    %v573 = vperm.slane %v402, 0
    %v574 = vsub.f32 %v573, %v544
    %v575 = vmul.f32 %v574, %v572
    %v576 = vmul.f32 %v575, %v575
    %v577 = vmul.f32 %v576, -0.5
    %v578 = vsub.f32 %v577, %v547
    %v579 = vsub.f32 %v578, 0.9189385
    %v580 = vadd.f32 %v569, %v579
    %v581 = vrot.slane %v580, 4
    %v582 = vmax.f32 %v580, %v581
    %v583 = vrot.slane %v582, 2
    %v584 = vmax.f32 %v582, %v583
    %v585 = vrot.slane %v584, 1
    %v586 = vmax.f32 %v584, %v585
    %v587 = vsub.f32 %v580, %v586
    %v588 = vmul.f32 %v587, 1.442695
    %v589 = vpow.pop %v588
    %v590 = vrot.slane %v589, 4
    %v591 = vadd.f32 %v589, %v590
    %v592 = vrot.slane %v591, 2
    %v593 = vadd.f32 %v591, %v592
    %v594 = vrot.slane %v593, 1
    %v595 = vadd.f32 %v593, %v594
    %v596 = vlog2.pop %v595
    %v597 = vmul.f32 %v596, 0.6931472
    %v598 = vadd.f32 %v586, %v597
    %v599 = vadd.f32 %v364, %v598
    %v600 = vmul.f32 %v365, %v573
    %v601 = vmul.f32 %v366, %v573
    %v602 = vadd.f32 %v600, %v369
    %v603 = vadd.f32 %v601, %v370
    %v604 = vmax.f32 %v602, 0.0
    %v605 = vmax.f32 %v603, 0.0
    %606 = vmatpush.msra.mxu0 0.0
    %607 = vmatpush.msra.mxu0 0.0
    %608 = vmatpush.msra.mxu0 0.0
    %609 = vmatpush.msra.mxu0 0.0
    %610 = vmatpush.msra.mxu0 0.0
    %611 = vmatpush.msra.mxu0 0.0
    %612 = vmatpush.msra.mxu0 0.0
    %613 = vmatpush.msra.mxu0 0.0
    %614 = vmatpush.msra.mxu0 0.0
    %615 = vmatpush.msra.mxu0 0.0
    %616 = vmatpush.msra.mxu0 0.0
    %617 = vmatpush.msra.mxu0 0.0
    %618 = vmatpush.msra.mxu0 0.0
    %619 = vmatpush.msra.mxu0 0.0
    %620 = vmatpush.msra.mxu0 %v605
    %621 = vmatpush.msra.mxu0 %v604
    %622 = vmatmul.f32.gmra.mxu0 %v379
    %v623 = vpop.f32.mrf.mxu0
    %v624 = vadd.f32 %v376, %v623
    %625 = vdwg.mxu0
    %v626 = vtanh.pop %v624
    %v627 = vld [vmem:[%s0 + $0x2] sm:$0x1]
    %628 = vmatpush.msra.mxu0 0.0
    %629 = vmatpush.msra.mxu0 0.0
    %630 = vmatpush.msra.mxu0 0.0
    %631 = vmatpush.msra.mxu0 0.0
    %632 = vmatpush.msra.mxu0 0.0
    %633 = vmatpush.msra.mxu0 0.0
    %634 = vmatpush.msra.mxu0 0.0
    %635 = vmatpush.msra.mxu0 0.0
    %636 = vmatpush.msra.mxu0 0.0
    %637 = vmatpush.msra.mxu0 0.0
    %638 = vmatpush.msra.mxu0 0.0
    %639 = vmatpush.msra.mxu0 0.0
    %640 = vmatpush.msra.mxu0 0.0
    %641 = vmatpush.msra.mxu0 0.0
    %642 = vmatpush.msra.mxu0 0.0
    %643 = vmatpush.msra.mxu0 %v458
    %644 = vmatmul.f32.gmra.mxu0 %v408
    %v645 = vpop.f32.mrf.mxu0
    %v646 = vadd.f32 0.0, %v645
    %647 = vmatmul.f32.gmra.mxu0 %v411
    %v648 = vpop.f32.mrf.mxu0
    %v649 = vadd.f32 0.0, %v648
    %650 = vmatmul.f32.gmra.mxu0 %v414
    %v651 = vpop.f32.mrf.mxu0
    %v652 = vadd.f32 0.0, %v651
    %653 = vmatmul.f32.gmra.mxu0 %v417
    %v654 = vpop.f32.mrf.mxu0
    %v655 = vadd.f32 0.0, %v654
    %656 = vdwg.mxu0
    %v657 = vperm.slane %v626, 0
    %v658 = vmul.f32 %v657, %v646
    %v659 = vperm.slane %v626, 1
    %v660 = vmul.f32 %v659, %v649
    %v661 = vadd.f32 %v658, %v660
    %v662 = vperm.slane %v626, 2
    %v663 = vmul.f32 %v662, %v652
    %v664 = vadd.f32 %v661, %v663
    %v665 = vperm.slane %v626, 3
    %v666 = vmul.f32 %v665, %v655
    %v667 = vadd.f32 %v664, %v666
    %v668 = vtanh.pop %v667
    %669 = vmatpush.msra.mxu0 0.0
    %670 = vmatpush.msra.mxu0 0.0
    %671 = vmatpush.msra.mxu0 0.0
    %672 = vmatpush.msra.mxu0 0.0
    %673 = vmatpush.msra.mxu0 0.0
    %674 = vmatpush.msra.mxu0 0.0
    %675 = vmatpush.msra.mxu0 0.0
    %676 = vmatpush.msra.mxu0 0.0
    %677 = vmatpush.msra.mxu0 0.0
    %678 = vmatpush.msra.mxu0 0.0
    %679 = vmatpush.msra.mxu0 0.0
    %680 = vmatpush.msra.mxu0 0.0
    %681 = vmatpush.msra.mxu0 0.0
    %682 = vmatpush.msra.mxu0 0.0
    %683 = vmatpush.msra.mxu0 0.0
    %684 = vmatpush.msra.mxu0 %v668
    %685 = vmatmul.f32.gmra.mxu0 %v179
    %v686 = vpop.f32.mrf.mxu0
    %v687 = vadd.f32 %v173, %v686
    %688 = vmatmul.f32.gmra.mxu0 %v182
    %v689 = vpop.f32.mrf.mxu0
    %v690 = vadd.f32 %v174, %v689
    %691 = vmatmul.f32.gmra.mxu0 %v185
    %v692 = vpop.f32.mrf.mxu0
    %v693 = vadd.f32 %v175, %v692
    %694 = vmatmul.f32.gmra.mxu0 %v188
    %v695 = vpop.f32.mrf.mxu0
    %v696 = vadd.f32 %v176, %v695
    %697 = vdwg.mxu0
    %v698 = vmax.f32 %v687, 0.0
    %v699 = vmax.f32 %v690, 0.0
    %v700 = vmax.f32 %v693, 0.0
    %v701 = vmax.f32 %v696, 0.0
    %702 = vmatpush.msra.mxu0 0.0
    %703 = vmatpush.msra.mxu0 0.0
    %704 = vmatpush.msra.mxu0 0.0
    %705 = vmatpush.msra.mxu0 0.0
    %706 = vmatpush.msra.mxu0 0.0
    %707 = vmatpush.msra.mxu0 0.0
    %708 = vmatpush.msra.mxu0 0.0
    %709 = vmatpush.msra.mxu0 0.0
    %710 = vmatpush.msra.mxu0 0.0
    %711 = vmatpush.msra.mxu0 0.0
    %712 = vmatpush.msra.mxu0 0.0
    %713 = vmatpush.msra.mxu0 0.0
    %714 = vmatpush.msra.mxu0 %v701
    %715 = vmatpush.msra.mxu0 %v700
    %716 = vmatpush.msra.mxu0 %v699
    %717 = vmatpush.msra.mxu0 %v698
    %718 = vmatmul.f32.gmra.mxu0 %v233
    %v719 = vpop.f32.mrf.mxu0
    %v720 = vadd.f32 %v227, %v719
    %721 = vmatmul.f32.gmra.mxu0 %v236
    %v722 = vpop.f32.mrf.mxu0
    %v723 = vadd.f32 %v228, %v722
    %724 = vmatmul.f32.gmra.mxu0 %v239
    %v725 = vpop.f32.mrf.mxu0
    %v726 = vadd.f32 %v229, %v725
    %727 = vmatmul.f32.gmra.mxu0 %v242
    %v728 = vpop.f32.mrf.mxu0
    %v729 = vadd.f32 %v230, %v728
    %730 = vdwg.mxu0
    %v731 = vmax.f32 %v720, 0.0
    %v732 = vmax.f32 %v723, 0.0
    %v733 = vmax.f32 %v726, 0.0
    %v734 = vmax.f32 %v729, 0.0
    %735 = vmatpush.msra.mxu0 0.0
    %736 = vmatpush.msra.mxu0 0.0
    %737 = vmatpush.msra.mxu0 0.0
    %738 = vmatpush.msra.mxu0 0.0
    %739 = vmatpush.msra.mxu0 0.0
    %740 = vmatpush.msra.mxu0 0.0
    %741 = vmatpush.msra.mxu0 0.0
    %742 = vmatpush.msra.mxu0 0.0
    %743 = vmatpush.msra.mxu0 0.0
    %744 = vmatpush.msra.mxu0 0.0
    %745 = vmatpush.msra.mxu0 0.0
    %746 = vmatpush.msra.mxu0 0.0
    %747 = vmatpush.msra.mxu0 %v734
    %748 = vmatpush.msra.mxu0 %v733
    %749 = vmatpush.msra.mxu0 %v732
    %750 = vmatpush.msra.mxu0 %v731
    %751 = vmatmul.f32.gmra.mxu0 %v284
    %v752 = vpop.f32.mrf.mxu0
    %v753 = vadd.f32 %v280, %v752
    %754 = vmatmul.f32.gmra.mxu0 %v287
    %v755 = vpop.f32.mrf.mxu0
    %v756 = vadd.f32 %v281, %v755
    %757 = vmatmul.f32.gmra.mxu0 %v290
    %v758 = vpop.f32.mrf.mxu0
    %v759 = vadd.f32 %v282, %v758
    %760 = vdwg.mxu0
    %v761 = vrot.slane %v759, 4
    %v762 = vmax.f32 %v759, %v761
    %v763 = vrot.slane %v762, 2
    %v764 = vmax.f32 %v762, %v763
    %v765 = vrot.slane %v764, 1
    %v766 = vmax.f32 %v764, %v765
    %v767 = vsub.f32 %v759, %v766
    %v768 = vmul.f32 %v767, 1.442695
    %v769 = vpow.pop %v768
    %v770 = vrot.slane %v769, 4
    %v771 = vadd.f32 %v769, %v770
    %v772 = vrot.slane %v771, 2
    %v773 = vadd.f32 %v771, %v772
    %v774 = vrot.slane %v773, 1
    %v775 = vadd.f32 %v773, %v774
    %v776 = vlog2.pop %v775
    %v777 = vmul.f32 %v776, 0.6931472
    %v778 = vsub.f32 %v767, %v777
    %v779 = vsub.f32 0.0, %v756
    %v780 = vmul.f32 %v779, 1.442695
    %v781 = vpow.pop %v780
    %v782 = vperm.slane %v627, 0
    %v783 = vsub.f32 %v782, %v753
    %v784 = vmul.f32 %v783, %v781
    %v785 = vmul.f32 %v784, %v784
    %v786 = vmul.f32 %v785, -0.5
    %v787 = vsub.f32 %v786, %v756
    %v788 = vsub.f32 %v787, 0.9189385
    %v789 = vadd.f32 %v778, %v788
    %v790 = vrot.slane %v789, 4
    %v791 = vmax.f32 %v789, %v790
    %v792 = vrot.slane %v791, 2
    %v793 = vmax.f32 %v791, %v792
    %v794 = vrot.slane %v793, 1
    %v795 = vmax.f32 %v793, %v794
    %v796 = vsub.f32 %v789, %v795
    %v797 = vmul.f32 %v796, 1.442695
    %v798 = vpow.pop %v797
    %v799 = vrot.slane %v798, 4
    %v800 = vadd.f32 %v798, %v799
    %v801 = vrot.slane %v800, 2
    %v802 = vadd.f32 %v800, %v801
    %v803 = vrot.slane %v802, 1
    %v804 = vadd.f32 %v802, %v803
    %v805 = vlog2.pop %v804
    %v806 = vmul.f32 %v805, 0.6931472
    %v807 = vadd.f32 %v795, %v806
    %v808 = vadd.f32 %v599, %v807
    %v809 = vmul.f32 %v365, %v782
    %v810 = vmul.f32 %v366, %v782
    %v811 = vadd.f32 %v809, %v369
    %v812 = vadd.f32 %v810, %v370
    %v813 = vmax.f32 %v811, 0.0
    %v814 = vmax.f32 %v812, 0.0
    %815 = vmatpush.msra.mxu0 0.0
    %816 = vmatpush.msra.mxu0 0.0
    %817 = vmatpush.msra.mxu0 0.0
    %818 = vmatpush.msra.mxu0 0.0
    %819 = vmatpush.msra.mxu0 0.0
    %820 = vmatpush.msra.mxu0 0.0
    %821 = vmatpush.msra.mxu0 0.0
    %822 = vmatpush.msra.mxu0 0.0
    %823 = vmatpush.msra.mxu0 0.0
    %824 = vmatpush.msra.mxu0 0.0
    %825 = vmatpush.msra.mxu0 0.0
    %826 = vmatpush.msra.mxu0 0.0
    %827 = vmatpush.msra.mxu0 0.0
    %828 = vmatpush.msra.mxu0 0.0
    %829 = vmatpush.msra.mxu0 %v814
    %830 = vmatpush.msra.mxu0 %v813
    %831 = vmatmul.f32.gmra.mxu0 %v379
    %v832 = vpop.f32.mrf.mxu0
    %v833 = vadd.f32 %v376, %v832
    %834 = vdwg.mxu0
    %v835 = vtanh.pop %v833
    %v836 = vld [vmem:[%s0 + $0x3] sm:$0x1]
    %837 = vmatpush.msra.mxu0 0.0
    %838 = vmatpush.msra.mxu0 0.0
    %839 = vmatpush.msra.mxu0 0.0
    %840 = vmatpush.msra.mxu0 0.0
    %841 = vmatpush.msra.mxu0 0.0
    %842 = vmatpush.msra.mxu0 0.0
    %843 = vmatpush.msra.mxu0 0.0
    %844 = vmatpush.msra.mxu0 0.0
    %845 = vmatpush.msra.mxu0 0.0
    %846 = vmatpush.msra.mxu0 0.0
    %847 = vmatpush.msra.mxu0 0.0
    %848 = vmatpush.msra.mxu0 0.0
    %849 = vmatpush.msra.mxu0 0.0
    %850 = vmatpush.msra.mxu0 0.0
    %851 = vmatpush.msra.mxu0 0.0
    %852 = vmatpush.msra.mxu0 %v667
    %853 = vmatmul.f32.gmra.mxu0 %v408
    %v854 = vpop.f32.mrf.mxu0
    %v855 = vadd.f32 0.0, %v854
    %856 = vmatmul.f32.gmra.mxu0 %v411
    %v857 = vpop.f32.mrf.mxu0
    %v858 = vadd.f32 0.0, %v857
    %859 = vmatmul.f32.gmra.mxu0 %v414
    %v860 = vpop.f32.mrf.mxu0
    %v861 = vadd.f32 0.0, %v860
    %862 = vmatmul.f32.gmra.mxu0 %v417
    %v863 = vpop.f32.mrf.mxu0
    %v864 = vadd.f32 0.0, %v863
    %865 = vdwg.mxu0
    %v866 = vperm.slane %v835, 0
    %v867 = vmul.f32 %v866, %v855
    %v868 = vperm.slane %v835, 1
    %v869 = vmul.f32 %v868, %v858
    %v870 = vadd.f32 %v867, %v869
    %v871 = vperm.slane %v835, 2
    %v872 = vmul.f32 %v871, %v861
    %v873 = vadd.f32 %v870, %v872
    %v874 = vperm.slane %v835, 3
    %v875 = vmul.f32 %v874, %v864
    %v876 = vadd.f32 %v873, %v875
    %v877 = vtanh.pop %v876
    %878 = vmatpush.msra.mxu0 0.0
    %879 = vmatpush.msra.mxu0 0.0
    %880 = vmatpush.msra.mxu0 0.0
    %881 = vmatpush.msra.mxu0 0.0
    %882 = vmatpush.msra.mxu0 0.0
    %883 = vmatpush.msra.mxu0 0.0
    %884 = vmatpush.msra.mxu0 0.0
    %885 = vmatpush.msra.mxu0 0.0
    %886 = vmatpush.msra.mxu0 0.0
    %887 = vmatpush.msra.mxu0 0.0
    %888 = vmatpush.msra.mxu0 0.0
    %889 = vmatpush.msra.mxu0 0.0
    %890 = vmatpush.msra.mxu0 0.0
    %891 = vmatpush.msra.mxu0 0.0
    %892 = vmatpush.msra.mxu0 0.0
    %893 = vmatpush.msra.mxu0 %v877
    %894 = vmatmul.f32.gmra.mxu0 %v179
    %v895 = vpop.f32.mrf.mxu0
    %v896 = vadd.f32 %v173, %v895
    %897 = vmatmul.f32.gmra.mxu0 %v182
    %v898 = vpop.f32.mrf.mxu0
    %v899 = vadd.f32 %v174, %v898
    %900 = vmatmul.f32.gmra.mxu0 %v185
    %v901 = vpop.f32.mrf.mxu0
    %v902 = vadd.f32 %v175, %v901
    %903 = vmatmul.f32.gmra.mxu0 %v188
    %v904 = vpop.f32.mrf.mxu0
    %v905 = vadd.f32 %v176, %v904
    %906 = vdwg.mxu0
    %v907 = vmax.f32 %v896, 0.0
    %v908 = vmax.f32 %v899, 0.0
    %v909 = vmax.f32 %v902, 0.0
    %v910 = vmax.f32 %v905, 0.0
    %911 = vmatpush.msra.mxu0 0.0
    %912 = vmatpush.msra.mxu0 0.0
    %913 = vmatpush.msra.mxu0 0.0
    %914 = vmatpush.msra.mxu0 0.0
    %915 = vmatpush.msra.mxu0 0.0
    %916 = vmatpush.msra.mxu0 0.0
    %917 = vmatpush.msra.mxu0 0.0
    %918 = vmatpush.msra.mxu0 0.0
    %919 = vmatpush.msra.mxu0 0.0
    %920 = vmatpush.msra.mxu0 0.0
    %921 = vmatpush.msra.mxu0 0.0
    %922 = vmatpush.msra.mxu0 0.0
    %923 = vmatpush.msra.mxu0 %v910
    %924 = vmatpush.msra.mxu0 %v909
    %925 = vmatpush.msra.mxu0 %v908
    %926 = vmatpush.msra.mxu0 %v907
    %927 = vmatmul.f32.gmra.mxu0 %v233
    %v928 = vpop.f32.mrf.mxu0
    %v929 = vadd.f32 %v227, %v928
    %930 = vmatmul.f32.gmra.mxu0 %v236
    %v931 = vpop.f32.mrf.mxu0
    %v932 = vadd.f32 %v228, %v931
    %933 = vmatmul.f32.gmra.mxu0 %v239
    %v934 = vpop.f32.mrf.mxu0
    %v935 = vadd.f32 %v229, %v934
    %936 = vmatmul.f32.gmra.mxu0 %v242
    %v937 = vpop.f32.mrf.mxu0
    %v938 = vadd.f32 %v230, %v937
    %939 = vdwg.mxu0
    %v940 = vmax.f32 %v929, 0.0
    %v941 = vmax.f32 %v932, 0.0
    %v942 = vmax.f32 %v935, 0.0
    %v943 = vmax.f32 %v938, 0.0
    %944 = vmatpush.msra.mxu0 0.0
    %945 = vmatpush.msra.mxu0 0.0
    %946 = vmatpush.msra.mxu0 0.0
    %947 = vmatpush.msra.mxu0 0.0
    %948 = vmatpush.msra.mxu0 0.0
    %949 = vmatpush.msra.mxu0 0.0
    %950 = vmatpush.msra.mxu0 0.0
    %951 = vmatpush.msra.mxu0 0.0
    %952 = vmatpush.msra.mxu0 0.0
    %953 = vmatpush.msra.mxu0 0.0
    %954 = vmatpush.msra.mxu0 0.0
    %955 = vmatpush.msra.mxu0 0.0
    %956 = vmatpush.msra.mxu0 %v943
    %957 = vmatpush.msra.mxu0 %v942
    %958 = vmatpush.msra.mxu0 %v941
    %959 = vmatpush.msra.mxu0 %v940
    %960 = vmatmul.f32.gmra.mxu0 %v284
    %v961 = vpop.f32.mrf.mxu0
    %v962 = vadd.f32 %v280, %v961
    %963 = vmatmul.f32.gmra.mxu0 %v287
    %v964 = vpop.f32.mrf.mxu0
    %v965 = vadd.f32 %v281, %v964
    %966 = vmatmul.f32.gmra.mxu0 %v290
    %v967 = vpop.f32.mrf.mxu0
    %v968 = vadd.f32 %v282, %v967
    %969 = vdwg.mxu0
    %v970 = vrot.slane %v968, 4
    %v971 = vmax.f32 %v968, %v970
    %v972 = vrot.slane %v971, 2
    %v973 = vmax.f32 %v971, %v972
    %v974 = vrot.slane %v973, 1
    %v975 = vmax.f32 %v973, %v974
    %v976 = vsub.f32 %v968, %v975
    %v977 = vmul.f32 %v976, 1.442695
    %v978 = vpow.pop %v977
    %v979 = vrot.slane %v978, 4
    %v980 = vadd.f32 %v978, %v979
    %v981 = vrot.slane %v980, 2
    %v982 = vadd.f32 %v980, %v981
    %v983 = vrot.slane %v982, 1
    %v984 = vadd.f32 %v982, %v983
    %v985 = vlog2.pop %v984
    %v986 = vmul.f32 %v985, 0.6931472
    %v987 = vsub.f32 %v976, %v986
    %v988 = vsub.f32 0.0, %v965
    %v989 = vmul.f32 %v988, 1.442695
    %v990 = vpow.pop %v989
    %v991 = vperm.slane %v836, 0
    %v992 = vsub.f32 %v991, %v962
    %v993 = vmul.f32 %v992, %v990
    %v994 = vmul.f32 %v993, %v993
    %v995 = vmul.f32 %v994, -0.5
    %v996 = vsub.f32 %v995, %v965
    %v997 = vsub.f32 %v996, 0.9189385
    %v998 = vadd.f32 %v987, %v997
    %v999 = vrot.slane %v998, 4
    %v1000 = vmax.f32 %v998, %v999
    %v1001 = vrot.slane %v1000, 2
    %v1002 = vmax.f32 %v1000, %v1001
    %v1003 = vrot.slane %v1002, 1
    %v1004 = vmax.f32 %v1002, %v1003
    %v1005 = vsub.f32 %v998, %v1004
    %v1006 = vmul.f32 %v1005, 1.442695
    %v1007 = vpow.pop %v1006
    %v1008 = vrot.slane %v1007, 4
    %v1009 = vadd.f32 %v1007, %v1008
    %v1010 = vrot.slane %v1009, 2
    %v1011 = vadd.f32 %v1009, %v1010
    %v1012 = vrot.slane %v1011, 1
    %v1013 = vadd.f32 %v1011, %v1012
    %v1014 = vlog2.pop %v1013
    %v1015 = vmul.f32 %v1014, 0.6931472
    %v1016 = vadd.f32 %v1004, %v1015
    %v1017 = vadd.f32 %v808, %v1016
    %v1018 = vmul.f32 %v365, %v991
    %v1019 = vmul.f32 %v366, %v991
    %v1020 = vadd.f32 %v1018, %v369
    %v1021 = vadd.f32 %v1019, %v370
    %v1022 = vmax.f32 %v1020, 0.0
    %v1023 = vmax.f32 %v1021, 0.0
    %1024 = vmatpush.msra.mxu0 0.0
    %1025 = vmatpush.msra.mxu0 0.0
    %1026 = vmatpush.msra.mxu0 0.0
    %1027 = vmatpush.msra.mxu0 0.0
    %1028 = vmatpush.msra.mxu0 0.0
    %1029 = vmatpush.msra.mxu0 0.0
    %1030 = vmatpush.msra.mxu0 0.0
    %1031 = vmatpush.msra.mxu0 0.0
    %1032 = vmatpush.msra.mxu0 0.0
    %1033 = vmatpush.msra.mxu0 0.0
    %1034 = vmatpush.msra.mxu0 0.0
    %1035 = vmatpush.msra.mxu0 0.0
    %1036 = vmatpush.msra.mxu0 0.0
    %1037 = vmatpush.msra.mxu0 0.0
    %1038 = vmatpush.msra.mxu0 %v1023
    %1039 = vmatpush.msra.mxu0 %v1022
    %1040 = vmatmul.f32.gmra.mxu0 %v379
    %v1041 = vpop.f32.mrf.mxu0
    %v1042 = vadd.f32 %v376, %v1041
    %1043 = vdwg.mxu0
    %v1044 = vtanh.pop %v1042
    %v1045 = vld [vmem:[%s0 + $0x4] sm:$0x1]
    %1046 = vmatpush.msra.mxu0 0.0
    %1047 = vmatpush.msra.mxu0 0.0
    %1048 = vmatpush.msra.mxu0 0.0
    %1049 = vmatpush.msra.mxu0 0.0
    %1050 = vmatpush.msra.mxu0 0.0
    %1051 = vmatpush.msra.mxu0 0.0
    %1052 = vmatpush.msra.mxu0 0.0
    %1053 = vmatpush.msra.mxu0 0.0
    %1054 = vmatpush.msra.mxu0 0.0
    %1055 = vmatpush.msra.mxu0 0.0
    %1056 = vmatpush.msra.mxu0 0.0
    %1057 = vmatpush.msra.mxu0 0.0
    %1058 = vmatpush.msra.mxu0 0.0
    %1059 = vmatpush.msra.mxu0 0.0
    %1060 = vmatpush.msra.mxu0 0.0
    %1061 = vmatpush.msra.mxu0 %v876
    %1062 = vmatmul.f32.gmra.mxu0 %v408
    %v1063 = vpop.f32.mrf.mxu0
    %v1064 = vadd.f32 0.0, %v1063
    %1065 = vmatmul.f32.gmra.mxu0 %v411
    %v1066 = vpop.f32.mrf.mxu0
    %v1067 = vadd.f32 0.0, %v1066
    %1068 = vmatmul.f32.gmra.mxu0 %v414
    %v1069 = vpop.f32.mrf.mxu0
    %v1070 = vadd.f32 0.0, %v1069
    %1071 = vmatmul.f32.gmra.mxu0 %v417
    %v1072 = vpop.f32.mrf.mxu0
    %v1073 = vadd.f32 0.0, %v1072
    %1074 = vdwg.mxu0
    %v1075 = vperm.slane %v1044, 0
    %v1076 = vmul.f32 %v1075, %v1064
    %v1077 = vperm.slane %v1044, 1
    %v1078 = vmul.f32 %v1077, %v1067
    %v1079 = vadd.f32 %v1076, %v1078
    %v1080 = vperm.slane %v1044, 2
    %v1081 = vmul.f32 %v1080, %v1070
    %v1082 = vadd.f32 %v1079, %v1081
    %v1083 = vperm.slane %v1044, 3
    %v1084 = vmul.f32 %v1083, %v1073
    %v1085 = vadd.f32 %v1082, %v1084
    %v1086 = vtanh.pop %v1085
    %1087 = vmatpush.msra.mxu0 0.0
    %1088 = vmatpush.msra.mxu0 0.0
    %1089 = vmatpush.msra.mxu0 0.0
    %1090 = vmatpush.msra.mxu0 0.0
    %1091 = vmatpush.msra.mxu0 0.0
    %1092 = vmatpush.msra.mxu0 0.0
    %1093 = vmatpush.msra.mxu0 0.0
    %1094 = vmatpush.msra.mxu0 0.0
    %1095 = vmatpush.msra.mxu0 0.0
    %1096 = vmatpush.msra.mxu0 0.0
    %1097 = vmatpush.msra.mxu0 0.0
    %1098 = vmatpush.msra.mxu0 0.0
    %1099 = vmatpush.msra.mxu0 0.0
    %1100 = vmatpush.msra.mxu0 0.0
    %1101 = vmatpush.msra.mxu0 0.0
    %1102 = vmatpush.msra.mxu0 %v1086
    %1103 = vmatmul.f32.gmra.mxu0 %v179
    %v1104 = vpop.f32.mrf.mxu0
    %v1105 = vadd.f32 %v173, %v1104
    %1106 = vmatmul.f32.gmra.mxu0 %v182
    %v1107 = vpop.f32.mrf.mxu0
    %v1108 = vadd.f32 %v174, %v1107
    %1109 = vmatmul.f32.gmra.mxu0 %v185
    %v1110 = vpop.f32.mrf.mxu0
    %v1111 = vadd.f32 %v175, %v1110
    %1112 = vmatmul.f32.gmra.mxu0 %v188
    %v1113 = vpop.f32.mrf.mxu0
    %v1114 = vadd.f32 %v176, %v1113
    %1115 = vdwg.mxu0
    %v1116 = vmax.f32 %v1105, 0.0
    %v1117 = vmax.f32 %v1108, 0.0
    %v1118 = vmax.f32 %v1111, 0.0
    %v1119 = vmax.f32 %v1114, 0.0
    %1120 = vmatpush.msra.mxu0 0.0
    %1121 = vmatpush.msra.mxu0 0.0
    %1122 = vmatpush.msra.mxu0 0.0
    %1123 = vmatpush.msra.mxu0 0.0
    %1124 = vmatpush.msra.mxu0 0.0
    %1125 = vmatpush.msra.mxu0 0.0
    %1126 = vmatpush.msra.mxu0 0.0
    %1127 = vmatpush.msra.mxu0 0.0
    %1128 = vmatpush.msra.mxu0 0.0
    %1129 = vmatpush.msra.mxu0 0.0
    %1130 = vmatpush.msra.mxu0 0.0
    %1131 = vmatpush.msra.mxu0 0.0
    %1132 = vmatpush.msra.mxu0 %v1119
    %1133 = vmatpush.msra.mxu0 %v1118
    %1134 = vmatpush.msra.mxu0 %v1117
    %1135 = vmatpush.msra.mxu0 %v1116
    %1136 = vmatmul.f32.gmra.mxu0 %v233
    %v1137 = vpop.f32.mrf.mxu0
    %v1138 = vadd.f32 %v227, %v1137
    %1139 = vmatmul.f32.gmra.mxu0 %v236
    %v1140 = vpop.f32.mrf.mxu0
    %v1141 = vadd.f32 %v228, %v1140
    %1142 = vmatmul.f32.gmra.mxu0 %v239
    %v1143 = vpop.f32.mrf.mxu0
    %v1144 = vadd.f32 %v229, %v1143
    %1145 = vmatmul.f32.gmra.mxu0 %v242
    %v1146 = vpop.f32.mrf.mxu0
    %v1147 = vadd.f32 %v230, %v1146
    %1148 = vdwg.mxu0
    %v1149 = vmax.f32 %v1138, 0.0
    %v1150 = vmax.f32 %v1141, 0.0
    %v1151 = vmax.f32 %v1144, 0.0
    %v1152 = vmax.f32 %v1147, 0.0
    %1153 = vmatpush.msra.mxu0 0.0
    %1154 = vmatpush.msra.mxu0 0.0
    %1155 = vmatpush.msra.mxu0 0.0
    %1156 = vmatpush.msra.mxu0 0.0
    %1157 = vmatpush.msra.mxu0 0.0
    %1158 = vmatpush.msra.mxu0 0.0
    %1159 = vmatpush.msra.mxu0 0.0
    %1160 = vmatpush.msra.mxu0 0.0
    %1161 = vmatpush.msra.mxu0 0.0
    %1162 = vmatpush.msra.mxu0 0.0
    %1163 = vmatpush.msra.mxu0 0.0
    %1164 = vmatpush.msra.mxu0 0.0
    %1165 = vmatpush.msra.mxu0 %v1152
    %1166 = vmatpush.msra.mxu0 %v1151
    %1167 = vmatpush.msra.mxu0 %v1150
    %1168 = vmatpush.msra.mxu0 %v1149
    %1169 = vmatmul.f32.gmra.mxu0 %v284
    %v1170 = vpop.f32.mrf.mxu0
    %v1171 = vadd.f32 %v280, %v1170
    %1172 = vmatmul.f32.gmra.mxu0 %v287
    %v1173 = vpop.f32.mrf.mxu0
    %v1174 = vadd.f32 %v281, %v1173
    %1175 = vmatmul.f32.gmra.mxu0 %v290
    %v1176 = vpop.f32.mrf.mxu0
    %v1177 = vadd.f32 %v282, %v1176
    %1178 = vdwg.mxu0
    %v1179 = vrot.slane %v1177, 4
    %v1180 = vmax.f32 %v1177, %v1179
    %v1181 = vrot.slane %v1180, 2
    %v1182 = vmax.f32 %v1180, %v1181
    %v1183 = vrot.slane %v1182, 1
    %v1184 = vmax.f32 %v1182, %v1183
    %v1185 = vsub.f32 %v1177, %v1184
    %v1186 = vmul.f32 %v1185, 1.442695
    %v1187 = vpow.pop %v1186
    %v1188 = vrot.slane %v1187, 4
    %v1189 = vadd.f32 %v1187, %v1188
    %v1190 = vrot.slane %v1189, 2
    %v1191 = vadd.f32 %v1189, %v1190
    %v1192 = vrot.slane %v1191, 1
    %v1193 = vadd.f32 %v1191, %v1192
    %v1194 = vlog2.pop %v1193
    %v1195 = vmul.f32 %v1194, 0.6931472
    %v1196 = vsub.f32 %v1185, %v1195
    %v1197 = vsub.f32 0.0, %v1174
    %v1198 = vmul.f32 %v1197, 1.442695
    %v1199 = vpow.pop %v1198
    %v1200 = vperm.slane %v1045, 0
    %v1201 = vsub.f32 %v1200, %v1171
    %v1202 = vmul.f32 %v1201, %v1199
    %v1203 = vmul.f32 %v1202, %v1202
    %v1204 = vmul.f32 %v1203, -0.5
    %v1205 = vsub.f32 %v1204, %v1174
    %v1206 = vsub.f32 %v1205, 0.9189385
    %v1207 = vadd.f32 %v1196, %v1206
    %v1208 = vrot.slane %v1207, 4
    %v1209 = vmax.f32 %v1207, %v1208
    %v1210 = vrot.slane %v1209, 2
    %v1211 = vmax.f32 %v1209, %v1210
    %v1212 = vrot.slane %v1211, 1
    %v1213 = vmax.f32 %v1211, %v1212
    %v1214 = vsub.f32 %v1207, %v1213
    %v1215 = vmul.f32 %v1214, 1.442695
    %v1216 = vpow.pop %v1215
    %v1217 = vrot.slane %v1216, 4
    %v1218 = vadd.f32 %v1216, %v1217
    %v1219 = vrot.slane %v1218, 2
    %v1220 = vadd.f32 %v1218, %v1219
    %v1221 = vrot.slane %v1220, 1
    %v1222 = vadd.f32 %v1220, %v1221
    %v1223 = vlog2.pop %v1222
    %v1224 = vmul.f32 %v1223, 0.6931472
    %v1225 = vadd.f32 %v1213, %v1224
    %v1226 = vadd.f32 %v1017, %v1225
    %v1227 = vmul.f32 %v365, %v1200
    %v1228 = vmul.f32 %v366, %v1200
    %v1229 = vadd.f32 %v1227, %v369
    %v1230 = vadd.f32 %v1228, %v370
    %v1231 = vmax.f32 %v1229, 0.0
    %v1232 = vmax.f32 %v1230, 0.0
    %1233 = vmatpush.msra.mxu0 0.0
    %1234 = vmatpush.msra.mxu0 0.0
    %1235 = vmatpush.msra.mxu0 0.0
    %1236 = vmatpush.msra.mxu0 0.0
    %1237 = vmatpush.msra.mxu0 0.0
    %1238 = vmatpush.msra.mxu0 0.0
    %1239 = vmatpush.msra.mxu0 0.0
    %1240 = vmatpush.msra.mxu0 0.0
    %1241 = vmatpush.msra.mxu0 0.0
    %1242 = vmatpush.msra.mxu0 0.0
    %1243 = vmatpush.msra.mxu0 0.0
    %1244 = vmatpush.msra.mxu0 0.0
    %1245 = vmatpush.msra.mxu0 0.0
    %1246 = vmatpush.msra.mxu0 0.0
    %1247 = vmatpush.msra.mxu0 %v1232
    %1248 = vmatpush.msra.mxu0 %v1231
    %1249 = vmatmul.f32.gmra.mxu0 %v379
    %v1250 = vpop.f32.mrf.mxu0
    %v1251 = vadd.f32 %v376, %v1250
    %1252 = vdwg.mxu0
    %v1253 = vtanh.pop %v1251
    %v1254 = vld [vmem:[%s0 + $0x5] sm:$0x1]
    %1255 = vmatpush.msra.mxu0 0.0
    %1256 = vmatpush.msra.mxu0 0.0
    %1257 = vmatpush.msra.mxu0 0.0
    %1258 = vmatpush.msra.mxu0 0.0
    %1259 = vmatpush.msra.mxu0 0.0
    %1260 = vmatpush.msra.mxu0 0.0
    %1261 = vmatpush.msra.mxu0 0.0
    %1262 = vmatpush.msra.mxu0 0.0
    %1263 = vmatpush.msra.mxu0 0.0
    %1264 = vmatpush.msra.mxu0 0.0
    %1265 = vmatpush.msra.mxu0 0.0
    %1266 = vmatpush.msra.mxu0 0.0
    %1267 = vmatpush.msra.mxu0 0.0
    %1268 = vmatpush.msra.mxu0 0.0
    %1269 = vmatpush.msra.mxu0 0.0
    %1270 = vmatpush.msra.mxu0 %v1085
    %1271 = vmatmul.f32.gmra.mxu0 %v408
    %v1272 = vpop.f32.mrf.mxu0
    %v1273 = vadd.f32 0.0, %v1272
    %1274 = vmatmul.f32.gmra.mxu0 %v411
    %v1275 = vpop.f32.mrf.mxu0
    %v1276 = vadd.f32 0.0, %v1275
    %1277 = vmatmul.f32.gmra.mxu0 %v414
    %v1278 = vpop.f32.mrf.mxu0
    %v1279 = vadd.f32 0.0, %v1278
    %1280 = vmatmul.f32.gmra.mxu0 %v417
    %v1281 = vpop.f32.mrf.mxu0
    %v1282 = vadd.f32 0.0, %v1281
    %1283 = vdwg.mxu0
    %v1284 = vperm.slane %v1253, 0
    %v1285 = vmul.f32 %v1284, %v1273
    %v1286 = vperm.slane %v1253, 1
    %v1287 = vmul.f32 %v1286, %v1276
    %v1288 = vadd.f32 %v1285, %v1287
    %v1289 = vperm.slane %v1253, 2
    %v1290 = vmul.f32 %v1289, %v1279
    %v1291 = vadd.f32 %v1288, %v1290
    %v1292 = vperm.slane %v1253, 3
    %v1293 = vmul.f32 %v1292, %v1282
    %v1294 = vadd.f32 %v1291, %v1293
    %v1295 = vtanh.pop %v1294
    %1296 = vmatpush.msra.mxu0 0.0
    %1297 = vmatpush.msra.mxu0 0.0
    %1298 = vmatpush.msra.mxu0 0.0
    %1299 = vmatpush.msra.mxu0 0.0
    %1300 = vmatpush.msra.mxu0 0.0
    %1301 = vmatpush.msra.mxu0 0.0
    %1302 = vmatpush.msra.mxu0 0.0
    %1303 = vmatpush.msra.mxu0 0.0
    %1304 = vmatpush.msra.mxu0 0.0
    %1305 = vmatpush.msra.mxu0 0.0
    %1306 = vmatpush.msra.mxu0 0.0
    %1307 = vmatpush.msra.mxu0 0.0
    %1308 = vmatpush.msra.mxu0 0.0
    %1309 = vmatpush.msra.mxu0 0.0
    %1310 = vmatpush.msra.mxu0 0.0
    %1311 = vmatpush.msra.mxu0 %v1295
    %1312 = vmatmul.f32.gmra.mxu0 %v179
    %v1313 = vpop.f32.mrf.mxu0
    %v1314 = vadd.f32 %v173, %v1313
    %1315 = vmatmul.f32.gmra.mxu0 %v182
    %v1316 = vpop.f32.mrf.mxu0
    %v1317 = vadd.f32 %v174, %v1316
    %1318 = vmatmul.f32.gmra.mxu0 %v185
    %v1319 = vpop.f32.mrf.mxu0
    %v1320 = vadd.f32 %v175, %v1319
    %1321 = vmatmul.f32.gmra.mxu0 %v188
    %v1322 = vpop.f32.mrf.mxu0
    %v1323 = vadd.f32 %v176, %v1322
    %1324 = vdwg.mxu0
    %v1325 = vmax.f32 %v1314, 0.0
    %v1326 = vmax.f32 %v1317, 0.0
    %v1327 = vmax.f32 %v1320, 0.0
    %v1328 = vmax.f32 %v1323, 0.0
    %1329 = vmatpush.msra.mxu0 0.0
    %1330 = vmatpush.msra.mxu0 0.0
    %1331 = vmatpush.msra.mxu0 0.0
    %1332 = vmatpush.msra.mxu0 0.0
    %1333 = vmatpush.msra.mxu0 0.0
    %1334 = vmatpush.msra.mxu0 0.0
    %1335 = vmatpush.msra.mxu0 0.0
    %1336 = vmatpush.msra.mxu0 0.0
    %1337 = vmatpush.msra.mxu0 0.0
    %1338 = vmatpush.msra.mxu0 0.0
    %1339 = vmatpush.msra.mxu0 0.0
    %1340 = vmatpush.msra.mxu0 0.0
    %1341 = vmatpush.msra.mxu0 %v1328
    %1342 = vmatpush.msra.mxu0 %v1327
    %1343 = vmatpush.msra.mxu0 %v1326
    %1344 = vmatpush.msra.mxu0 %v1325
    %1345 = vmatmul.f32.gmra.mxu0 %v233
    %v1346 = vpop.f32.mrf.mxu0
    %v1347 = vadd.f32 %v227, %v1346
    %1348 = vmatmul.f32.gmra.mxu0 %v236
    %v1349 = vpop.f32.mrf.mxu0
    %v1350 = vadd.f32 %v228, %v1349
    %1351 = vmatmul.f32.gmra.mxu0 %v239
    %v1352 = vpop.f32.mrf.mxu0
    %v1353 = vadd.f32 %v229, %v1352
    %1354 = vmatmul.f32.gmra.mxu0 %v242
    %v1355 = vpop.f32.mrf.mxu0
    %v1356 = vadd.f32 %v230, %v1355
    %1357 = vdwg.mxu0
    %v1358 = vmax.f32 %v1347, 0.0
    %v1359 = vmax.f32 %v1350, 0.0
    %v1360 = vmax.f32 %v1353, 0.0
    %v1361 = vmax.f32 %v1356, 0.0
    %1362 = vmatpush.msra.mxu0 0.0
    %1363 = vmatpush.msra.mxu0 0.0
    %1364 = vmatpush.msra.mxu0 0.0
    %1365 = vmatpush.msra.mxu0 0.0
    %1366 = vmatpush.msra.mxu0 0.0
    %1367 = vmatpush.msra.mxu0 0.0
    %1368 = vmatpush.msra.mxu0 0.0
    %1369 = vmatpush.msra.mxu0 0.0
    %1370 = vmatpush.msra.mxu0 0.0
    %1371 = vmatpush.msra.mxu0 0.0
    %1372 = vmatpush.msra.mxu0 0.0
    %1373 = vmatpush.msra.mxu0 0.0
    %1374 = vmatpush.msra.mxu0 %v1361
    %1375 = vmatpush.msra.mxu0 %v1360
    %1376 = vmatpush.msra.mxu0 %v1359
    %1377 = vmatpush.msra.mxu0 %v1358
    %1378 = vmatmul.f32.gmra.mxu0 %v284
    %v1379 = vpop.f32.mrf.mxu0
    %v1380 = vadd.f32 %v280, %v1379
    %1381 = vmatmul.f32.gmra.mxu0 %v287
    %v1382 = vpop.f32.mrf.mxu0
    %v1383 = vadd.f32 %v281, %v1382
    %1384 = vmatmul.f32.gmra.mxu0 %v290
    %v1385 = vpop.f32.mrf.mxu0
    %v1386 = vadd.f32 %v282, %v1385
    %1387 = vdwg.mxu0
    %v1388 = vrot.slane %v1386, 4
    %v1389 = vmax.f32 %v1386, %v1388
    %v1390 = vrot.slane %v1389, 2
    %v1391 = vmax.f32 %v1389, %v1390
    %v1392 = vrot.slane %v1391, 1
    %v1393 = vmax.f32 %v1391, %v1392
    %v1394 = vsub.f32 %v1386, %v1393
    %v1395 = vmul.f32 %v1394, 1.442695
    %v1396 = vpow.pop %v1395
    %v1397 = vrot.slane %v1396, 4
    %v1398 = vadd.f32 %v1396, %v1397
    %v1399 = vrot.slane %v1398, 2
    %v1400 = vadd.f32 %v1398, %v1399
    %v1401 = vrot.slane %v1400, 1
    %v1402 = vadd.f32 %v1400, %v1401
    %v1403 = vlog2.pop %v1402
    %v1404 = vmul.f32 %v1403, 0.6931472
    %v1405 = vsub.f32 %v1394, %v1404
    %v1406 = vsub.f32 0.0, %v1383
    %v1407 = vmul.f32 %v1406, 1.442695
    %v1408 = vpow.pop %v1407
    %v1409 = vperm.slane %v1254, 0
    %v1410 = vsub.f32 %v1409, %v1380
    %v1411 = vmul.f32 %v1410, %v1408
    %v1412 = vmul.f32 %v1411, %v1411
    %v1413 = vmul.f32 %v1412, -0.5
    %v1414 = vsub.f32 %v1413, %v1383
    %v1415 = vsub.f32 %v1414, 0.9189385
    %v1416 = vadd.f32 %v1405, %v1415
    %v1417 = vrot.slane %v1416, 4
    %v1418 = vmax.f32 %v1416, %v1417
    %v1419 = vrot.slane %v1418, 2
    %v1420 = vmax.f32 %v1418, %v1419
    %v1421 = vrot.slane %v1420, 1
    %v1422 = vmax.f32 %v1420, %v1421
    %v1423 = vsub.f32 %v1416, %v1422
    %v1424 = vmul.f32 %v1423, 1.442695
    %v1425 = vpow.pop %v1424
    %v1426 = vrot.slane %v1425, 4
    %v1427 = vadd.f32 %v1425, %v1426
    %v1428 = vrot.slane %v1427, 2
    %v1429 = vadd.f32 %v1427, %v1428
    %v1430 = vrot.slane %v1429, 1
    %v1431 = vadd.f32 %v1429, %v1430
    %v1432 = vlog2.pop %v1431
    %v1433 = vmul.f32 %v1432, 0.6931472
    %v1434 = vadd.f32 %v1422, %v1433
    %v1435 = vadd.f32 %v1226, %v1434
    %v1436 = vmul.f32 %v365, %v1409
    %v1437 = vmul.f32 %v366, %v1409
    %v1438 = vadd.f32 %v1436, %v369
    %v1439 = vadd.f32 %v1437, %v370
    %v1440 = vmax.f32 %v1438, 0.0
    %v1441 = vmax.f32 %v1439, 0.0
    %1442 = vmatpush.msra.mxu0 0.0
    %1443 = vmatpush.msra.mxu0 0.0
    %1444 = vmatpush.msra.mxu0 0.0
    %1445 = vmatpush.msra.mxu0 0.0
    %1446 = vmatpush.msra.mxu0 0.0
    %1447 = vmatpush.msra.mxu0 0.0
    %1448 = vmatpush.msra.mxu0 0.0
    %1449 = vmatpush.msra.mxu0 0.0
    %1450 = vmatpush.msra.mxu0 0.0
    %1451 = vmatpush.msra.mxu0 0.0
    %1452 = vmatpush.msra.mxu0 0.0
    %1453 = vmatpush.msra.mxu0 0.0
    %1454 = vmatpush.msra.mxu0 0.0
    %1455 = vmatpush.msra.mxu0 0.0
    %1456 = vmatpush.msra.mxu0 %v1441
    %1457 = vmatpush.msra.mxu0 %v1440
    %1458 = vmatmul.f32.gmra.mxu0 %v379
    %v1459 = vpop.f32.mrf.mxu0
    %v1460 = vadd.f32 %v376, %v1459
    %1461 = vdwg.mxu0
    %v1462 = vtanh.pop %v1460
    %v1463 = vld [vmem:[%s0 + $0x6] sm:$0x1]
    %1464 = vmatpush.msra.mxu0 0.0
    %1465 = vmatpush.msra.mxu0 0.0
    %1466 = vmatpush.msra.mxu0 0.0
    %1467 = vmatpush.msra.mxu0 0.0
    %1468 = vmatpush.msra.mxu0 0.0
    %1469 = vmatpush.msra.mxu0 0.0
    %1470 = vmatpush.msra.mxu0 0.0
    %1471 = vmatpush.msra.mxu0 0.0
    %1472 = vmatpush.msra.mxu0 0.0
    %1473 = vmatpush.msra.mxu0 0.0
    %1474 = vmatpush.msra.mxu0 0.0
    %1475 = vmatpush.msra.mxu0 0.0
    %1476 = vmatpush.msra.mxu0 0.0
    %1477 = vmatpush.msra.mxu0 0.0
    %1478 = vmatpush.msra.mxu0 0.0
    %1479 = vmatpush.msra.mxu0 %v1294
    %1480 = vmatmul.f32.gmra.mxu0 %v408
    %v1481 = vpop.f32.mrf.mxu0
    %v1482 = vadd.f32 0.0, %v1481
    %1483 = vmatmul.f32.gmra.mxu0 %v411
    %v1484 = vpop.f32.mrf.mxu0
    %v1485 = vadd.f32 0.0, %v1484
    %1486 = vmatmul.f32.gmra.mxu0 %v414
    %v1487 = vpop.f32.mrf.mxu0
    %v1488 = vadd.f32 0.0, %v1487
    %1489 = vmatmul.f32.gmra.mxu0 %v417
    %v1490 = vpop.f32.mrf.mxu0
    %v1491 = vadd.f32 0.0, %v1490
    %1492 = vdwg.mxu0
    %v1493 = vperm.slane %v1462, 0
    %v1494 = vmul.f32 %v1493, %v1482
    %v1495 = vperm.slane %v1462, 1
    %v1496 = vmul.f32 %v1495, %v1485
    %v1497 = vadd.f32 %v1494, %v1496
    %v1498 = vperm.slane %v1462, 2
    %v1499 = vmul.f32 %v1498, %v1488
    %v1500 = vadd.f32 %v1497, %v1499
    %v1501 = vperm.slane %v1462, 3
    %v1502 = vmul.f32 %v1501, %v1491
    %v1503 = vadd.f32 %v1500, %v1502
    %v1504 = vtanh.pop %v1503
    %1505 = vmatpush.msra.mxu0 0.0
    %1506 = vmatpush.msra.mxu0 0.0
    %1507 = vmatpush.msra.mxu0 0.0
    %1508 = vmatpush.msra.mxu0 0.0
    %1509 = vmatpush.msra.mxu0 0.0
    %1510 = vmatpush.msra.mxu0 0.0
    %1511 = vmatpush.msra.mxu0 0.0
    %1512 = vmatpush.msra.mxu0 0.0
    %1513 = vmatpush.msra.mxu0 0.0
    %1514 = vmatpush.msra.mxu0 0.0
    %1515 = vmatpush.msra.mxu0 0.0
    %1516 = vmatpush.msra.mxu0 0.0
    %1517 = vmatpush.msra.mxu0 0.0
    %1518 = vmatpush.msra.mxu0 0.0
    %1519 = vmatpush.msra.mxu0 0.0
    %1520 = vmatpush.msra.mxu0 %v1504
    %1521 = vmatmul.f32.gmra.mxu0 %v179
    %v1522 = vpop.f32.mrf.mxu0
    %v1523 = vadd.f32 %v173, %v1522
    %1524 = vmatmul.f32.gmra.mxu0 %v182
    %v1525 = vpop.f32.mrf.mxu0
    %v1526 = vadd.f32 %v174, %v1525
    %1527 = vmatmul.f32.gmra.mxu0 %v185
    %v1528 = vpop.f32.mrf.mxu0
    %v1529 = vadd.f32 %v175, %v1528
    %1530 = vmatmul.f32.gmra.mxu0 %v188
    %v1531 = vpop.f32.mrf.mxu0
    %v1532 = vadd.f32 %v176, %v1531
    %1533 = vdwg.mxu0
    %v1534 = vmax.f32 %v1523, 0.0
    %v1535 = vmax.f32 %v1526, 0.0
    %v1536 = vmax.f32 %v1529, 0.0
    %v1537 = vmax.f32 %v1532, 0.0
    %1538 = vmatpush.msra.mxu0 0.0
    %1539 = vmatpush.msra.mxu0 0.0
    %1540 = vmatpush.msra.mxu0 0.0
    %1541 = vmatpush.msra.mxu0 0.0
    %1542 = vmatpush.msra.mxu0 0.0
    %1543 = vmatpush.msra.mxu0 0.0
    %1544 = vmatpush.msra.mxu0 0.0
    %1545 = vmatpush.msra.mxu0 0.0
    %1546 = vmatpush.msra.mxu0 0.0
    %1547 = vmatpush.msra.mxu0 0.0
    %1548 = vmatpush.msra.mxu0 0.0
    %1549 = vmatpush.msra.mxu0 0.0
    %1550 = vmatpush.msra.mxu0 %v1537
    %1551 = vmatpush.msra.mxu0 %v1536
    %1552 = vmatpush.msra.mxu0 %v1535
    %1553 = vmatpush.msra.mxu0 %v1534
    %1554 = vmatmul.f32.gmra.mxu0 %v233
    %v1555 = vpop.f32.mrf.mxu0
    %v1556 = vadd.f32 %v227, %v1555
    %1557 = vmatmul.f32.gmra.mxu0 %v236
    %v1558 = vpop.f32.mrf.mxu0
    %v1559 = vadd.f32 %v228, %v1558
    %1560 = vmatmul.f32.gmra.mxu0 %v239
    %v1561 = vpop.f32.mrf.mxu0
    %v1562 = vadd.f32 %v229, %v1561
    %1563 = vmatmul.f32.gmra.mxu0 %v242
    %v1564 = vpop.f32.mrf.mxu0
    %v1565 = vadd.f32 %v230, %v1564
    %1566 = vdwg.mxu0
    %v1567 = vmax.f32 %v1556, 0.0
    %v1568 = vmax.f32 %v1559, 0.0
    %v1569 = vmax.f32 %v1562, 0.0
    %v1570 = vmax.f32 %v1565, 0.0
    %1571 = vmatpush.msra.mxu0 0.0
    %1572 = vmatpush.msra.mxu0 0.0
    %1573 = vmatpush.msra.mxu0 0.0
    %1574 = vmatpush.msra.mxu0 0.0
    %1575 = vmatpush.msra.mxu0 0.0
    %1576 = vmatpush.msra.mxu0 0.0
    %1577 = vmatpush.msra.mxu0 0.0
    %1578 = vmatpush.msra.mxu0 0.0
    %1579 = vmatpush.msra.mxu0 0.0
    %1580 = vmatpush.msra.mxu0 0.0
    %1581 = vmatpush.msra.mxu0 0.0
    %1582 = vmatpush.msra.mxu0 0.0
    %1583 = vmatpush.msra.mxu0 %v1570
    %1584 = vmatpush.msra.mxu0 %v1569
    %1585 = vmatpush.msra.mxu0 %v1568
    %1586 = vmatpush.msra.mxu0 %v1567
    %1587 = vmatmul.f32.gmra.mxu0 %v284
    %v1588 = vpop.f32.mrf.mxu0
    %v1589 = vadd.f32 %v280, %v1588
    %1590 = vmatmul.f32.gmra.mxu0 %v287
    %v1591 = vpop.f32.mrf.mxu0
    %v1592 = vadd.f32 %v281, %v1591
    %1593 = vmatmul.f32.gmra.mxu0 %v290
    %v1594 = vpop.f32.mrf.mxu0
    %v1595 = vadd.f32 %v282, %v1594
    %1596 = vdwg.mxu0
    %v1597 = vrot.slane %v1595, 4
    %v1598 = vmax.f32 %v1595, %v1597
    %v1599 = vrot.slane %v1598, 2
    %v1600 = vmax.f32 %v1598, %v1599
    %v1601 = vrot.slane %v1600, 1
    %v1602 = vmax.f32 %v1600, %v1601
    %v1603 = vsub.f32 %v1595, %v1602
    %v1604 = vmul.f32 %v1603, 1.442695
    %v1605 = vpow.pop %v1604
    %v1606 = vrot.slane %v1605, 4
    %v1607 = vadd.f32 %v1605, %v1606
    %v1608 = vrot.slane %v1607, 2
    %v1609 = vadd.f32 %v1607, %v1608
    %v1610 = vrot.slane %v1609, 1
    %v1611 = vadd.f32 %v1609, %v1610
    %v1612 = vlog2.pop %v1611
    %v1613 = vmul.f32 %v1612, 0.6931472
    %v1614 = vsub.f32 %v1603, %v1613
    %v1615 = vsub.f32 0.0, %v1592
    %v1616 = vmul.f32 %v1615, 1.442695
    %v1617 = vpow.pop %v1616
    %v1618 = vperm.slane %v1463, 0
    %v1619 = vsub.f32 %v1618, %v1589
    %v1620 = vmul.f32 %v1619, %v1617
    %v1621 = vmul.f32 %v1620, %v1620
    %v1622 = vmul.f32 %v1621, -0.5
    %v1623 = vsub.f32 %v1622, %v1592
    %v1624 = vsub.f32 %v1623, 0.9189385
    %v1625 = vadd.f32 %v1614, %v1624
    %v1626 = vrot.slane %v1625, 4
    %v1627 = vmax.f32 %v1625, %v1626
    %v1628 = vrot.slane %v1627, 2
    %v1629 = vmax.f32 %v1627, %v1628
    %v1630 = vrot.slane %v1629, 1
    %v1631 = vmax.f32 %v1629, %v1630
    %v1632 = vsub.f32 %v1625, %v1631
    %v1633 = vmul.f32 %v1632, 1.442695
    %v1634 = vpow.pop %v1633
    %v1635 = vrot.slane %v1634, 4
    %v1636 = vadd.f32 %v1634, %v1635
    %v1637 = vrot.slane %v1636, 2
    %v1638 = vadd.f32 %v1636, %v1637
    %v1639 = vrot.slane %v1638, 1
    %v1640 = vadd.f32 %v1638, %v1639
    %v1641 = vlog2.pop %v1640
    %v1642 = vmul.f32 %v1641, 0.6931472
    %v1643 = vadd.f32 %v1631, %v1642
    %v1644 = vadd.f32 %v1435, %v1643
    %v1645 = vmul.f32 %v365, %v1618
    %v1646 = vmul.f32 %v366, %v1618
    %v1647 = vadd.f32 %v1645, %v369
    %v1648 = vadd.f32 %v1646, %v370
    %v1649 = vmax.f32 %v1647, 0.0
    %v1650 = vmax.f32 %v1648, 0.0
    %1651 = vmatpush.msra.mxu0 0.0
    %1652 = vmatpush.msra.mxu0 0.0
    %1653 = vmatpush.msra.mxu0 0.0
    %1654 = vmatpush.msra.mxu0 0.0
    %1655 = vmatpush.msra.mxu0 0.0
    %1656 = vmatpush.msra.mxu0 0.0
    %1657 = vmatpush.msra.mxu0 0.0
    %1658 = vmatpush.msra.mxu0 0.0
    %1659 = vmatpush.msra.mxu0 0.0
    %1660 = vmatpush.msra.mxu0 0.0
    %1661 = vmatpush.msra.mxu0 0.0
    %1662 = vmatpush.msra.mxu0 0.0
    %1663 = vmatpush.msra.mxu0 0.0
    %1664 = vmatpush.msra.mxu0 0.0
    %1665 = vmatpush.msra.mxu0 %v1650
    %1666 = vmatpush.msra.mxu0 %v1649
    %1667 = vmatmul.f32.gmra.mxu0 %v379
    %v1668 = vpop.f32.mrf.mxu0
    %v1669 = vadd.f32 %v376, %v1668
    %1670 = vdwg.mxu0
    %v1671 = vtanh.pop %v1669
    %v1672 = vld [vmem:[%s0 + $0x7] sm:$0x1]
    %1673 = vmatpush.msra.mxu0 0.0
    %1674 = vmatpush.msra.mxu0 0.0
    %1675 = vmatpush.msra.mxu0 0.0
    %1676 = vmatpush.msra.mxu0 0.0
    %1677 = vmatpush.msra.mxu0 0.0
    %1678 = vmatpush.msra.mxu0 0.0
    %1679 = vmatpush.msra.mxu0 0.0
    %1680 = vmatpush.msra.mxu0 0.0
    %1681 = vmatpush.msra.mxu0 0.0
    %1682 = vmatpush.msra.mxu0 0.0
    %1683 = vmatpush.msra.mxu0 0.0
    %1684 = vmatpush.msra.mxu0 0.0
    %1685 = vmatpush.msra.mxu0 0.0
    %1686 = vmatpush.msra.mxu0 0.0
    %1687 = vmatpush.msra.mxu0 0.0
    %1688 = vmatpush.msra.mxu0 %v1503
    %1689 = vmatmul.f32.gmra.mxu0 %v408
    %v1690 = vpop.f32.mrf.mxu0
    %v1691 = vadd.f32 0.0, %v1690
    %1692 = vmatmul.f32.gmra.mxu0 %v411
    %v1693 = vpop.f32.mrf.mxu0
    %v1694 = vadd.f32 0.0, %v1693
    %1695 = vmatmul.f32.gmra.mxu0 %v414
    %v1696 = vpop.f32.mrf.mxu0
    %v1697 = vadd.f32 0.0, %v1696
    %1698 = vmatmul.f32.gmra.mxu0 %v417
    %v1699 = vpop.f32.mrf.mxu0
    %v1700 = vadd.f32 0.0, %v1699
    %1701 = vdwg.mxu0
    %v1702 = vperm.slane %v1671, 0
    %v1703 = vmul.f32 %v1702, %v1691
    %v1704 = vperm.slane %v1671, 1
    %v1705 = vmul.f32 %v1704, %v1694
    %v1706 = vadd.f32 %v1703, %v1705
    %v1707 = vperm.slane %v1671, 2
    %v1708 = vmul.f32 %v1707, %v1697
    %v1709 = vadd.f32 %v1706, %v1708
    %v1710 = vperm.slane %v1671, 3
    %v1711 = vmul.f32 %v1710, %v1700
    %v1712 = vadd.f32 %v1709, %v1711
    %v1713 = vtanh.pop %v1712
    %1714 = vmatpush.msra.mxu0 0.0
    %1715 = vmatpush.msra.mxu0 0.0
    %1716 = vmatpush.msra.mxu0 0.0
    %1717 = vmatpush.msra.mxu0 0.0
    %1718 = vmatpush.msra.mxu0 0.0
    %1719 = vmatpush.msra.mxu0 0.0
    %1720 = vmatpush.msra.mxu0 0.0
    %1721 = vmatpush.msra.mxu0 0.0
    %1722 = vmatpush.msra.mxu0 0.0
    %1723 = vmatpush.msra.mxu0 0.0
    %1724 = vmatpush.msra.mxu0 0.0
    %1725 = vmatpush.msra.mxu0 0.0
    %1726 = vmatpush.msra.mxu0 0.0
    %1727 = vmatpush.msra.mxu0 0.0
    %1728 = vmatpush.msra.mxu0 0.0
    %1729 = vmatpush.msra.mxu0 %v1713
    %1730 = vmatmul.f32.gmra.mxu0 %v179
    %v1731 = vpop.f32.mrf.mxu0
    %v1732 = vadd.f32 %v173, %v1731
    %1733 = vmatmul.f32.gmra.mxu0 %v182
    %v1734 = vpop.f32.mrf.mxu0
    %v1735 = vadd.f32 %v174, %v1734
    %1736 = vmatmul.f32.gmra.mxu0 %v185
    %v1737 = vpop.f32.mrf.mxu0
    %v1738 = vadd.f32 %v175, %v1737
    %1739 = vmatmul.f32.gmra.mxu0 %v188
    %v1740 = vpop.f32.mrf.mxu0
    %v1741 = vadd.f32 %v176, %v1740
    %1742 = vdwg.mxu0
    %v1743 = vmax.f32 %v1732, 0.0
    %v1744 = vmax.f32 %v1735, 0.0
    %v1745 = vmax.f32 %v1738, 0.0
    %v1746 = vmax.f32 %v1741, 0.0
    %1747 = vmatpush.msra.mxu0 0.0
    %1748 = vmatpush.msra.mxu0 0.0
    %1749 = vmatpush.msra.mxu0 0.0
    %1750 = vmatpush.msra.mxu0 0.0
    %1751 = vmatpush.msra.mxu0 0.0
    %1752 = vmatpush.msra.mxu0 0.0
    %1753 = vmatpush.msra.mxu0 0.0
    %1754 = vmatpush.msra.mxu0 0.0
    %1755 = vmatpush.msra.mxu0 0.0
    %1756 = vmatpush.msra.mxu0 0.0
    %1757 = vmatpush.msra.mxu0 0.0
    %1758 = vmatpush.msra.mxu0 0.0
    %1759 = vmatpush.msra.mxu0 %v1746
    %1760 = vmatpush.msra.mxu0 %v1745
    %1761 = vmatpush.msra.mxu0 %v1744
    %1762 = vmatpush.msra.mxu0 %v1743
    %1763 = vmatmul.f32.gmra.mxu0 %v233
    %v1764 = vpop.f32.mrf.mxu0
    %v1765 = vadd.f32 %v227, %v1764
    %1766 = vmatmul.f32.gmra.mxu0 %v236
    %v1767 = vpop.f32.mrf.mxu0
    %v1768 = vadd.f32 %v228, %v1767
    %1769 = vmatmul.f32.gmra.mxu0 %v239
    %v1770 = vpop.f32.mrf.mxu0
    %v1771 = vadd.f32 %v229, %v1770
    %1772 = vmatmul.f32.gmra.mxu0 %v242
    %v1773 = vpop.f32.mrf.mxu0
    %v1774 = vadd.f32 %v230, %v1773
    %1775 = vdwg.mxu0
    %v1776 = vmax.f32 %v1765, 0.0
    %v1777 = vmax.f32 %v1768, 0.0
    %v1778 = vmax.f32 %v1771, 0.0
    %v1779 = vmax.f32 %v1774, 0.0
    %1780 = vmatpush.msra.mxu0 0.0
    %1781 = vmatpush.msra.mxu0 0.0
    %1782 = vmatpush.msra.mxu0 0.0
    %1783 = vmatpush.msra.mxu0 0.0
    %1784 = vmatpush.msra.mxu0 0.0
    %1785 = vmatpush.msra.mxu0 0.0
    %1786 = vmatpush.msra.mxu0 0.0
    %1787 = vmatpush.msra.mxu0 0.0
    %1788 = vmatpush.msra.mxu0 0.0
    %1789 = vmatpush.msra.mxu0 0.0
    %1790 = vmatpush.msra.mxu0 0.0
    %1791 = vmatpush.msra.mxu0 0.0
    %1792 = vmatpush.msra.mxu0 %v1779
    %1793 = vmatpush.msra.mxu0 %v1778
    %1794 = vmatpush.msra.mxu0 %v1777
    %1795 = vmatpush.msra.mxu0 %v1776
    %1796 = vmatmul.f32.gmra.mxu0 %v284
    %v1797 = vpop.f32.mrf.mxu0
    %v1798 = vadd.f32 %v280, %v1797
    %1799 = vmatmul.f32.gmra.mxu0 %v287
    %v1800 = vpop.f32.mrf.mxu0
    %v1801 = vadd.f32 %v281, %v1800
    %1802 = vmatmul.f32.gmra.mxu0 %v290
    %v1803 = vpop.f32.mrf.mxu0
    %v1804 = vadd.f32 %v282, %v1803
    %1805 = vdwg.mxu0
    %v1806 = vrot.slane %v1804, 4
    %v1807 = vmax.f32 %v1804, %v1806
    %v1808 = vrot.slane %v1807, 2
    %v1809 = vmax.f32 %v1807, %v1808
    %v1810 = vrot.slane %v1809, 1
    %v1811 = vmax.f32 %v1809, %v1810
    %v1812 = vsub.f32 %v1804, %v1811
    %v1813 = vmul.f32 %v1812, 1.442695
    %v1814 = vpow.pop %v1813
    %v1815 = vrot.slane %v1814, 4
    %v1816 = vadd.f32 %v1814, %v1815
    %v1817 = vrot.slane %v1816, 2
    %v1818 = vadd.f32 %v1816, %v1817
    %v1819 = vrot.slane %v1818, 1
    %v1820 = vadd.f32 %v1818, %v1819
    %v1821 = vlog2.pop %v1820
    %v1822 = vmul.f32 %v1821, 0.6931472
    %v1823 = vsub.f32 %v1812, %v1822
    %v1824 = vsub.f32 0.0, %v1801
    %v1825 = vmul.f32 %v1824, 1.442695
    %v1826 = vpow.pop %v1825
    %v1827 = vperm.slane %v1672, 0
    %v1828 = vsub.f32 %v1827, %v1798
    %v1829 = vmul.f32 %v1828, %v1826
    %v1830 = vmul.f32 %v1829, %v1829
    %v1831 = vmul.f32 %v1830, -0.5
    %v1832 = vsub.f32 %v1831, %v1801
    %v1833 = vsub.f32 %v1832, 0.9189385
    %v1834 = vadd.f32 %v1823, %v1833
    %v1835 = vrot.slane %v1834, 4
    %v1836 = vmax.f32 %v1834, %v1835
    %v1837 = vrot.slane %v1836, 2
    %v1838 = vmax.f32 %v1836, %v1837
    %v1839 = vrot.slane %v1838, 1
    %v1840 = vmax.f32 %v1838, %v1839
    %v1841 = vsub.f32 %v1834, %v1840
    %v1842 = vmul.f32 %v1841, 1.442695
    %v1843 = vpow.pop %v1842
    %v1844 = vrot.slane %v1843, 4
    %v1845 = vadd.f32 %v1843, %v1844
    %v1846 = vrot.slane %v1845, 2
    %v1847 = vadd.f32 %v1845, %v1846
    %v1848 = vrot.slane %v1847, 1
    %v1849 = vadd.f32 %v1847, %v1848
    %v1850 = vlog2.pop %v1849
    %v1851 = vmul.f32 %v1850, 0.6931472
    %v1852 = vadd.f32 %v1840, %v1851
    %v1853 = vadd.f32 %v1644, %v1852
    %1854 = vst [vmem:[#allocation8] sm:$0x1] %v1853
    // Predicated region
    $region58: #{tpu_custom_call.1} parent=1 // pred_check
      _
    $region59: #{tpu_custom_call.1} parent=1 // pred_check_branch
      %1856 = sbr.rel (0) target = $region61
    $region60: #{tpu_custom_call.1} parent=1 // pred_region
      %1858 = vsyncadd [#allocation9], 0
      %s1860 = sshll.u32 [#allocation8], 4
      %s1861 = int_to_ptr.vmem [resolvable:$true] %s1860
      %s1862 = sshll.u32 %s13, 4
      %s1863 = int_to_ptr.hbm [resolvable:$true] %s1862
      %1865 = dma.vmem_to_hbm [thread:$0]  %s1861, 16, %s1863, [#allocation9]
    $region61: #{tpu_custom_call.1} parent=1 // pred_fallthru
      _
    // Predicated region
    $region62: #{tpu_custom_call.1} parent=1 // pred_check
      _
    $region63: #{tpu_custom_call.1} parent=1 // pred_check_branch
      %1867 = sbr.rel (0) target = $region65
    $region64: #{tpu_custom_call.1} parent=1 // pred_region
      %1869 = dma.done [#allocation9], 16
    $region65: #{tpu_custom_call.1} parent=1 // pred_fallthru
      _
    %1870 = vsyncpa [#allocation9], 1

</llo_original>
